<compile_context>
chip_gen: v7x
topology: tpu7x:2x2x1
jax: 0.10.0
libtpu: 0.0.40
codegen_flags: <defaults>
</compile_context>

<pallas_src>
import functools

import jax
import jax.numpy as jnp
from jax.experimental import pallas as pl
from jax.experimental.pallas import tpu as pltpu


def _round_up(a, m):
    return (a + m - 1) // m * m


def _mlp_kernel(num_layers, *refs):
    """refs = (x_ref, w0, b0, w1, b1, ..., w_{L-1}, b_{L-1}, o_ref).

    x_ref / w_l are bf16 (MXU operands); b_l are f32; accumulation and the
    elementwise tail (bias add, ReLU) stay in f32.
    """
    x_ref = refs[0]
    o_ref = refs[-1]
    params = refs[1:-1]

    h = x_ref[...]  # bf16 [tile_n, dim_in_pad]
    for l in range(num_layers):
        w = params[2 * l][...]          # bf16 [fan_in_pad, fan_out_pad]
        b = params[2 * l + 1][...]      # f32  [1, fan_out_pad]
        acc = jnp.dot(h.astype(jnp.bfloat16), w,
                      preferred_element_type=jnp.float32)  # f32 MXU accumulate
        acc = acc + b                                       # f32 bias add
        if l != num_layers - 1:
            h = jnp.maximum(acc, 0.0)                       # f32 ReLU
        else:
            h = acc
    o_ref[...] = h.astype(o_ref.dtype)


def mlp_pallas(x, weights, biases, *, tile_n=1024):
    """Fused MLP forward.

    x: [N, dim_in]; weights[l]: [fan_in_l, fan_out_l] (= nn.Linear weight.T);
    biases[l]: [fan_out_l].  Returns [N, dim_out] in x.dtype.
    """
    num_layers = len(weights)
    N, dim_in = x.shape
    dim_out = weights[-1].shape[1]
    out_dtype = x.dtype

    # ---- pad feature dims: every fan_out -> multiple of 128 (lane-dense) ----
    fan_outs = [w.shape[1] for w in weights]
    pad_outs = [_round_up(f, 128) for f in fan_outs]
    dim_in_pad = _round_up(dim_in, 8)       # sublane-aligned contraction dim
    pad_ins = [dim_in_pad] + pad_outs[:-1]
    dim_out_pad = pad_outs[-1]

    pweights, pbiases = [], []
    for l, (w, b) in enumerate(zip(weights, biases)):
        w_bf = w.astype(jnp.bfloat16)
        pw = jnp.pad(w_bf, ((0, pad_ins[l] - w.shape[0]),
                            (0, pad_outs[l] - w.shape[1])))
        b_f32 = b.astype(jnp.float32).reshape(1, -1)
        pb = jnp.pad(b_f32, ((0, 0), (0, pad_outs[l] - b.shape[0])))
        pweights.append(pw)
        pbiases.append(pb)

    # ---- pad / tile the batch axis ----
    tile_n = _round_up(max(8, tile_n), 8)
    tile_n = min(tile_n, _round_up(N, 8))
    n_pad = _round_up(N, tile_n)

    x_bf = x.astype(jnp.bfloat16)
    if n_pad != N or dim_in_pad != dim_in:
        x_p = jnp.pad(x_bf, ((0, n_pad - N), (0, dim_in_pad - dim_in)))
    else:
        x_p = x_bf

    grid = (n_pad // tile_n,)

    # ---- specs ----
    in_specs = [pl.BlockSpec((tile_n, dim_in_pad), lambda i: (i, 0))]
    param_args = []
    for w, b in zip(pweights, pbiases):
        in_specs.append(pl.BlockSpec(w.shape, lambda i: (0, 0)))
        in_specs.append(pl.BlockSpec(b.shape, lambda i: (0, 0)))
        param_args += [w, b]
    out_spec = pl.BlockSpec((tile_n, dim_out_pad), lambda i: (i, 0))

    # ---- cost estimate (helps XLA schedule around the custom call) ----
    flops = 2 * n_pad * sum(pi * po for pi, po in zip(pad_ins, pad_outs))
    bytes_accessed = (
        n_pad * dim_in_pad * 2
        + sum(w.size * 2 for w in pweights)
        + sum(b.size * 4 for b in pbiases)
        + n_pad * dim_out_pad * jnp.dtype(out_dtype).itemsize
    )
    cost = pl.CostEstimate(flops=flops, transcendentals=0,
                           bytes_accessed=bytes_accessed)

    # ---- VMEM budget: double-buffered x/out tiles + resident params +
    #      f32 activation headroom; keep well under v7x's 64 MiB VMEM. ----
    act_bytes = 4 * tile_n * max(pad_outs) * 4
    vmem_needed = (
        2 * tile_n * dim_in_pad * 2
        + 2 * tile_n * dim_out_pad * jnp.dtype(out_dtype).itemsize
        + 2 * sum(w.size * 2 for w in pweights)
        + 2 * sum(b.size * 4 for b in pbiases)
        + act_bytes
    )
    vmem_limit = int(min(max(2 * vmem_needed, 32 << 20), 48 << 20))

    kernel = functools.partial(_mlp_kernel, num_layers)
    out = pl.pallas_call(
        kernel,
        out_shape=jax.ShapeDtypeStruct((n_pad, dim_out_pad), out_dtype),
        grid_spec=pltpu.PrefetchScalarGridSpec(
            num_scalar_prefetch=0,
            grid=grid,
            in_specs=in_specs,
            out_specs=out_spec,
        ),
        compiler_params=pltpu.CompilerParams(
            dimension_semantics=("parallel",),
            vmem_limit_bytes=vmem_limit,
        ),
        cost_estimate=cost,
    )(x_p, *param_args)

    return out[:N, :dim_out]


def init_mlp_params(key, dim_in, dim_out, dim_hidden, num_layers,
                    dtype=jnp.float32):
    """Mimics nn.Linear's default U(-1/sqrt(fan_in), 1/sqrt(fan_in)) init."""
    weights, biases = [], []
    for l in range(num_layers):
        fan_in = dim_in if l == 0 else dim_hidden
        fan_out = dim_out if l == num_layers - 1 else dim_hidden
        key, kw, kb = jax.random.split(key, 3)
        bound = 1.0 / (fan_in ** 0.5)
        weights.append(jax.random.uniform(kw, (fan_in, fan_out), dtype,
                                          minval=-bound, maxval=bound))
        biases.append(jax.random.uniform(kb, (fan_out,), dtype,
                                         minval=-bound, maxval=bound))
    return weights, biases


def mlp_reference(x, weights, biases, compute_dtype=jnp.float32):
    """Reference forward; compute_dtype=bfloat16 mimics the kernel's MXU math."""
    h = x.astype(jnp.float32)
    num_layers = len(weights)
    for l in range(num_layers):
        acc = jnp.dot(h.astype(compute_dtype),
                      weights[l].astype(compute_dtype),
                      preferred_element_type=jnp.float32)
        h = acc + biases[l].astype(jnp.float32)
        if l != num_layers - 1:
            h = jnp.maximum(h, 0.0)
    return h


if __name__ == "__main__":
    # Small NeRF-like MLP: dim_in=32, dim_hidden=64, dim_out=16, num_layers=3.
    dim_in, dim_out, dim_hidden, num_layers = 32, 16, 64, 3
    N = 2048  # batch of points; tile_n=1024 -> grid of 2 (keeps both v7x TCs busy)

    key = jax.random.PRNGKey(0)
    key, kx = jax.random.split(key)
    x = jax.random.normal(kx, (N, dim_in), dtype=jnp.float32)

    weights, biases = init_mlp_params(key, dim_in, dim_out, dim_hidden,
                                      num_layers)

    out = mlp_pallas(x, weights, biases, tile_n=1024)
    out = jax.block_until_ready(out)
    assert out.shape == (N, dim_out)
    assert out.dtype == x.dtype

    # Tight check against a reference that uses the same bf16 operand rounding.
    ref_bf16 = mlp_reference(x, weights, biases, compute_dtype=jnp.bfloat16)
    assert jnp.allclose(out, ref_bf16, atol=1e-2, rtol=1e-2), \
        "mismatch vs bf16-operand reference"

    # Loose sanity check against full-f32 math (bf16 operand quantization only).
    ref_f32 = mlp_reference(x, weights, biases, compute_dtype=jnp.float32)
    assert jnp.max(jnp.abs(out - ref_f32)) < 0.1, "mismatch vs f32 reference"

    print("KERNEL_OK")
</pallas_src>

<mosaic_0001>
module attributes {stable_mosaic.version = 11 : i64} {
  func.func @_mlp_kernel(%arg0: i32, %arg1: memref<1024x32xbf16, #tpu.memory_space<vmem>>, %arg2: memref<32x128xbf16, #tpu.memory_space<vmem>>, %arg3: memref<1x128xf32, #tpu.memory_space<vmem>>, %arg4: memref<128x128xbf16, #tpu.memory_space<vmem>>, %arg5: memref<1x128xf32, #tpu.memory_space<vmem>>, %arg6: memref<128x128xbf16, #tpu.memory_space<vmem>>, %arg7: memref<1x128xf32, #tpu.memory_space<vmem>>, %arg8: memref<1024x128xf32, #tpu.memory_space<vmem>>) attributes {dimension_semantics = [#tpu.dimension_semantics<parallel>], iteration_bounds = array<i64: 2>, scalar_prefetch = 0 : i64, scratch_operands = 0 : i64, tpu.core_type = #tpu.core_type<tc>, window_params = [{transform_indices = @transform_0, window_bounds = array<i64: 1024, 32>}, {pipeline_mode = #tpu.pipeline_mode<synchronous>, transform_indices = @transform_1, window_bounds = array<i64: 32, 128>}, {pipeline_mode = #tpu.pipeline_mode<synchronous>, transform_indices = @transform_2, window_bounds = array<i64: 1, 128>}, {pipeline_mode = #tpu.pipeline_mode<synchronous>, transform_indices = @transform_3, window_bounds = array<i64: 128, 128>}, {pipeline_mode = #tpu.pipeline_mode<synchronous>, transform_indices = @transform_4, window_bounds = array<i64: 1, 128>}, {pipeline_mode = #tpu.pipeline_mode<synchronous>, transform_indices = @transform_5, window_bounds = array<i64: 128, 128>}, {pipeline_mode = #tpu.pipeline_mode<synchronous>, transform_indices = @transform_6, window_bounds = array<i64: 1, 128>}, {transform_indices = @transform_7, window_bounds = array<i64: 1024, 128>}]} {
    %c0 = arith.constant 0 : index
    %c0_0 = arith.constant 0 : index
    %0 = vector.load %arg1[%c0, %c0_0] : memref<1024x32xbf16, #tpu.memory_space<vmem>>, vector<1024x32xbf16>
    %c0_1 = arith.constant 0 : index
    %c0_2 = arith.constant 0 : index
    %1 = vector.load %arg2[%c0_1, %c0_2] : memref<32x128xbf16, #tpu.memory_space<vmem>>, vector<32x128xbf16>
    %c0_3 = arith.constant 0 : index
    %c0_4 = arith.constant 0 : index
    %2 = vector.load %arg3[%c0_3, %c0_4] : memref<1x128xf32, #tpu.memory_space<vmem>>, vector<1x128xf32>
    %cst = arith.constant dense<0.000000e+00> : vector<1024x128xf32>
    %3 = tpu.matmul %0, %1, %cst {dimension_numbers = #tpu.dot_dimension_numbers<[1], [0], [0], [1], [0, 0, 1, 1], [], []>} : vector<1024x32xbf16>, vector<32x128xbf16>, vector<1024x128xf32> -> vector<1024x128xf32>
    %4 = vector.broadcast %2 : vector<1x128xf32> to vector<1024x128xf32>
    %5 = arith.addf %3, %4 : vector<1024x128xf32>
    %cst_5 = arith.constant 0.000000e+00 : f32
    %6 = vector.broadcast %cst_5 : f32 to vector<1024x128xf32>
    %7 = arith.maximumf %5, %6 : vector<1024x128xf32>
    %c0_6 = arith.constant 0 : index
    %c0_7 = arith.constant 0 : index
    %8 = vector.load %arg4[%c0_6, %c0_7] : memref<128x128xbf16, #tpu.memory_space<vmem>>, vector<128x128xbf16>
    %c0_8 = arith.constant 0 : index
    %c0_9 = arith.constant 0 : index
    %9 = vector.load %arg5[%c0_8, %c0_9] : memref<1x128xf32, #tpu.memory_space<vmem>>, vector<1x128xf32>
    %10 = arith.truncf %7 : vector<1024x128xf32> to vector<1024x128xbf16>
    %cst_10 = arith.constant dense<0.000000e+00> : vector<1024x128xf32>
    %11 = tpu.matmul %10, %8, %cst_10 {dimension_numbers = #tpu.dot_dimension_numbers<[1], [0], [0], [1], [0, 0, 1, 1], [], []>} : vector<1024x128xbf16>, vector<128x128xbf16>, vector<1024x128xf32> -> vector<1024x128xf32>
    %12 = vector.broadcast %9 : vector<1x128xf32> to vector<1024x128xf32>
    %13 = arith.addf %11, %12 : vector<1024x128xf32>
    %cst_11 = arith.constant 0.000000e+00 : f32
    %14 = vector.broadcast %cst_11 : f32 to vector<1024x128xf32>
    %15 = arith.maximumf %13, %14 : vector<1024x128xf32>
    %c0_12 = arith.constant 0 : index
    %c0_13 = arith.constant 0 : index
    %16 = vector.load %arg6[%c0_12, %c0_13] : memref<128x128xbf16, #tpu.memory_space<vmem>>, vector<128x128xbf16>
    %c0_14 = arith.constant 0 : index
    %c0_15 = arith.constant 0 : index
    %17 = vector.load %arg7[%c0_14, %c0_15] : memref<1x128xf32, #tpu.memory_space<vmem>>, vector<1x128xf32>
    %18 = arith.truncf %15 : vector<1024x128xf32> to vector<1024x128xbf16>
    %cst_16 = arith.constant dense<0.000000e+00> : vector<1024x128xf32>
    %19 = tpu.matmul %18, %16, %cst_16 {dimension_numbers = #tpu.dot_dimension_numbers<[1], [0], [0], [1], [0, 0, 1, 1], [], []>} : vector<1024x128xbf16>, vector<128x128xbf16>, vector<1024x128xf32> -> vector<1024x128xf32>
    %20 = vector.broadcast %17 : vector<1x128xf32> to vector<1024x128xf32>
    %21 = arith.addf %19, %20 : vector<1024x128xf32>
    %c0_17 = arith.constant 0 : index
    %c0_18 = arith.constant 0 : index
    %22 = vector.load %arg8[%c0_17, %c0_18] : memref<1024x128xf32, #tpu.memory_space<vmem>>, vector<1024x128xf32>
    tpu.vector_store %arg8[%c0_17, %c0_18], %21 {strides = array<i32>} : memref<1024x128xf32, #tpu.memory_space<vmem>>, vector<1024x128xf32>,
    return
  }
  func.func @transform_0(%arg0: i32) -> (i32, i32) {
    %c0_i32 = arith.constant 0 : i32
    %c0_i32_0 = arith.constant 0 : i32
    return %arg0, %c0_i32 : i32, i32
  }
  func.func @transform_1(%arg0: i32) -> (i32, i32) {
    %c0_i32 = arith.constant 0 : i32
    %c0_i32_0 = arith.constant 0 : i32
    %c0_i32_1 = arith.constant 0 : i32
    return %c0_i32, %c0_i32_0 : i32, i32
  }
  func.func @transform_2(%arg0: i32) -> (i32, i32) {
    %c0_i32 = arith.constant 0 : i32
    %c0_i32_0 = arith.constant 0 : i32
    %c0_i32_1 = arith.constant 0 : i32
    return %c0_i32, %c0_i32_0 : i32, i32
  }
  func.func @transform_3(%arg0: i32) -> (i32, i32) {
    %c0_i32 = arith.constant 0 : i32
    %c0_i32_0 = arith.constant 0 : i32
    %c0_i32_1 = arith.constant 0 : i32
    return %c0_i32, %c0_i32_0 : i32, i32
  }
  func.func @transform_4(%arg0: i32) -> (i32, i32) {
    %c0_i32 = arith.constant 0 : i32
    %c0_i32_0 = arith.constant 0 : i32
    %c0_i32_1 = arith.constant 0 : i32
    return %c0_i32, %c0_i32_0 : i32, i32
  }
  func.func @transform_5(%arg0: i32) -> (i32, i32) {
    %c0_i32 = arith.constant 0 : i32
    %c0_i32_0 = arith.constant 0 : i32
    %c0_i32_1 = arith.constant 0 : i32
    return %c0_i32, %c0_i32_0 : i32, i32
  }
  func.func @transform_6(%arg0: i32) -> (i32, i32) {
    %c0_i32 = arith.constant 0 : i32
    %c0_i32_0 = arith.constant 0 : i32
    %c0_i32_1 = arith.constant 0 : i32
    return %c0_i32, %c0_i32_0 : i32, i32
  }
  func.func @transform_7(%arg0: i32) -> (i32, i32) {
    %c0_i32 = arith.constant 0 : i32
    %c0_i32_0 = arith.constant 0 : i32
    return %arg0, %c0_i32 : i32, i32
  }
}

</mosaic_0001>

<llo_original>
// kernel: tpu_custom_call.1
$region0: #{tpu_custom_call.1}
  #allocation0 [shape = 'u32[]', space=smem, size = 0x4, offset = 0x4, fixed_abs, tag = 'smem constant byte address 0x4 - core index']
  #allocation1 [shape = 'u32[144,128]{1,0:T(1,128)}', space=vmem, size = 0x12000, scoped, tag = 'internal scratch']
  %s0 = inlined_call_operand.vmem [shape: bf16[2048,32], index: 0, kind: input, shape index: {}]
  %s1 = inlined_call_operand.vmem [shape: bf16[32,128], index: 1, kind: input, shape index: {}]
  %s2 = inlined_call_operand.vmem [shape: f32[1,128], index: 2, kind: input, shape index: {}]
  %s3 = inlined_call_operand.vmem [shape: bf16[128,128], index: 3, kind: input, shape index: {}]
  %s4 = inlined_call_operand.vmem [shape: f32[1,128], index: 4, kind: input, shape index: {}]
  %s5 = inlined_call_operand.vmem [shape: bf16[128,128], index: 5, kind: input, shape index: {}]
  %s6 = inlined_call_operand.vmem [shape: f32[1,128], index: 6, kind: input, shape index: {}]
  %s7 = inlined_call_operand.hbm [shape: f32[2048,128], index: 7, kind: output, shape index: {}]
  %s8 = sld [smem:[#allocation0]]
  $region61: #{tpu_custom_call.1} parent=0
    _
  %s10 = ssub.s32 1, %s8
  %s11 = scalar_select 0, %s10, %s8
  $region1: #{tpu_custom_call.1} parent=0
    #allocation2 [shape = 'u8[1048576]{0}', space=vmem, size = 0x100000, scoped, tag = 'output window, operand 0']
    #allocation3 [shape = 's32[2]{0}', space=sflag, size = 0x8, scoped, tag = 'scoped memory for tpu_custom_call.1']
    %12 = vsyncpa [#allocation3], 0
    %s13 = scalar_lea.sflag [#allocation3], 1
    %14 = vsyncpa %s13, 0
    loop: start=0, step=1, limit=4
    $region2: #{tpu_custom_call.1} parent=1 // loop_pre_header
      _
    $region3: #{tpu_custom_call.1} parent=1 // loop_header
      %s16 = sphi 0, %s20
      %p17 = scmp.ge.s32.totalorder %s16, 4
      %s26 = sphi 0, %s28
      %s29 = sphi 0, %s26
      %s30 = sphi 0, %s29
      %s46 = sphi 0, %s30
      %s50 = sphi 0, %s50
      %s52 = sphi 0, %s50
      %s53 = sphi 0, %s52
      %s67 = sphi 0, %s53
      %s71 = sphi 0, %s71
      %s73 = sphi 0, %s71
      %s74 = sphi 0, %s73
      %s88 = sphi 0, %s74
      %s92 = sphi 0, %s92
      %s94 = sphi 0, %s92
      %s95 = sphi 0, %s94
      %s109 = sphi 0, %s95
      %s113 = sphi 0, %s113
      %s115 = sphi 0, %s113
      %s116 = sphi 0, %s115
      %s130 = sphi 0, %s116
      %s134 = sphi 0, %s134
      %s136 = sphi 0, %s134
      %s137 = sphi 0, %s136
      %s151 = sphi 0, %s137
      %s155 = sphi 0, %s155
      %s157 = sphi 0, %s155
      %s158 = sphi 0, %s157
      %s172 = sphi 0, %s158
      %s178 = sphi 0, %s180
      %s181 = sphi 0, %s178
      %s182 = sphi 0, %s181
      %s198 = sphi 0, %s182
    $region4: #{tpu_custom_call.1} parent=1 // loop_header_branch
      %19 = sbr.rel (%p17) target = $region8
    $region5: #{tpu_custom_call.1} parent=1 // loop_body
      %s21 = ssub.s32 %s16, 1
      %s22 = ssub.s32 %s16, 2
      %s23 = sadd.s32 %s16, 1
      %s24 = ssub.s32 %s16, %s23
      %p25 = scmp.eq.s32.totalorder %s24, 0
      %s27 = sadd.s32 %s26, 1
      %s28 = scalar_select %p25, %s26, %s27
      %p31 = pneg %p25
      %p32 = scmp.eq.s32.totalorder %s16, 1
      %p33 = por %p31, %p32
      %p34 = scmp.ne.s32.totalorder %s26, %s29
      %p35 = scmp.eq.s32.totalorder %s16, 0
      %p36 = por %p34, %p35
      %p37 = scmp.ne.s32.totalorder %s26, %s29
      %p38 = scmp.eq.s32.totalorder %s21, 1
      %p39 = por %p37, %p38
      %p40 = scmp.ne.s32.totalorder %s29, %s30
      %p41 = scmp.eq.s32.totalorder %s21, 0
      %p42 = por %p40, %p41
      %p43 = scmp.ne.s32.totalorder %s29, %s30
      %p44 = scmp.eq.s32.totalorder %s22, 1
      %p45 = por %p43, %p44
      %p47 = scmp.ne.s32.totalorder %s30, %s46
      %p48 = scmp.eq.s32.totalorder %s22, 0
      %p49 = por %p47, %p48
      %s51 = sadd.s32 %s50, 1
      %p54 = scmp.eq.s32.totalorder %s16, 1
      %p55 = scmp.ne.s32.totalorder %s50, %s52
      %p56 = scmp.eq.s32.totalorder %s16, 0
      %p57 = por %p55, %p56
      %p58 = scmp.ne.s32.totalorder %s50, %s52
      %p59 = scmp.eq.s32.totalorder %s21, 1
      %p60 = por %p58, %p59
      %p61 = scmp.ne.s32.totalorder %s52, %s53
      %p62 = scmp.eq.s32.totalorder %s21, 0
      %p63 = por %p61, %p62
      %p64 = scmp.ne.s32.totalorder %s52, %s53
      %p65 = scmp.eq.s32.totalorder %s22, 1
      %p66 = por %p64, %p65
      %p68 = scmp.ne.s32.totalorder %s53, %s67
      %p69 = scmp.eq.s32.totalorder %s22, 0
      %p70 = por %p68, %p69
      %s72 = sadd.s32 %s71, 1
      %p75 = scmp.eq.s32.totalorder %s16, 1
      %p76 = scmp.ne.s32.totalorder %s71, %s73
      %p77 = scmp.eq.s32.totalorder %s16, 0
      %p78 = por %p76, %p77
      %p79 = scmp.ne.s32.totalorder %s71, %s73
      %p80 = scmp.eq.s32.totalorder %s21, 1
      %p81 = por %p79, %p80
      %p82 = scmp.ne.s32.totalorder %s73, %s74
      %p83 = scmp.eq.s32.totalorder %s21, 0
      %p84 = por %p82, %p83
      %p85 = scmp.ne.s32.totalorder %s73, %s74
      %p86 = scmp.eq.s32.totalorder %s22, 1
      %p87 = por %p85, %p86
      %p89 = scmp.ne.s32.totalorder %s74, %s88
      %p90 = scmp.eq.s32.totalorder %s22, 0
      %p91 = por %p89, %p90
      %s93 = sadd.s32 %s92, 1
      %p96 = scmp.eq.s32.totalorder %s16, 1
      %p97 = scmp.ne.s32.totalorder %s92, %s94
      %p98 = scmp.eq.s32.totalorder %s16, 0
      %p99 = por %p97, %p98
      %p100 = scmp.ne.s32.totalorder %s92, %s94
      %p101 = scmp.eq.s32.totalorder %s21, 1
      %p102 = por %p100, %p101
      %p103 = scmp.ne.s32.totalorder %s94, %s95
      %p104 = scmp.eq.s32.totalorder %s21, 0
      %p105 = por %p103, %p104
      %p106 = scmp.ne.s32.totalorder %s94, %s95
      %p107 = scmp.eq.s32.totalorder %s22, 1
      %p108 = por %p106, %p107
      %p110 = scmp.ne.s32.totalorder %s95, %s109
      %p111 = scmp.eq.s32.totalorder %s22, 0
      %p112 = por %p110, %p111
      %s114 = sadd.s32 %s113, 1
      %p117 = scmp.eq.s32.totalorder %s16, 1
      %p118 = scmp.ne.s32.totalorder %s113, %s115
      %p119 = scmp.eq.s32.totalorder %s16, 0
      %p120 = por %p118, %p119
      %p121 = scmp.ne.s32.totalorder %s113, %s115
      %p122 = scmp.eq.s32.totalorder %s21, 1
      %p123 = por %p121, %p122
      %p124 = scmp.ne.s32.totalorder %s115, %s116
      %p125 = scmp.eq.s32.totalorder %s21, 0
      %p126 = por %p124, %p125
      %p127 = scmp.ne.s32.totalorder %s115, %s116
      %p128 = scmp.eq.s32.totalorder %s22, 1
      %p129 = por %p127, %p128
      %p131 = scmp.ne.s32.totalorder %s116, %s130
      %p132 = scmp.eq.s32.totalorder %s22, 0
      %p133 = por %p131, %p132
      %s135 = sadd.s32 %s134, 1
      %p138 = scmp.eq.s32.totalorder %s16, 1
      %p139 = scmp.ne.s32.totalorder %s134, %s136
      %p140 = scmp.eq.s32.totalorder %s16, 0
      %p141 = por %p139, %p140
      %p142 = scmp.ne.s32.totalorder %s134, %s136
      %p143 = scmp.eq.s32.totalorder %s21, 1
      %p144 = por %p142, %p143
      %p145 = scmp.ne.s32.totalorder %s136, %s137
      %p146 = scmp.eq.s32.totalorder %s21, 0
      %p147 = por %p145, %p146
      %p148 = scmp.ne.s32.totalorder %s136, %s137
      %p149 = scmp.eq.s32.totalorder %s22, 1
      %p150 = por %p148, %p149
      %p152 = scmp.ne.s32.totalorder %s137, %s151
      %p153 = scmp.eq.s32.totalorder %s22, 0
      %p154 = por %p152, %p153
      %s156 = sadd.s32 %s155, 1
      %p159 = scmp.eq.s32.totalorder %s16, 1
      %p160 = scmp.ne.s32.totalorder %s155, %s157
      %p161 = scmp.eq.s32.totalorder %s16, 0
      %p162 = por %p160, %p161
      %p163 = scmp.ne.s32.totalorder %s155, %s157
      %p164 = scmp.eq.s32.totalorder %s21, 1
      %p165 = por %p163, %p164
      %p166 = scmp.ne.s32.totalorder %s157, %s158
      %p167 = scmp.eq.s32.totalorder %s21, 0
      %p168 = por %p166, %p167
      %p169 = scmp.ne.s32.totalorder %s157, %s158
      %p170 = scmp.eq.s32.totalorder %s22, 1
      %p171 = por %p169, %p170
      %p173 = scmp.ne.s32.totalorder %s158, %s172
      %p174 = scmp.eq.s32.totalorder %s22, 0
      %p175 = por %p173, %p174
      %s176 = ssub.s32 %s16, %s23
      %p177 = scmp.eq.s32.totalorder %s176, 0
      %s179 = sadd.s32 %s178, 1
      %s180 = scalar_select %p177, %s178, %s179
      %p183 = pneg %p177
      %p184 = scmp.eq.s32.totalorder %s16, 1
      %p185 = por %p183, %p184
      %p186 = scmp.ne.s32.totalorder %s178, %s181
      %p187 = scmp.eq.s32.totalorder %s16, 0
      %p188 = por %p186, %p187
      %p189 = scmp.ne.s32.totalorder %s178, %s181
      %p190 = scmp.eq.s32.totalorder %s21, 1
      %p191 = por %p189, %p190
      %p192 = scmp.ne.s32.totalorder %s181, %s182
      %p193 = scmp.eq.s32.totalorder %s21, 0
      %p194 = por %p192, %p193
      %p195 = scmp.ne.s32.totalorder %s181, %s182
      %p196 = scmp.eq.s32.totalorder %s22, 1
      %p197 = por %p195, %p196
      %p199 = scmp.ne.s32.totalorder %s182, %s198
      %p200 = scmp.eq.s32.totalorder %s22, 0
      %p201 = por %p199, %p200
      %p202 = scmp.le.s32.totalorder 1, %s16
      %p203 = scmp.lt.s32.totalorder %s16, 3
      %p204 = pnand %p202, %p203
      %p205 = pneg %p204
      // Predicated region
      $region9: #{tpu_custom_call.1} parent=5 // pred_check
        _
      $region10: #{tpu_custom_call.1} parent=5 // pred_check_branch
        %207 = sbr.rel (%p204) target = $region12
      $region11: #{tpu_custom_call.1} parent=5 // pred_region
        %s208 = ssub.s32 %s16, 1
        // Predicated region
        $region13: #{tpu_custom_call.1} parent=11 // pred_check
          %p209 = pneg %p63
        $region14: #{tpu_custom_call.1} parent=11 // pred_check_branch
          %211 = sbr.rel (%p209) target = $region16
        $region15: #{tpu_custom_call.1} parent=11 // pred_region
          _
        $region16: #{tpu_custom_call.1} parent=11 // pred_fallthru
          _
        // Predicated region
        $region17: #{tpu_custom_call.1} parent=11 // pred_check
          %p212 = pneg %p84
        $region18: #{tpu_custom_call.1} parent=11 // pred_check_branch
          %214 = sbr.rel (%p212) target = $region20
        $region19: #{tpu_custom_call.1} parent=11 // pred_region
          _
        $region20: #{tpu_custom_call.1} parent=11 // pred_fallthru
          _
        // Predicated region
        $region21: #{tpu_custom_call.1} parent=11 // pred_check
          %p215 = pneg %p105
        $region22: #{tpu_custom_call.1} parent=11 // pred_check_branch
          %217 = sbr.rel (%p215) target = $region24
        $region23: #{tpu_custom_call.1} parent=11 // pred_region
          _
        $region24: #{tpu_custom_call.1} parent=11 // pred_fallthru
          _
        // Predicated region
        $region25: #{tpu_custom_call.1} parent=11 // pred_check
          %p218 = pneg %p126
        $region26: #{tpu_custom_call.1} parent=11 // pred_check_branch
          %220 = sbr.rel (%p218) target = $region28
        $region27: #{tpu_custom_call.1} parent=11 // pred_region
          _
        $region28: #{tpu_custom_call.1} parent=11 // pred_fallthru
          _
        // Predicated region
        $region29: #{tpu_custom_call.1} parent=11 // pred_check
          %p221 = pneg %p147
        $region30: #{tpu_custom_call.1} parent=11 // pred_check_branch
          %223 = sbr.rel (%p221) target = $region32
        $region31: #{tpu_custom_call.1} parent=11 // pred_region
          _
        $region32: #{tpu_custom_call.1} parent=11 // pred_fallthru
          _
        // Predicated region
        $region33: #{tpu_custom_call.1} parent=11 // pred_check
          %p224 = pneg %p168
        $region34: #{tpu_custom_call.1} parent=11 // pred_check_branch
          %226 = sbr.rel (%p224) target = $region36
        $region35: #{tpu_custom_call.1} parent=11 // pred_region
          _
        $region36: #{tpu_custom_call.1} parent=11 // pred_fallthru
          _
      $region12: #{tpu_custom_call.1} parent=5 // pred_fallthru
        _
      %p227 = scmp.lt.s32.totalorder %s16, 2
      // Predicated region
      $region37: #{tpu_custom_call.1} parent=5 // pred_check
        %p228 = pneg %p227
      $region38: #{tpu_custom_call.1} parent=5 // pred_check_branch
        %230 = sbr.rel (%p228) target = $region40
      $region39: #{tpu_custom_call.1} parent=5 // pred_region
        // Predicated region
        $region41: #{tpu_custom_call.1} parent=39 // pred_check
          %p231 = pneg %p36
        $region42: #{tpu_custom_call.1} parent=39 // pred_check_branch
          %233 = sbr.rel (%p231) target = $region44
        $region43: #{tpu_custom_call.1} parent=39 // pred_region
          %s234 = smul.u32 128, %s16
          %p235 = scmp.lt.s32.totalorder %s234, 255
          %s236 = scalar_select %p235, %s234, 255
          %s237 = smul.addr %s236, 4
          %s238 = scalar_lea.vmem %s0, %s237
          %s239 = smul.u32 128, %s16
        $region44: #{tpu_custom_call.1} parent=39 // pred_fallthru
          _
      $region40: #{tpu_custom_call.1} parent=5 // pred_fallthru
        _
      %p240 = scmp.le.s32.totalorder 1, %s16
      %p241 = scmp.lt.s32.totalorder %s16, 3
      %p242 = pnand %p240, %p241
      %p243 = pneg %p242
      // Predicated region
      $region45: #{tpu_custom_call.1} parent=5 // pred_check
        _
      $region46: #{tpu_custom_call.1} parent=5 // pred_check_branch
        %245 = sbr.rel (%p242) target = $region48
      $region47: #{tpu_custom_call.1} parent=5 // pred_region
        %s246 = ssub.s32 %s16, 1
        %s247 = smul.u32 128, %s21
        %p248 = scmp.lt.s32.totalorder %s247, 255
        %s249 = scalar_select %p248, %s247, 255
        %s250 = smul.addr %s249, 4
        %s251 = scalar_lea.vmem %s0, %s250
        %p252 = pneg %p42
        %p253 = pneg %p39
        %p254 = pneg %p63
        %p255 = pneg %p60
        %p256 = pneg %p84
        %p257 = pneg %p81
        %p258 = pneg %p105
        %p259 = pneg %p102
        %p260 = pneg %p126
        %p261 = pneg %p123
        %p262 = pneg %p147
        %p263 = pneg %p144
        %p264 = pneg %p168
        %p265 = pneg %p165
        %p266 = pneg %p194
        %p267 = pneg %p191
        %s268 = sand.u32 %s181, 1
        %s269 = scalar_lea.sflag [#allocation3], %s268
        %s270 = sand.u32 %s181, 1
        %s271 = smul.addr %s270, 1024
        %s272 = scalar_lea.vmem [#allocation2], %s271
        %s273 = smul.u32 128, %s21
        %p274 = scmp.lt.s32.totalorder %s273, 255
        %s275 = scalar_select %p274, %s273, 255
        %s276 = smul.addr %s275, 4
        %s277 = scalar_lea.vmem %s0, %s276
        %s278 = smul.u32 128, %s21
        %s279 = smul.u32 128, %s21
        %v281 = vld [vmem:[%s277] sm:$0xf]
        %v282 = vld [vmem:[%s277 + $0x4] sm:$0xf]
        %v283 = vld [vmem:[%s277 + $0x8] sm:$0xf]
        %v284 = vld [vmem:[%s277 + $0xc] sm:$0xf]
        %v285 = vld [vmem:[%s277 + $0x10] sm:$0xf]
        %v286 = vld [vmem:[%s277 + $0x14] sm:$0xf]
        %v287 = vld [vmem:[%s277 + $0x18] sm:$0xf]
        %v288 = vld [vmem:[%s277 + $0x1c] sm:$0xf]
        %v289 = vld [vmem:[%s277 + $0x20] sm:$0xf]
        %v290 = vld [vmem:[%s277 + $0x24] sm:$0xf]
        %v291 = vld [vmem:[%s277 + $0x28] sm:$0xf]
        %v292 = vld [vmem:[%s277 + $0x2c] sm:$0xf]
        %v293 = vld [vmem:[%s277 + $0x30] sm:$0xf]
        %v294 = vld [vmem:[%s277 + $0x34] sm:$0xf]
        %v295 = vld [vmem:[%s277 + $0x38] sm:$0xf]
        %v296 = vld [vmem:[%s277 + $0x3c] sm:$0xf]
        %v297 = vld [vmem:[%s277 + $0x40] sm:$0xf]
        %v298 = vld [vmem:[%s277 + $0x44] sm:$0xf]
        %v299 = vld [vmem:[%s277 + $0x48] sm:$0xf]
        %v300 = vld [vmem:[%s277 + $0x4c] sm:$0xf]
        %v301 = vld [vmem:[%s277 + $0x50] sm:$0xf]
        %v302 = vld [vmem:[%s277 + $0x54] sm:$0xf]
        %v303 = vld [vmem:[%s277 + $0x58] sm:$0xf]
        %v304 = vld [vmem:[%s277 + $0x5c] sm:$0xf]
        %v305 = vld [vmem:[%s277 + $0x60] sm:$0xf]
        %v306 = vld [vmem:[%s277 + $0x64] sm:$0xf]
        %v307 = vld [vmem:[%s277 + $0x68] sm:$0xf]
        %v308 = vld [vmem:[%s277 + $0x6c] sm:$0xf]
        %v309 = vld [vmem:[%s277 + $0x70] sm:$0xf]
        %v310 = vld [vmem:[%s277 + $0x74] sm:$0xf]
        %v311 = vld [vmem:[%s277 + $0x78] sm:$0xf]
        %v312 = vld [vmem:[%s277 + $0x7c] sm:$0xf]
        %v313 = vld [vmem:[%s277 + $0x80] sm:$0xf]
        %v314 = vld [vmem:[%s277 + $0x84] sm:$0xf]
        %v315 = vld [vmem:[%s277 + $0x88] sm:$0xf]
        %v316 = vld [vmem:[%s277 + $0x8c] sm:$0xf]
        %v317 = vld [vmem:[%s277 + $0x90] sm:$0xf]
        %v318 = vld [vmem:[%s277 + $0x94] sm:$0xf]
        %v319 = vld [vmem:[%s277 + $0x98] sm:$0xf]
        %v320 = vld [vmem:[%s277 + $0x9c] sm:$0xf]
        %v321 = vld [vmem:[%s277 + $0xa0] sm:$0xf]
        %v322 = vld [vmem:[%s277 + $0xa4] sm:$0xf]
        %v323 = vld [vmem:[%s277 + $0xa8] sm:$0xf]
        %v324 = vld [vmem:[%s277 + $0xac] sm:$0xf]
        %v325 = vld [vmem:[%s277 + $0xb0] sm:$0xf]
        %v326 = vld [vmem:[%s277 + $0xb4] sm:$0xf]
        %v327 = vld [vmem:[%s277 + $0xb8] sm:$0xf]
        %v328 = vld [vmem:[%s277 + $0xbc] sm:$0xf]
        %v329 = vld [vmem:[%s277 + $0xc0] sm:$0xf]
        %v330 = vld [vmem:[%s277 + $0xc4] sm:$0xf]
        %v331 = vld [vmem:[%s277 + $0xc8] sm:$0xf]
        %v332 = vld [vmem:[%s277 + $0xcc] sm:$0xf]
        %v333 = vld [vmem:[%s277 + $0xd0] sm:$0xf]
        %v334 = vld [vmem:[%s277 + $0xd4] sm:$0xf]
        %v335 = vld [vmem:[%s277 + $0xd8] sm:$0xf]
        %v336 = vld [vmem:[%s277 + $0xdc] sm:$0xf]
        %v337 = vld [vmem:[%s277 + $0xe0] sm:$0xf]
        %v338 = vld [vmem:[%s277 + $0xe4] sm:$0xf]
        %v339 = vld [vmem:[%s277 + $0xe8] sm:$0xf]
        %v340 = vld [vmem:[%s277 + $0xec] sm:$0xf]
        %v341 = vld [vmem:[%s277 + $0xf0] sm:$0xf]
        %v342 = vld [vmem:[%s277 + $0xf4] sm:$0xf]
        %v343 = vld [vmem:[%s277 + $0xf8] sm:$0xf]
        %v344 = vld [vmem:[%s277 + $0xfc] sm:$0xf]
        %v345 = vld [vmem:[%s277 + $0x100] sm:$0xf]
        %v346 = vld [vmem:[%s277 + $0x104] sm:$0xf]
        %v347 = vld [vmem:[%s277 + $0x108] sm:$0xf]
        %v348 = vld [vmem:[%s277 + $0x10c] sm:$0xf]
        %v349 = vld [vmem:[%s277 + $0x110] sm:$0xf]
        %v350 = vld [vmem:[%s277 + $0x114] sm:$0xf]
        %v351 = vld [vmem:[%s277 + $0x118] sm:$0xf]
        %v352 = vld [vmem:[%s277 + $0x11c] sm:$0xf]
        %v353 = vld [vmem:[%s277 + $0x120] sm:$0xf]
        %v354 = vld [vmem:[%s277 + $0x124] sm:$0xf]
        %v355 = vld [vmem:[%s277 + $0x128] sm:$0xf]
        %v356 = vld [vmem:[%s277 + $0x12c] sm:$0xf]
        %v357 = vld [vmem:[%s277 + $0x130] sm:$0xf]
        %v358 = vld [vmem:[%s277 + $0x134] sm:$0xf]
        %v359 = vld [vmem:[%s277 + $0x138] sm:$0xf]
        %v360 = vld [vmem:[%s277 + $0x13c] sm:$0xf]
        %v361 = vld [vmem:[%s277 + $0x140] sm:$0xf]
        %v362 = vld [vmem:[%s277 + $0x144] sm:$0xf]
        %v363 = vld [vmem:[%s277 + $0x148] sm:$0xf]
        %v364 = vld [vmem:[%s277 + $0x14c] sm:$0xf]
        %v365 = vld [vmem:[%s277 + $0x150] sm:$0xf]
        %v366 = vld [vmem:[%s277 + $0x154] sm:$0xf]
        %v367 = vld [vmem:[%s277 + $0x158] sm:$0xf]
        %v368 = vld [vmem:[%s277 + $0x15c] sm:$0xf]
        %v369 = vld [vmem:[%s277 + $0x160] sm:$0xf]
        %v370 = vld [vmem:[%s277 + $0x164] sm:$0xf]
        %v371 = vld [vmem:[%s277 + $0x168] sm:$0xf]
        %v372 = vld [vmem:[%s277 + $0x16c] sm:$0xf]
        %v373 = vld [vmem:[%s277 + $0x170] sm:$0xf]
        %v374 = vld [vmem:[%s277 + $0x174] sm:$0xf]
        %v375 = vld [vmem:[%s277 + $0x178] sm:$0xf]
        %v376 = vld [vmem:[%s277 + $0x17c] sm:$0xf]
        %v377 = vld [vmem:[%s277 + $0x180] sm:$0xf]
        %v378 = vld [vmem:[%s277 + $0x184] sm:$0xf]
        %v379 = vld [vmem:[%s277 + $0x188] sm:$0xf]
        %v380 = vld [vmem:[%s277 + $0x18c] sm:$0xf]
        %v381 = vld [vmem:[%s277 + $0x190] sm:$0xf]
        %v382 = vld [vmem:[%s277 + $0x194] sm:$0xf]
        %v383 = vld [vmem:[%s277 + $0x198] sm:$0xf]
        %v384 = vld [vmem:[%s277 + $0x19c] sm:$0xf]
        %v385 = vld [vmem:[%s277 + $0x1a0] sm:$0xf]
        %v386 = vld [vmem:[%s277 + $0x1a4] sm:$0xf]
        %v387 = vld [vmem:[%s277 + $0x1a8] sm:$0xf]
        %v388 = vld [vmem:[%s277 + $0x1ac] sm:$0xf]
        %v389 = vld [vmem:[%s277 + $0x1b0] sm:$0xf]
        %v390 = vld [vmem:[%s277 + $0x1b4] sm:$0xf]
        %v391 = vld [vmem:[%s277 + $0x1b8] sm:$0xf]
        %v392 = vld [vmem:[%s277 + $0x1bc] sm:$0xf]
        %v393 = vld [vmem:[%s277 + $0x1c0] sm:$0xf]
        %v394 = vld [vmem:[%s277 + $0x1c4] sm:$0xf]
        %v395 = vld [vmem:[%s277 + $0x1c8] sm:$0xf]
        %v396 = vld [vmem:[%s277 + $0x1cc] sm:$0xf]
        %v397 = vld [vmem:[%s277 + $0x1d0] sm:$0xf]
        %v398 = vld [vmem:[%s277 + $0x1d4] sm:$0xf]
        %v399 = vld [vmem:[%s277 + $0x1d8] sm:$0xf]
        %v400 = vld [vmem:[%s277 + $0x1dc] sm:$0xf]
        %v401 = vld [vmem:[%s277 + $0x1e0] sm:$0xf]
        %v402 = vld [vmem:[%s277 + $0x1e4] sm:$0xf]
        %v403 = vld [vmem:[%s277 + $0x1e8] sm:$0xf]
        %v404 = vld [vmem:[%s277 + $0x1ec] sm:$0xf]
        %v405 = vld [vmem:[%s277 + $0x1f0] sm:$0xf]
        %v406 = vld [vmem:[%s277 + $0x1f4] sm:$0xf]
        %v407 = vld [vmem:[%s277 + $0x1f8] sm:$0xf]
        %v408 = vld [vmem:[%s277 + $0x1fc] sm:$0xf]
        %v409 = vld [vmem:[%s1] sm:$0xf]
        %v410 = vld [vmem:[%s1 + $0x4] sm:$0xf]
        %v411 = vld [vmem:[%s1 + $0x8] sm:$0xf]
        %v412 = vld [vmem:[%s1 + $0xc] sm:$0xf]
        %v413 = vld [vmem:[%s2] sm:$0x1]
        %v415 = vlaneseq
        %v416 = vshrl.u32 %v415, 7
        %v417 = vsub.s32 0, %v416
        %v418 = vrot.slane %v413, %v417
        %v548 = vunpack.c.l.b16 %v281
        %v549 = vunpack.c.l.b16 %v282
        %v550 = vunpack.c.l.b16 %v283
        %v551 = vunpack.c.l.b16 %v284
        %v552 = vunpack.c.l.b16 %v285
        %v553 = vunpack.c.l.b16 %v286
        %v554 = vunpack.c.l.b16 %v287
        %v555 = vunpack.c.l.b16 %v288
        %v556 = vunpack.c.l.b16 %v289
        %v557 = vunpack.c.l.b16 %v290
        %v558 = vunpack.c.l.b16 %v291
        %v559 = vunpack.c.l.b16 %v292
        %v560 = vunpack.c.l.b16 %v293
        %v561 = vunpack.c.l.b16 %v294
        %v562 = vunpack.c.l.b16 %v295
        %v563 = vunpack.c.l.b16 %v296
        %v564 = vunpack.c.l.b16 %v297
        %v565 = vunpack.c.l.b16 %v298
        %v566 = vunpack.c.l.b16 %v299
        %v567 = vunpack.c.l.b16 %v300
        %v568 = vunpack.c.l.b16 %v301
        %v569 = vunpack.c.l.b16 %v302
        %v570 = vunpack.c.l.b16 %v303
        %v571 = vunpack.c.l.b16 %v304
        %v572 = vunpack.c.l.b16 %v305
        %v573 = vunpack.c.l.b16 %v306
        %v574 = vunpack.c.l.b16 %v307
        %v575 = vunpack.c.l.b16 %v308
        %v576 = vunpack.c.l.b16 %v309
        %v577 = vunpack.c.l.b16 %v310
        %v578 = vunpack.c.l.b16 %v311
        %v579 = vunpack.c.l.b16 %v312
        %v580 = vunpack.c.l.b16 %v313
        %v581 = vunpack.c.l.b16 %v314
        %v582 = vunpack.c.l.b16 %v315
        %v583 = vunpack.c.l.b16 %v316
        %v584 = vunpack.c.l.b16 %v317
        %v585 = vunpack.c.l.b16 %v318
        %v586 = vunpack.c.l.b16 %v319
        %v587 = vunpack.c.l.b16 %v320
        %v588 = vunpack.c.l.b16 %v321
        %v589 = vunpack.c.l.b16 %v322
        %v590 = vunpack.c.l.b16 %v323
        %v591 = vunpack.c.l.b16 %v324
        %v592 = vunpack.c.l.b16 %v325
        %v593 = vunpack.c.l.b16 %v326
        %v594 = vunpack.c.l.b16 %v327
        %v595 = vunpack.c.l.b16 %v328
        %v596 = vunpack.c.l.b16 %v329
        %v597 = vunpack.c.l.b16 %v330
        %v598 = vunpack.c.l.b16 %v331
        %v599 = vunpack.c.l.b16 %v332
        %v600 = vunpack.c.l.b16 %v333
        %v601 = vunpack.c.l.b16 %v334
        %v602 = vunpack.c.l.b16 %v335
        %v603 = vunpack.c.l.b16 %v336
        %v604 = vunpack.c.l.b16 %v337
        %v605 = vunpack.c.l.b16 %v338
        %v606 = vunpack.c.l.b16 %v339
        %v607 = vunpack.c.l.b16 %v340
        %v608 = vunpack.c.l.b16 %v341
        %v609 = vunpack.c.l.b16 %v342
        %v610 = vunpack.c.l.b16 %v343
        %v611 = vunpack.c.l.b16 %v344
        %v612 = vunpack.c.l.b16 %v345
        %v613 = vunpack.c.l.b16 %v346
        %v614 = vunpack.c.l.b16 %v347
        %v615 = vunpack.c.l.b16 %v348
        %v616 = vunpack.c.l.b16 %v349
        %v617 = vunpack.c.l.b16 %v350
        %v618 = vunpack.c.l.b16 %v351
        %v619 = vunpack.c.l.b16 %v352
        %v620 = vunpack.c.l.b16 %v353
        %v621 = vunpack.c.l.b16 %v354
        %v622 = vunpack.c.l.b16 %v355
        %v623 = vunpack.c.l.b16 %v356
        %v624 = vunpack.c.l.b16 %v357
        %v625 = vunpack.c.l.b16 %v358
        %v626 = vunpack.c.l.b16 %v359
        %v627 = vunpack.c.l.b16 %v360
        %v628 = vunpack.c.l.b16 %v361
        %v629 = vunpack.c.l.b16 %v362
        %v630 = vunpack.c.l.b16 %v363
        %v631 = vunpack.c.l.b16 %v364
        %v632 = vunpack.c.l.b16 %v365
        %v633 = vunpack.c.l.b16 %v366
        %v634 = vunpack.c.l.b16 %v367
        %v635 = vunpack.c.l.b16 %v368
        %v636 = vunpack.c.l.b16 %v369
        %v637 = vunpack.c.l.b16 %v370
        %v638 = vunpack.c.l.b16 %v371
        %v639 = vunpack.c.l.b16 %v372
        %v640 = vunpack.c.l.b16 %v373
        %v641 = vunpack.c.l.b16 %v374
        %v642 = vunpack.c.l.b16 %v375
        %v643 = vunpack.c.l.b16 %v376
        %v644 = vunpack.c.l.b16 %v377
        %v645 = vunpack.c.l.b16 %v378
        %v646 = vunpack.c.l.b16 %v379
        %v647 = vunpack.c.l.b16 %v380
        %v648 = vunpack.c.l.b16 %v381
        %v649 = vunpack.c.l.b16 %v382
        %v650 = vunpack.c.l.b16 %v383
        %v651 = vunpack.c.l.b16 %v384
        %v652 = vunpack.c.l.b16 %v385
        %v653 = vunpack.c.l.b16 %v386
        %v654 = vunpack.c.l.b16 %v387
        %v655 = vunpack.c.l.b16 %v388
        %v656 = vunpack.c.l.b16 %v389
        %v657 = vunpack.c.l.b16 %v390
        %v658 = vunpack.c.l.b16 %v391
        %v659 = vunpack.c.l.b16 %v392
        %v660 = vunpack.c.l.b16 %v393
        %v661 = vunpack.c.l.b16 %v394
        %v662 = vunpack.c.l.b16 %v395
        %v663 = vunpack.c.l.b16 %v396
        %v664 = vunpack.c.l.b16 %v397
        %v665 = vunpack.c.l.b16 %v398
        %v666 = vunpack.c.l.b16 %v399
        %v667 = vunpack.c.l.b16 %v400
        %v668 = vunpack.c.l.b16 %v401
        %v669 = vunpack.c.l.b16 %v402
        %v670 = vunpack.c.l.b16 %v403
        %v671 = vunpack.c.l.b16 %v404
        %v672 = vunpack.c.l.b16 %v405
        %v673 = vunpack.c.l.b16 %v406
        %v674 = vunpack.c.l.b16 %v407
        %v675 = vunpack.c.l.b16 %v408
        %v676 = vpack.c.b16 %v549, %v548
        %v677 = vpack.c.b16 %v551, %v550
        %v678 = vpack.c.b16 %v553, %v552
        %v679 = vpack.c.b16 %v555, %v554
        %v680 = vpack.c.b16 %v557, %v556
        %v681 = vpack.c.b16 %v559, %v558
        %v682 = vpack.c.b16 %v561, %v560
        %v683 = vpack.c.b16 %v563, %v562
        %v684 = vpack.c.b16 %v565, %v564
        %v685 = vpack.c.b16 %v567, %v566
        %v686 = vpack.c.b16 %v569, %v568
        %v687 = vpack.c.b16 %v571, %v570
        %v688 = vpack.c.b16 %v573, %v572
        %v689 = vpack.c.b16 %v575, %v574
        %v690 = vpack.c.b16 %v577, %v576
        %v691 = vpack.c.b16 %v579, %v578
        %v692 = vpack.c.b16 %v581, %v580
        %v693 = vpack.c.b16 %v583, %v582
        %v694 = vpack.c.b16 %v585, %v584
        %v695 = vpack.c.b16 %v587, %v586
        %v696 = vpack.c.b16 %v589, %v588
        %v697 = vpack.c.b16 %v591, %v590
        %v698 = vpack.c.b16 %v593, %v592
        %v699 = vpack.c.b16 %v595, %v594
        %v700 = vpack.c.b16 %v597, %v596
        %v701 = vpack.c.b16 %v599, %v598
        %v702 = vpack.c.b16 %v601, %v600
        %v703 = vpack.c.b16 %v603, %v602
        %v704 = vpack.c.b16 %v605, %v604
        %v705 = vpack.c.b16 %v607, %v606
        %v706 = vpack.c.b16 %v609, %v608
        %v707 = vpack.c.b16 %v611, %v610
        %v708 = vpack.c.b16 %v613, %v612
        %v709 = vpack.c.b16 %v615, %v614
        %v710 = vpack.c.b16 %v617, %v616
        %v711 = vpack.c.b16 %v619, %v618
        %v712 = vpack.c.b16 %v621, %v620
        %v713 = vpack.c.b16 %v623, %v622
        %v714 = vpack.c.b16 %v625, %v624
        %v715 = vpack.c.b16 %v627, %v626
        %v716 = vpack.c.b16 %v629, %v628
        %v717 = vpack.c.b16 %v631, %v630
        %v718 = vpack.c.b16 %v633, %v632
        %v719 = vpack.c.b16 %v635, %v634
        %v720 = vpack.c.b16 %v637, %v636
        %v721 = vpack.c.b16 %v639, %v638
        %v722 = vpack.c.b16 %v641, %v640
        %v723 = vpack.c.b16 %v643, %v642
        %v724 = vpack.c.b16 %v645, %v644
        %v725 = vpack.c.b16 %v647, %v646
        %v726 = vpack.c.b16 %v649, %v648
        %v727 = vpack.c.b16 %v651, %v650
        %v728 = vpack.c.b16 %v653, %v652
        %v729 = vpack.c.b16 %v655, %v654
        %v730 = vpack.c.b16 %v657, %v656
        %v731 = vpack.c.b16 %v659, %v658
        %v732 = vpack.c.b16 %v661, %v660
        %v733 = vpack.c.b16 %v663, %v662
        %v734 = vpack.c.b16 %v665, %v664
        %v735 = vpack.c.b16 %v667, %v666
        %v736 = vpack.c.b16 %v669, %v668
        %v737 = vpack.c.b16 %v671, %v670
        %v738 = vpack.c.b16 %v673, %v672
        %v739 = vpack.c.b16 %v675, %v674
        %v744 = vunpack.c.l.b16 %v409
        %v745 = vunpack.c.l.b16 %v410
        %v746 = vunpack.c.l.b16 %v411
        %v747 = vunpack.c.l.b16 %v412
        %v748 = vpack.c.b16 %v745, %v744
        %v749 = vpack.c.b16 %v747, %v746
        %vm752 = vcmask 261120
        %v754 = vsel %vm752, %v676, 0
        %v757 = vsel %vm752, %v677, 0
        %v760 = vsel %vm752, %v678, 0
        %v763 = vsel %vm752, %v679, 0
        %v766 = vsel %vm752, %v680, 0
        %v769 = vsel %vm752, %v681, 0
        %v772 = vsel %vm752, %v682, 0
        %v775 = vsel %vm752, %v683, 0
        %v778 = vsel %vm752, %v684, 0
        %v781 = vsel %vm752, %v685, 0
        %v784 = vsel %vm752, %v686, 0
        %v787 = vsel %vm752, %v687, 0
        %v790 = vsel %vm752, %v688, 0
        %v793 = vsel %vm752, %v689, 0
        %v796 = vsel %vm752, %v690, 0
        %v799 = vsel %vm752, %v691, 0
        %v802 = vsel %vm752, %v692, 0
        %v805 = vsel %vm752, %v693, 0
        %v808 = vsel %vm752, %v694, 0
        %v811 = vsel %vm752, %v695, 0
        %v814 = vsel %vm752, %v696, 0
        %v817 = vsel %vm752, %v697, 0
        %v820 = vsel %vm752, %v698, 0
        %v823 = vsel %vm752, %v699, 0
        %v826 = vsel %vm752, %v700, 0
        %v829 = vsel %vm752, %v701, 0
        %v832 = vsel %vm752, %v702, 0
        %v835 = vsel %vm752, %v703, 0
        %v838 = vsel %vm752, %v704, 0
        %v841 = vsel %vm752, %v705, 0
        %v844 = vsel %vm752, %v706, 0
        %v847 = vsel %vm752, %v707, 0
        %v850 = vsel %vm752, %v708, 0
        %v853 = vsel %vm752, %v709, 0
        %v856 = vsel %vm752, %v710, 0
        %v859 = vsel %vm752, %v711, 0
        %v862 = vsel %vm752, %v712, 0
        %v865 = vsel %vm752, %v713, 0
        %v868 = vsel %vm752, %v714, 0
        %v871 = vsel %vm752, %v715, 0
        %v874 = vsel %vm752, %v716, 0
        %v877 = vsel %vm752, %v717, 0
        %v880 = vsel %vm752, %v718, 0
        %v883 = vsel %vm752, %v719, 0
        %v886 = vsel %vm752, %v720, 0
        %v889 = vsel %vm752, %v721, 0
        %v892 = vsel %vm752, %v722, 0
        %v895 = vsel %vm752, %v723, 0
        %v898 = vsel %vm752, %v724, 0
        %v901 = vsel %vm752, %v725, 0
        %v904 = vsel %vm752, %v726, 0
        %v907 = vsel %vm752, %v727, 0
        %v910 = vsel %vm752, %v728, 0
        %v913 = vsel %vm752, %v729, 0
        %v916 = vsel %vm752, %v730, 0
        %v919 = vsel %vm752, %v731, 0
        %v922 = vsel %vm752, %v732, 0
        %v925 = vsel %vm752, %v733, 0
        %v928 = vsel %vm752, %v734, 0
        %v931 = vsel %vm752, %v735, 0
        %v934 = vsel %vm752, %v736, 0
        %v937 = vsel %vm752, %v737, 0
        %v940 = vsel %vm752, %v738, 0
        %v943 = vsel %vm752, %v739, 0
        %945 = vmatprep.subr.bf16.mxu0 0
        %946 = vmatpush1.bf16.msra.mxu0 %v748
        %947 = vmatprep.subr.bf16.mxu0 0
        %948 = vmatpush1.bf16.msra.mxu0 %v749
        %949 = vmatprep.subr.bf16.mxu0 0
        %950 = vmatpush1.bf16.msra.mxu0 0
        %951 = vmatprep.subr.bf16.mxu0 0
        %952 = vmatpush1.bf16.msra.mxu0 0
        %953 = vmatprep.subr.bf16.mxu0 0
        %954 = vmatpush1.bf16.msra.mxu0 0
        %955 = vmatprep.subr.bf16.mxu0 0
        %956 = vmatpush1.bf16.msra.mxu0 0
        %957 = vmatprep.subr.bf16.mxu0 0
        %958 = vmatpush1.bf16.msra.mxu0 0
        %959 = vmatprep.subr.bf16.mxu0 0
        %960 = vmatpush1.bf16.msra.mxu0 0
        %961 = vmatprep.subr.bf16.mxu0 0
        %962 = vmatpush1.bf16.msra.mxu0 0
        %963 = vmatprep.subr.bf16.mxu0 0
        %964 = vmatpush1.bf16.msra.mxu0 0
        %965 = vmatprep.subr.bf16.mxu0 0
        %966 = vmatpush1.bf16.msra.mxu0 0
        %967 = vmatprep.subr.bf16.mxu0 0
        %968 = vmatpush1.bf16.msra.mxu0 0
        %969 = vmatprep.subr.bf16.mxu0 0
        %970 = vmatpush1.bf16.msra.mxu0 0
        %971 = vmatprep.subr.bf16.mxu0 0
        %972 = vmatpush1.bf16.msra.mxu0 0
        %973 = vmatprep.subr.bf16.mxu0 0
        %974 = vmatpush1.bf16.msra.mxu0 0
        %975 = vmatprep.subr.bf16.mxu0 0
        %976 = vmatpush1.bf16.msra.mxu0 0
        %977 = vmatprep.mubr.bf16.mxu0 0
        %978 = vmatmul.mubr.bf16.gmra.mrb[0].mxu0 %v754
        %v979 = vpop.f32.mrb[0].mxu0
        %v980 = vadd.f32 %v418, %v979
        %v981 = vpop.f32.mrb[0].mxu0
        %v982 = vpop.f32.mrb[0].mxu0
        %v983 = vadd.f32 %v418, %v982
        %v984 = vpop.f32.mrb[0].mxu0
        %985 = vmatprep.mubr.bf16.mxu0 0
        %986 = vmatmul.mubr.bf16.gmra.mrb[0].mxu0 %v757
        %v987 = vpop.f32.mrb[0].mxu0
        %v988 = vadd.f32 %v418, %v987
        %v989 = vpop.f32.mrb[0].mxu0
        %v990 = vpop.f32.mrb[0].mxu0
        %v991 = vadd.f32 %v418, %v990
        %v992 = vpop.f32.mrb[0].mxu0
        %993 = vmatprep.mubr.bf16.mxu0 0
        %994 = vmatmul.mubr.bf16.gmra.mrb[0].mxu0 %v760
        %v995 = vpop.f32.mrb[0].mxu0
        %v996 = vadd.f32 %v418, %v995
        %v997 = vpop.f32.mrb[0].mxu0
        %v998 = vpop.f32.mrb[0].mxu0
        %v999 = vadd.f32 %v418, %v998
        %v1000 = vpop.f32.mrb[0].mxu0
        %1001 = vmatprep.mubr.bf16.mxu0 0
        %1002 = vmatmul.mubr.bf16.gmra.mrb[0].mxu0 %v763
        %v1003 = vpop.f32.mrb[0].mxu0
        %v1004 = vadd.f32 %v418, %v1003
        %v1005 = vpop.f32.mrb[0].mxu0
        %v1006 = vpop.f32.mrb[0].mxu0
        %v1007 = vadd.f32 %v418, %v1006
        %v1008 = vpop.f32.mrb[0].mxu0
        %1009 = vmatprep.mubr.bf16.mxu0 0
        %1010 = vmatmul.mubr.bf16.gmra.mrb[0].mxu0 %v766
        %v1011 = vpop.f32.mrb[0].mxu0
        %v1012 = vadd.f32 %v418, %v1011
        %v1013 = vpop.f32.mrb[0].mxu0
        %v1014 = vpop.f32.mrb[0].mxu0
        %v1015 = vadd.f32 %v418, %v1014
        %v1016 = vpop.f32.mrb[0].mxu0
        %1017 = vmatprep.mubr.bf16.mxu0 0
        %1018 = vmatmul.mubr.bf16.gmra.mrb[0].mxu0 %v769
        %v1019 = vpop.f32.mrb[0].mxu0
        %v1020 = vadd.f32 %v418, %v1019
        %v1021 = vpop.f32.mrb[0].mxu0
        %v1022 = vpop.f32.mrb[0].mxu0
        %v1023 = vadd.f32 %v418, %v1022
        %v1024 = vpop.f32.mrb[0].mxu0
        %1025 = vmatprep.mubr.bf16.mxu0 0
        %1026 = vmatmul.mubr.bf16.gmra.mrb[0].mxu0 %v772
        %v1027 = vpop.f32.mrb[0].mxu0
        %v1028 = vadd.f32 %v418, %v1027
        %v1029 = vpop.f32.mrb[0].mxu0
        %v1030 = vpop.f32.mrb[0].mxu0
        %v1031 = vadd.f32 %v418, %v1030
        %v1032 = vpop.f32.mrb[0].mxu0
        %1033 = vmatprep.mubr.bf16.mxu0 0
        %1034 = vmatmul.mubr.bf16.gmra.mrb[0].mxu0 %v775
        %v1035 = vpop.f32.mrb[0].mxu0
        %v1036 = vadd.f32 %v418, %v1035
        %v1037 = vpop.f32.mrb[0].mxu0
        %v1038 = vpop.f32.mrb[0].mxu0
        %v1039 = vadd.f32 %v418, %v1038
        %v1040 = vpop.f32.mrb[0].mxu0
        %1041 = vmatprep.mubr.bf16.mxu0 0
        %1042 = vmatmul.mubr.bf16.gmra.mrb[0].mxu0 %v778
        %v1043 = vpop.f32.mrb[0].mxu0
        %v1044 = vadd.f32 %v418, %v1043
        %v1045 = vpop.f32.mrb[0].mxu0
        %v1046 = vpop.f32.mrb[0].mxu0
        %v1047 = vadd.f32 %v418, %v1046
        %v1048 = vpop.f32.mrb[0].mxu0
        %1049 = vmatprep.mubr.bf16.mxu0 0
        %1050 = vmatmul.mubr.bf16.gmra.mrb[0].mxu0 %v781
        %v1051 = vpop.f32.mrb[0].mxu0
        %v1052 = vadd.f32 %v418, %v1051
        %v1053 = vpop.f32.mrb[0].mxu0
        %v1054 = vpop.f32.mrb[0].mxu0
        %v1055 = vadd.f32 %v418, %v1054
        %v1056 = vpop.f32.mrb[0].mxu0
        %1057 = vmatprep.mubr.bf16.mxu0 0
        %1058 = vmatmul.mubr.bf16.gmra.mrb[0].mxu0 %v784
        %v1059 = vpop.f32.mrb[0].mxu0
        %v1060 = vadd.f32 %v418, %v1059
        %v1061 = vpop.f32.mrb[0].mxu0
        %v1062 = vpop.f32.mrb[0].mxu0
        %v1063 = vadd.f32 %v418, %v1062
        %v1064 = vpop.f32.mrb[0].mxu0
        %1065 = vmatprep.mubr.bf16.mxu0 0
        %1066 = vmatmul.mubr.bf16.gmra.mrb[0].mxu0 %v787
        %v1067 = vpop.f32.mrb[0].mxu0
        %v1068 = vadd.f32 %v418, %v1067
        %v1069 = vpop.f32.mrb[0].mxu0
        %v1070 = vpop.f32.mrb[0].mxu0
        %v1071 = vadd.f32 %v418, %v1070
        %v1072 = vpop.f32.mrb[0].mxu0
        %1073 = vmatprep.mubr.bf16.mxu0 0
        %1074 = vmatmul.mubr.bf16.gmra.mrb[0].mxu0 %v790
        %v1075 = vpop.f32.mrb[0].mxu0
        %v1076 = vadd.f32 %v418, %v1075
        %v1077 = vpop.f32.mrb[0].mxu0
        %v1078 = vpop.f32.mrb[0].mxu0
        %v1079 = vadd.f32 %v418, %v1078
        %v1080 = vpop.f32.mrb[0].mxu0
        %1081 = vmatprep.mubr.bf16.mxu0 0
        %1082 = vmatmul.mubr.bf16.gmra.mrb[0].mxu0 %v793
        %v1083 = vpop.f32.mrb[0].mxu0
        %v1084 = vadd.f32 %v418, %v1083
        %v1085 = vpop.f32.mrb[0].mxu0
        %v1086 = vpop.f32.mrb[0].mxu0
        %v1087 = vadd.f32 %v418, %v1086
        %v1088 = vpop.f32.mrb[0].mxu0
        %1089 = vmatprep.mubr.bf16.mxu0 0
        %1090 = vmatmul.mubr.bf16.gmra.mrb[0].mxu0 %v796
        %v1091 = vpop.f32.mrb[0].mxu0
        %v1092 = vadd.f32 %v418, %v1091
        %v1093 = vpop.f32.mrb[0].mxu0
        %v1094 = vpop.f32.mrb[0].mxu0
        %v1095 = vadd.f32 %v418, %v1094
        %v1096 = vpop.f32.mrb[0].mxu0
        %1097 = vmatprep.mubr.bf16.mxu0 0
        %1098 = vmatmul.mubr.bf16.gmra.mrb[0].mxu0 %v799
        %v1099 = vpop.f32.mrb[0].mxu0
        %v1100 = vadd.f32 %v418, %v1099
        %v1101 = vpop.f32.mrb[0].mxu0
        %v1102 = vpop.f32.mrb[0].mxu0
        %v1103 = vadd.f32 %v418, %v1102
        %v1104 = vpop.f32.mrb[0].mxu0
        %1105 = vmatprep.mubr.bf16.mxu0 0
        %1106 = vmatmul.mubr.bf16.gmra.mrb[0].mxu0 %v802
        %v1107 = vpop.f32.mrb[0].mxu0
        %v1108 = vadd.f32 %v418, %v1107
        %v1109 = vpop.f32.mrb[0].mxu0
        %v1110 = vpop.f32.mrb[0].mxu0
        %v1111 = vadd.f32 %v418, %v1110
        %v1112 = vpop.f32.mrb[0].mxu0
        %1113 = vmatprep.mubr.bf16.mxu0 0
        %1114 = vmatmul.mubr.bf16.gmra.mrb[0].mxu0 %v805
        %v1115 = vpop.f32.mrb[0].mxu0
        %v1116 = vadd.f32 %v418, %v1115
        %v1117 = vpop.f32.mrb[0].mxu0
        %v1118 = vpop.f32.mrb[0].mxu0
        %v1119 = vadd.f32 %v418, %v1118
        %v1120 = vpop.f32.mrb[0].mxu0
        %1121 = vmatprep.mubr.bf16.mxu0 0
        %1122 = vmatmul.mubr.bf16.gmra.mrb[0].mxu0 %v808
        %v1123 = vpop.f32.mrb[0].mxu0
        %v1124 = vadd.f32 %v418, %v1123
        %v1125 = vpop.f32.mrb[0].mxu0
        %v1126 = vpop.f32.mrb[0].mxu0
        %v1127 = vadd.f32 %v418, %v1126
        %v1128 = vpop.f32.mrb[0].mxu0
        %1129 = vmatprep.mubr.bf16.mxu0 0
        %1130 = vmatmul.mubr.bf16.gmra.mrb[0].mxu0 %v811
        %v1131 = vpop.f32.mrb[0].mxu0
        %v1132 = vadd.f32 %v418, %v1131
        %v1133 = vpop.f32.mrb[0].mxu0
        %v1134 = vpop.f32.mrb[0].mxu0
        %v1135 = vadd.f32 %v418, %v1134
        %v1136 = vpop.f32.mrb[0].mxu0
        %1137 = vmatprep.mubr.bf16.mxu0 0
        %1138 = vmatmul.mubr.bf16.gmra.mrb[0].mxu0 %v814
        %v1139 = vpop.f32.mrb[0].mxu0
        %v1140 = vadd.f32 %v418, %v1139
        %v1141 = vpop.f32.mrb[0].mxu0
        %v1142 = vpop.f32.mrb[0].mxu0
        %v1143 = vadd.f32 %v418, %v1142
        %v1144 = vpop.f32.mrb[0].mxu0
        %1145 = vmatprep.mubr.bf16.mxu0 0
        %1146 = vmatmul.mubr.bf16.gmra.mrb[0].mxu0 %v817
        %v1147 = vpop.f32.mrb[0].mxu0
        %v1148 = vadd.f32 %v418, %v1147
        %v1149 = vpop.f32.mrb[0].mxu0
        %v1150 = vpop.f32.mrb[0].mxu0
        %v1151 = vadd.f32 %v418, %v1150
        %v1152 = vpop.f32.mrb[0].mxu0
        %1153 = vmatprep.mubr.bf16.mxu0 0
        %1154 = vmatmul.mubr.bf16.gmra.mrb[0].mxu0 %v820
        %v1155 = vpop.f32.mrb[0].mxu0
        %v1156 = vadd.f32 %v418, %v1155
        %v1157 = vpop.f32.mrb[0].mxu0
        %v1158 = vpop.f32.mrb[0].mxu0
        %v1159 = vadd.f32 %v418, %v1158
        %v1160 = vpop.f32.mrb[0].mxu0
        %1161 = vmatprep.mubr.bf16.mxu0 0
        %1162 = vmatmul.mubr.bf16.gmra.mrb[0].mxu0 %v823
        %v1163 = vpop.f32.mrb[0].mxu0
        %v1164 = vadd.f32 %v418, %v1163
        %v1165 = vpop.f32.mrb[0].mxu0
        %v1166 = vpop.f32.mrb[0].mxu0
        %v1167 = vadd.f32 %v418, %v1166
        %v1168 = vpop.f32.mrb[0].mxu0
        %1169 = vmatprep.mubr.bf16.mxu0 0
        %1170 = vmatmul.mubr.bf16.gmra.mrb[0].mxu0 %v826
        %v1171 = vpop.f32.mrb[0].mxu0
        %v1172 = vadd.f32 %v418, %v1171
        %v1173 = vpop.f32.mrb[0].mxu0
        %v1174 = vpop.f32.mrb[0].mxu0
        %v1175 = vadd.f32 %v418, %v1174
        %v1176 = vpop.f32.mrb[0].mxu0
        %1177 = vmatprep.mubr.bf16.mxu0 0
        %1178 = vmatmul.mubr.bf16.gmra.mrb[0].mxu0 %v829
        %v1179 = vpop.f32.mrb[0].mxu0
        %v1180 = vadd.f32 %v418, %v1179
        %v1181 = vpop.f32.mrb[0].mxu0
        %v1182 = vpop.f32.mrb[0].mxu0
        %v1183 = vadd.f32 %v418, %v1182
        %v1184 = vpop.f32.mrb[0].mxu0
        %1185 = vmatprep.mubr.bf16.mxu0 0
        %1186 = vmatmul.mubr.bf16.gmra.mrb[0].mxu0 %v832
        %v1187 = vpop.f32.mrb[0].mxu0
        %v1188 = vadd.f32 %v418, %v1187
        %v1189 = vpop.f32.mrb[0].mxu0
        %v1190 = vpop.f32.mrb[0].mxu0
        %v1191 = vadd.f32 %v418, %v1190
        %v1192 = vpop.f32.mrb[0].mxu0
        %1193 = vmatprep.mubr.bf16.mxu0 0
        %1194 = vmatmul.mubr.bf16.gmra.mrb[0].mxu0 %v835
        %v1195 = vpop.f32.mrb[0].mxu0
        %v1196 = vadd.f32 %v418, %v1195
        %v1197 = vpop.f32.mrb[0].mxu0
        %v1198 = vpop.f32.mrb[0].mxu0
        %v1199 = vadd.f32 %v418, %v1198
        %v1200 = vpop.f32.mrb[0].mxu0
        %1201 = vmatprep.mubr.bf16.mxu0 0
        %1202 = vmatmul.mubr.bf16.gmra.mrb[0].mxu0 %v838
        %v1203 = vpop.f32.mrb[0].mxu0
        %v1204 = vadd.f32 %v418, %v1203
        %v1205 = vpop.f32.mrb[0].mxu0
        %v1206 = vpop.f32.mrb[0].mxu0
        %v1207 = vadd.f32 %v418, %v1206
        %v1208 = vpop.f32.mrb[0].mxu0
        %1209 = vmatprep.mubr.bf16.mxu0 0
        %1210 = vmatmul.mubr.bf16.gmra.mrb[0].mxu0 %v841
        %v1211 = vpop.f32.mrb[0].mxu0
        %v1212 = vadd.f32 %v418, %v1211
        %v1213 = vpop.f32.mrb[0].mxu0
        %v1214 = vpop.f32.mrb[0].mxu0
        %v1215 = vadd.f32 %v418, %v1214
        %v1216 = vpop.f32.mrb[0].mxu0
        %1217 = vmatprep.mubr.bf16.mxu0 0
        %1218 = vmatmul.mubr.bf16.gmra.mrb[0].mxu0 %v844
        %v1219 = vpop.f32.mrb[0].mxu0
        %v1220 = vadd.f32 %v418, %v1219
        %v1221 = vpop.f32.mrb[0].mxu0
        %v1222 = vpop.f32.mrb[0].mxu0
        %v1223 = vadd.f32 %v418, %v1222
        %v1224 = vpop.f32.mrb[0].mxu0
        %1225 = vmatprep.mubr.bf16.mxu0 0
        %1226 = vmatmul.mubr.bf16.gmra.mrb[0].mxu0 %v847
        %v1227 = vpop.f32.mrb[0].mxu0
        %v1228 = vadd.f32 %v418, %v1227
        %v1229 = vpop.f32.mrb[0].mxu0
        %v1230 = vpop.f32.mrb[0].mxu0
        %v1231 = vadd.f32 %v418, %v1230
        %v1232 = vpop.f32.mrb[0].mxu0
        %1233 = vmatprep.mubr.bf16.mxu0 0
        %1234 = vmatmul.mubr.bf16.gmra.mrb[0].mxu0 %v850
        %v1235 = vpop.f32.mrb[0].mxu0
        %v1236 = vadd.f32 %v418, %v1235
        %v1237 = vpop.f32.mrb[0].mxu0
        %v1238 = vpop.f32.mrb[0].mxu0
        %v1239 = vadd.f32 %v418, %v1238
        %v1240 = vpop.f32.mrb[0].mxu0
        %1241 = vmatprep.mubr.bf16.mxu0 0
        %1242 = vmatmul.mubr.bf16.gmra.mrb[0].mxu0 %v853
        %v1243 = vpop.f32.mrb[0].mxu0
        %v1244 = vadd.f32 %v418, %v1243
        %v1245 = vpop.f32.mrb[0].mxu0
        %v1246 = vpop.f32.mrb[0].mxu0
        %v1247 = vadd.f32 %v418, %v1246
        %v1248 = vpop.f32.mrb[0].mxu0
        %1249 = vmatprep.mubr.bf16.mxu0 0
        %1250 = vmatmul.mubr.bf16.gmra.mrb[0].mxu0 %v856
        %v1251 = vpop.f32.mrb[0].mxu0
        %v1252 = vadd.f32 %v418, %v1251
        %v1253 = vpop.f32.mrb[0].mxu0
        %v1254 = vpop.f32.mrb[0].mxu0
        %v1255 = vadd.f32 %v418, %v1254
        %v1256 = vpop.f32.mrb[0].mxu0
        %1257 = vmatprep.mubr.bf16.mxu0 0
        %1258 = vmatmul.mubr.bf16.gmra.mrb[0].mxu0 %v859
        %v1259 = vpop.f32.mrb[0].mxu0
        %v1260 = vadd.f32 %v418, %v1259
        %v1261 = vpop.f32.mrb[0].mxu0
        %v1262 = vpop.f32.mrb[0].mxu0
        %v1263 = vadd.f32 %v418, %v1262
        %v1264 = vpop.f32.mrb[0].mxu0
        %1265 = vmatprep.mubr.bf16.mxu0 0
        %1266 = vmatmul.mubr.bf16.gmra.mrb[0].mxu0 %v862
        %v1267 = vpop.f32.mrb[0].mxu0
        %v1268 = vadd.f32 %v418, %v1267
        %v1269 = vpop.f32.mrb[0].mxu0
        %v1270 = vpop.f32.mrb[0].mxu0
        %v1271 = vadd.f32 %v418, %v1270
        %v1272 = vpop.f32.mrb[0].mxu0
        %1273 = vmatprep.mubr.bf16.mxu0 0
        %1274 = vmatmul.mubr.bf16.gmra.mrb[0].mxu0 %v865
        %v1275 = vpop.f32.mrb[0].mxu0
        %v1276 = vadd.f32 %v418, %v1275
        %v1277 = vpop.f32.mrb[0].mxu0
        %v1278 = vpop.f32.mrb[0].mxu0
        %v1279 = vadd.f32 %v418, %v1278
        %v1280 = vpop.f32.mrb[0].mxu0
        %1281 = vmatprep.mubr.bf16.mxu0 0
        %1282 = vmatmul.mubr.bf16.gmra.mrb[0].mxu0 %v868
        %v1283 = vpop.f32.mrb[0].mxu0
        %v1284 = vadd.f32 %v418, %v1283
        %v1285 = vpop.f32.mrb[0].mxu0
        %v1286 = vpop.f32.mrb[0].mxu0
        %v1287 = vadd.f32 %v418, %v1286
        %v1288 = vpop.f32.mrb[0].mxu0
        %1289 = vmatprep.mubr.bf16.mxu0 0
        %1290 = vmatmul.mubr.bf16.gmra.mrb[0].mxu0 %v871
        %v1291 = vpop.f32.mrb[0].mxu0
        %v1292 = vadd.f32 %v418, %v1291
        %v1293 = vpop.f32.mrb[0].mxu0
        %v1294 = vpop.f32.mrb[0].mxu0
        %v1295 = vadd.f32 %v418, %v1294
        %v1296 = vpop.f32.mrb[0].mxu0
        %1297 = vmatprep.mubr.bf16.mxu0 0
        %1298 = vmatmul.mubr.bf16.gmra.mrb[0].mxu0 %v874
        %v1299 = vpop.f32.mrb[0].mxu0
        %v1300 = vadd.f32 %v418, %v1299
        %v1301 = vpop.f32.mrb[0].mxu0
        %v1302 = vpop.f32.mrb[0].mxu0
        %v1303 = vadd.f32 %v418, %v1302
        %v1304 = vpop.f32.mrb[0].mxu0
        %1305 = vmatprep.mubr.bf16.mxu0 0
        %1306 = vmatmul.mubr.bf16.gmra.mrb[0].mxu0 %v877
        %v1307 = vpop.f32.mrb[0].mxu0
        %v1308 = vadd.f32 %v418, %v1307
        %v1309 = vpop.f32.mrb[0].mxu0
        %v1310 = vpop.f32.mrb[0].mxu0
        %v1311 = vadd.f32 %v418, %v1310
        %v1312 = vpop.f32.mrb[0].mxu0
        %1313 = vmatprep.mubr.bf16.mxu0 0
        %1314 = vmatmul.mubr.bf16.gmra.mrb[0].mxu0 %v880
        %v1315 = vpop.f32.mrb[0].mxu0
        %v1316 = vadd.f32 %v418, %v1315
        %v1317 = vpop.f32.mrb[0].mxu0
        %v1318 = vpop.f32.mrb[0].mxu0
        %v1319 = vadd.f32 %v418, %v1318
        %v1320 = vpop.f32.mrb[0].mxu0
        %1321 = vmatprep.mubr.bf16.mxu0 0
        %1322 = vmatmul.mubr.bf16.gmra.mrb[0].mxu0 %v883
        %v1323 = vpop.f32.mrb[0].mxu0
        %v1324 = vadd.f32 %v418, %v1323
        %v1325 = vpop.f32.mrb[0].mxu0
        %v1326 = vpop.f32.mrb[0].mxu0
        %v1327 = vadd.f32 %v418, %v1326
        %v1328 = vpop.f32.mrb[0].mxu0
        %1329 = vmatprep.mubr.bf16.mxu0 0
        %1330 = vmatmul.mubr.bf16.gmra.mrb[0].mxu0 %v886
        %v1331 = vpop.f32.mrb[0].mxu0
        %v1332 = vadd.f32 %v418, %v1331
        %v1333 = vpop.f32.mrb[0].mxu0
        %v1334 = vpop.f32.mrb[0].mxu0
        %v1335 = vadd.f32 %v418, %v1334
        %v1336 = vpop.f32.mrb[0].mxu0
        %1337 = vmatprep.mubr.bf16.mxu0 0
        %1338 = vmatmul.mubr.bf16.gmra.mrb[0].mxu0 %v889
        %v1339 = vpop.f32.mrb[0].mxu0
        %v1340 = vadd.f32 %v418, %v1339
        %v1341 = vpop.f32.mrb[0].mxu0
        %v1342 = vpop.f32.mrb[0].mxu0
        %v1343 = vadd.f32 %v418, %v1342
        %v1344 = vpop.f32.mrb[0].mxu0
        %1345 = vmatprep.mubr.bf16.mxu0 0
        %1346 = vmatmul.mubr.bf16.gmra.mrb[0].mxu0 %v892
        %v1347 = vpop.f32.mrb[0].mxu0
        %v1348 = vadd.f32 %v418, %v1347
        %v1349 = vpop.f32.mrb[0].mxu0
        %v1350 = vpop.f32.mrb[0].mxu0
        %v1351 = vadd.f32 %v418, %v1350
        %v1352 = vpop.f32.mrb[0].mxu0
        %1353 = vmatprep.mubr.bf16.mxu0 0
        %1354 = vmatmul.mubr.bf16.gmra.mrb[0].mxu0 %v895
        %v1355 = vpop.f32.mrb[0].mxu0
        %v1356 = vadd.f32 %v418, %v1355
        %v1357 = vpop.f32.mrb[0].mxu0
        %v1358 = vpop.f32.mrb[0].mxu0
        %v1359 = vadd.f32 %v418, %v1358
        %v1360 = vpop.f32.mrb[0].mxu0
        %1361 = vmatprep.mubr.bf16.mxu0 0
        %1362 = vmatmul.mubr.bf16.gmra.mrb[0].mxu0 %v898
        %v1363 = vpop.f32.mrb[0].mxu0
        %v1364 = vadd.f32 %v418, %v1363
        %v1365 = vpop.f32.mrb[0].mxu0
        %v1366 = vpop.f32.mrb[0].mxu0
        %v1367 = vadd.f32 %v418, %v1366
        %v1368 = vpop.f32.mrb[0].mxu0
        %1369 = vmatprep.mubr.bf16.mxu0 0
        %1370 = vmatmul.mubr.bf16.gmra.mrb[0].mxu0 %v901
        %v1371 = vpop.f32.mrb[0].mxu0
        %v1372 = vadd.f32 %v418, %v1371
        %v1373 = vpop.f32.mrb[0].mxu0
        %v1374 = vpop.f32.mrb[0].mxu0
        %v1375 = vadd.f32 %v418, %v1374
        %v1376 = vpop.f32.mrb[0].mxu0
        %1377 = vmatprep.mubr.bf16.mxu0 0
        %1378 = vmatmul.mubr.bf16.gmra.mrb[0].mxu0 %v904
        %v1379 = vpop.f32.mrb[0].mxu0
        %v1380 = vadd.f32 %v418, %v1379
        %v1381 = vpop.f32.mrb[0].mxu0
        %v1382 = vpop.f32.mrb[0].mxu0
        %v1383 = vadd.f32 %v418, %v1382
        %v1384 = vpop.f32.mrb[0].mxu0
        %1385 = vmatprep.mubr.bf16.mxu0 0
        %1386 = vmatmul.mubr.bf16.gmra.mrb[0].mxu0 %v907
        %v1387 = vpop.f32.mrb[0].mxu0
        %v1388 = vadd.f32 %v418, %v1387
        %v1389 = vpop.f32.mrb[0].mxu0
        %v1390 = vpop.f32.mrb[0].mxu0
        %v1391 = vadd.f32 %v418, %v1390
        %v1392 = vpop.f32.mrb[0].mxu0
        %1393 = vmatprep.mubr.bf16.mxu0 0
        %1394 = vmatmul.mubr.bf16.gmra.mrb[0].mxu0 %v910
        %v1395 = vpop.f32.mrb[0].mxu0
        %v1396 = vadd.f32 %v418, %v1395
        %v1397 = vpop.f32.mrb[0].mxu0
        %v1398 = vpop.f32.mrb[0].mxu0
        %v1399 = vadd.f32 %v418, %v1398
        %v1400 = vpop.f32.mrb[0].mxu0
        %1401 = vmatprep.mubr.bf16.mxu0 0
        %1402 = vmatmul.mubr.bf16.gmra.mrb[0].mxu0 %v913
        %v1403 = vpop.f32.mrb[0].mxu0
        %v1404 = vadd.f32 %v418, %v1403
        %v1405 = vpop.f32.mrb[0].mxu0
        %v1406 = vpop.f32.mrb[0].mxu0
        %v1407 = vadd.f32 %v418, %v1406
        %v1408 = vpop.f32.mrb[0].mxu0
        %1409 = vmatprep.mubr.bf16.mxu0 0
        %1410 = vmatmul.mubr.bf16.gmra.mrb[0].mxu0 %v916
        %v1411 = vpop.f32.mrb[0].mxu0
        %v1412 = vadd.f32 %v418, %v1411
        %v1413 = vpop.f32.mrb[0].mxu0
        %v1414 = vpop.f32.mrb[0].mxu0
        %v1415 = vadd.f32 %v418, %v1414
        %v1416 = vpop.f32.mrb[0].mxu0
        %1417 = vmatprep.mubr.bf16.mxu0 0
        %1418 = vmatmul.mubr.bf16.gmra.mrb[0].mxu0 %v919
        %v1419 = vpop.f32.mrb[0].mxu0
        %v1420 = vadd.f32 %v418, %v1419
        %v1421 = vpop.f32.mrb[0].mxu0
        %v1422 = vpop.f32.mrb[0].mxu0
        %v1423 = vadd.f32 %v418, %v1422
        %v1424 = vpop.f32.mrb[0].mxu0
        %1425 = vmatprep.mubr.bf16.mxu0 0
        %1426 = vmatmul.mubr.bf16.gmra.mrb[0].mxu0 %v922
        %v1427 = vpop.f32.mrb[0].mxu0
        %v1428 = vadd.f32 %v418, %v1427
        %v1429 = vpop.f32.mrb[0].mxu0
        %v1430 = vpop.f32.mrb[0].mxu0
        %v1431 = vadd.f32 %v418, %v1430
        %v1432 = vpop.f32.mrb[0].mxu0
        %1433 = vmatprep.mubr.bf16.mxu0 0
        %1434 = vmatmul.mubr.bf16.gmra.mrb[0].mxu0 %v925
        %v1435 = vpop.f32.mrb[0].mxu0
        %v1436 = vadd.f32 %v418, %v1435
        %v1437 = vpop.f32.mrb[0].mxu0
        %v1438 = vpop.f32.mrb[0].mxu0
        %v1439 = vadd.f32 %v418, %v1438
        %v1440 = vpop.f32.mrb[0].mxu0
        %1441 = vmatprep.mubr.bf16.mxu0 0
        %1442 = vmatmul.mubr.bf16.gmra.mrb[0].mxu0 %v928
        %v1443 = vpop.f32.mrb[0].mxu0
        %v1444 = vadd.f32 %v418, %v1443
        %v1445 = vpop.f32.mrb[0].mxu0
        %v1446 = vpop.f32.mrb[0].mxu0
        %v1447 = vadd.f32 %v418, %v1446
        %v1448 = vpop.f32.mrb[0].mxu0
        %1449 = vmatprep.mubr.bf16.mxu0 0
        %1450 = vmatmul.mubr.bf16.gmra.mrb[0].mxu0 %v931
        %v1451 = vpop.f32.mrb[0].mxu0
        %v1452 = vadd.f32 %v418, %v1451
        %v1453 = vpop.f32.mrb[0].mxu0
        %v1454 = vpop.f32.mrb[0].mxu0
        %v1455 = vadd.f32 %v418, %v1454
        %v1456 = vpop.f32.mrb[0].mxu0
        %1457 = vmatprep.mubr.bf16.mxu0 0
        %1458 = vmatmul.mubr.bf16.gmra.mrb[0].mxu0 %v934
        %v1459 = vpop.f32.mrb[0].mxu0
        %v1460 = vadd.f32 %v418, %v1459
        %v1461 = vpop.f32.mrb[0].mxu0
        %v1462 = vpop.f32.mrb[0].mxu0
        %v1463 = vadd.f32 %v418, %v1462
        %v1464 = vpop.f32.mrb[0].mxu0
        %1465 = vmatprep.mubr.bf16.mxu0 0
        %1466 = vmatmul.mubr.bf16.gmra.mrb[0].mxu0 %v937
        %v1467 = vpop.f32.mrb[0].mxu0
        %v1468 = vadd.f32 %v418, %v1467
        %v1469 = vpop.f32.mrb[0].mxu0
        %v1470 = vpop.f32.mrb[0].mxu0
        %v1471 = vadd.f32 %v418, %v1470
        %v1472 = vpop.f32.mrb[0].mxu0
        %1473 = vmatprep.mubr.bf16.mxu0 0
        %1474 = vmatmul.mubr.bf16.gmra.mrb[0].mxu0 %v940
        %v1475 = vpop.f32.mrb[0].mxu0
        %v1476 = vadd.f32 %v418, %v1475
        %v1477 = vpop.f32.mrb[0].mxu0
        %v1478 = vpop.f32.mrb[0].mxu0
        %v1479 = vadd.f32 %v418, %v1478
        %v1480 = vpop.f32.mrb[0].mxu0
        %1481 = vmatprep.mubr.bf16.mxu0 0
        %1482 = vmatmul.mubr.bf16.gmra.mrb[0].mxu0 %v943
        %v1483 = vpop.f32.mrb[0].mxu0
        %v1484 = vadd.f32 %v418, %v1483
        %v1485 = vpop.f32.mrb[0].mxu0
        %v1486 = vpop.f32.mrb[0].mxu0
        %v1487 = vadd.f32 %v418, %v1486
        %v1488 = vpop.f32.mrb[0].mxu0
        %1489 = vdwg.mxu0
        %v1490 = vmax.f32 %v980, 0.0
        %v1491 = vmax.f32 %v983, 0.0
        %v1492 = vmax.f32 %v988, 0.0
        %v1493 = vmax.f32 %v991, 0.0
        %v1494 = vmax.f32 %v996, 0.0
        %v1495 = vmax.f32 %v999, 0.0
        %v1496 = vmax.f32 %v1004, 0.0
        %v1497 = vmax.f32 %v1007, 0.0
        %v1498 = vmax.f32 %v1012, 0.0
        %v1499 = vmax.f32 %v1015, 0.0
        %v1500 = vmax.f32 %v1020, 0.0
        %v1501 = vmax.f32 %v1023, 0.0
        %v1502 = vmax.f32 %v1028, 0.0
        %v1503 = vmax.f32 %v1031, 0.0
        %v1504 = vmax.f32 %v1036, 0.0
        %v1505 = vmax.f32 %v1039, 0.0
        %v1506 = vmax.f32 %v1044, 0.0
        %v1507 = vmax.f32 %v1047, 0.0
        %v1508 = vmax.f32 %v1052, 0.0
        %v1509 = vmax.f32 %v1055, 0.0
        %v1510 = vmax.f32 %v1060, 0.0
        %v1511 = vmax.f32 %v1063, 0.0
        %v1512 = vmax.f32 %v1068, 0.0
        %v1513 = vmax.f32 %v1071, 0.0
        %v1514 = vmax.f32 %v1076, 0.0
        %v1515 = vmax.f32 %v1079, 0.0
        %v1516 = vmax.f32 %v1084, 0.0
        %v1517 = vmax.f32 %v1087, 0.0
        %v1518 = vmax.f32 %v1092, 0.0
        %v1519 = vmax.f32 %v1095, 0.0
        %v1520 = vmax.f32 %v1100, 0.0
        %v1521 = vmax.f32 %v1103, 0.0
        %v1522 = vmax.f32 %v1108, 0.0
        %v1523 = vmax.f32 %v1111, 0.0
        %v1524 = vmax.f32 %v1116, 0.0
        %v1525 = vmax.f32 %v1119, 0.0
        %v1526 = vmax.f32 %v1124, 0.0
        %v1527 = vmax.f32 %v1127, 0.0
        %v1528 = vmax.f32 %v1132, 0.0
        %v1529 = vmax.f32 %v1135, 0.0
        %v1530 = vmax.f32 %v1140, 0.0
        %v1531 = vmax.f32 %v1143, 0.0
        %v1532 = vmax.f32 %v1148, 0.0
        %v1533 = vmax.f32 %v1151, 0.0
        %v1534 = vmax.f32 %v1156, 0.0
        %v1535 = vmax.f32 %v1159, 0.0
        %v1536 = vmax.f32 %v1164, 0.0
        %v1537 = vmax.f32 %v1167, 0.0
        %v1538 = vmax.f32 %v1172, 0.0
        %v1539 = vmax.f32 %v1175, 0.0
        %v1540 = vmax.f32 %v1180, 0.0
        %v1541 = vmax.f32 %v1183, 0.0
        %v1542 = vmax.f32 %v1188, 0.0
        %v1543 = vmax.f32 %v1191, 0.0
        %v1544 = vmax.f32 %v1196, 0.0
        %v1545 = vmax.f32 %v1199, 0.0
        %v1546 = vmax.f32 %v1204, 0.0
        %v1547 = vmax.f32 %v1207, 0.0
        %v1548 = vmax.f32 %v1212, 0.0
        %v1549 = vmax.f32 %v1215, 0.0
        %v1550 = vmax.f32 %v1220, 0.0
        %v1551 = vmax.f32 %v1223, 0.0
        %v1552 = vmax.f32 %v1228, 0.0
        %v1553 = vmax.f32 %v1231, 0.0
        %v1554 = vmax.f32 %v1236, 0.0
        %v1555 = vmax.f32 %v1239, 0.0
        %v1556 = vmax.f32 %v1244, 0.0
        %v1557 = vmax.f32 %v1247, 0.0
        %v1558 = vmax.f32 %v1252, 0.0
        %v1559 = vmax.f32 %v1255, 0.0
        %v1560 = vmax.f32 %v1260, 0.0
        %v1561 = vmax.f32 %v1263, 0.0
        %v1562 = vmax.f32 %v1268, 0.0
        %v1563 = vmax.f32 %v1271, 0.0
        %v1564 = vmax.f32 %v1276, 0.0
        %v1565 = vmax.f32 %v1279, 0.0
        %v1566 = vmax.f32 %v1284, 0.0
        %v1567 = vmax.f32 %v1287, 0.0
        %v1568 = vmax.f32 %v1292, 0.0
        %v1569 = vmax.f32 %v1295, 0.0
        %v1570 = vmax.f32 %v1300, 0.0
        %v1571 = vmax.f32 %v1303, 0.0
        %v1572 = vmax.f32 %v1308, 0.0
        %v1573 = vmax.f32 %v1311, 0.0
        %v1574 = vmax.f32 %v1316, 0.0
        %v1575 = vmax.f32 %v1319, 0.0
        %v1576 = vmax.f32 %v1324, 0.0
        %v1577 = vmax.f32 %v1327, 0.0
        %v1578 = vmax.f32 %v1332, 0.0
        %v1579 = vmax.f32 %v1335, 0.0
        %v1580 = vmax.f32 %v1340, 0.0
        %v1581 = vmax.f32 %v1343, 0.0
        %v1582 = vmax.f32 %v1348, 0.0
        %v1583 = vmax.f32 %v1351, 0.0
        %v1584 = vmax.f32 %v1356, 0.0
        %v1585 = vmax.f32 %v1359, 0.0
        %v1586 = vmax.f32 %v1364, 0.0
        %v1587 = vmax.f32 %v1367, 0.0
        %v1588 = vmax.f32 %v1372, 0.0
        %v1589 = vmax.f32 %v1375, 0.0
        %v1590 = vmax.f32 %v1380, 0.0
        %v1591 = vmax.f32 %v1383, 0.0
        %v1592 = vmax.f32 %v1388, 0.0
        %v1593 = vmax.f32 %v1391, 0.0
        %v1594 = vmax.f32 %v1396, 0.0
        %v1595 = vmax.f32 %v1399, 0.0
        %v1596 = vmax.f32 %v1404, 0.0
        %v1597 = vmax.f32 %v1407, 0.0
        %v1598 = vmax.f32 %v1412, 0.0
        %v1599 = vmax.f32 %v1415, 0.0
        %v1600 = vmax.f32 %v1420, 0.0
        %v1601 = vmax.f32 %v1423, 0.0
        %v1602 = vmax.f32 %v1428, 0.0
        %v1603 = vmax.f32 %v1431, 0.0
        %v1604 = vmax.f32 %v1436, 0.0
        %v1605 = vmax.f32 %v1439, 0.0
        %v1606 = vmax.f32 %v1444, 0.0
        %v1607 = vmax.f32 %v1447, 0.0
        %v1608 = vmax.f32 %v1452, 0.0
        %v1609 = vmax.f32 %v1455, 0.0
        %v1610 = vmax.f32 %v1460, 0.0
        %v1611 = vmax.f32 %v1463, 0.0
        %v1612 = vmax.f32 %v1468, 0.0
        %v1613 = vmax.f32 %v1471, 0.0
        %v1614 = vmax.f32 %v1476, 0.0
        %v1615 = vmax.f32 %v1479, 0.0
        %v1616 = vmax.f32 %v1484, 0.0
        %v1617 = vmax.f32 %v1487, 0.0
        %v1618 = vld [vmem:[%s3] sm:$0xf]
        %v1619 = vld [vmem:[%s3 + $0x4] sm:$0xf]
        %v1620 = vld [vmem:[%s3 + $0x8] sm:$0xf]
        %v1621 = vld [vmem:[%s3 + $0xc] sm:$0xf]
        %v1622 = vld [vmem:[%s3 + $0x10] sm:$0xf]
        %v1623 = vld [vmem:[%s3 + $0x14] sm:$0xf]
        %v1624 = vld [vmem:[%s3 + $0x18] sm:$0xf]
        %v1625 = vld [vmem:[%s3 + $0x1c] sm:$0xf]
        %v1626 = vld [vmem:[%s3 + $0x20] sm:$0xf]
        %v1627 = vld [vmem:[%s3 + $0x24] sm:$0xf]
        %v1628 = vld [vmem:[%s3 + $0x28] sm:$0xf]
        %v1629 = vld [vmem:[%s3 + $0x2c] sm:$0xf]
        %v1630 = vld [vmem:[%s3 + $0x30] sm:$0xf]
        %v1631 = vld [vmem:[%s3 + $0x34] sm:$0xf]
        %v1632 = vld [vmem:[%s3 + $0x38] sm:$0xf]
        %v1633 = vld [vmem:[%s3 + $0x3c] sm:$0xf]
        %v1634 = vld [vmem:[%s4] sm:$0x1]
        %v1635 = vpack.c.bf16 %v1491, %v1490
        %v1636 = vpack.c.bf16 %v1493, %v1492
        %v1637 = vpack.c.bf16 %v1495, %v1494
        %v1638 = vpack.c.bf16 %v1497, %v1496
        %v1639 = vpack.c.bf16 %v1499, %v1498
        %v1640 = vpack.c.bf16 %v1501, %v1500
        %v1641 = vpack.c.bf16 %v1503, %v1502
        %v1642 = vpack.c.bf16 %v1505, %v1504
        %v1643 = vpack.c.bf16 %v1507, %v1506
        %v1644 = vpack.c.bf16 %v1509, %v1508
        %v1645 = vpack.c.bf16 %v1511, %v1510
        %v1646 = vpack.c.bf16 %v1513, %v1512
        %v1647 = vpack.c.bf16 %v1515, %v1514
        %v1648 = vpack.c.bf16 %v1517, %v1516
        %v1649 = vpack.c.bf16 %v1519, %v1518
        %v1650 = vpack.c.bf16 %v1521, %v1520
        %v1651 = vpack.c.bf16 %v1523, %v1522
        %v1652 = vpack.c.bf16 %v1525, %v1524
        %v1653 = vpack.c.bf16 %v1527, %v1526
        %v1654 = vpack.c.bf16 %v1529, %v1528
        %v1655 = vpack.c.bf16 %v1531, %v1530
        %v1656 = vpack.c.bf16 %v1533, %v1532
        %v1657 = vpack.c.bf16 %v1535, %v1534
        %v1658 = vpack.c.bf16 %v1537, %v1536
        %v1659 = vpack.c.bf16 %v1539, %v1538
        %v1660 = vpack.c.bf16 %v1541, %v1540
        %v1661 = vpack.c.bf16 %v1543, %v1542
        %v1662 = vpack.c.bf16 %v1545, %v1544
        %v1663 = vpack.c.bf16 %v1547, %v1546
        %v1664 = vpack.c.bf16 %v1549, %v1548
        %v1665 = vpack.c.bf16 %v1551, %v1550
        %v1666 = vpack.c.bf16 %v1553, %v1552
        %v1667 = vpack.c.bf16 %v1555, %v1554
        %v1668 = vpack.c.bf16 %v1557, %v1556
        %v1669 = vpack.c.bf16 %v1559, %v1558
        %v1670 = vpack.c.bf16 %v1561, %v1560
        %v1671 = vpack.c.bf16 %v1563, %v1562
        %v1672 = vpack.c.bf16 %v1565, %v1564
        %v1673 = vpack.c.bf16 %v1567, %v1566
        %v1674 = vpack.c.bf16 %v1569, %v1568
        %v1675 = vpack.c.bf16 %v1571, %v1570
        %v1676 = vpack.c.bf16 %v1573, %v1572
        %v1677 = vpack.c.bf16 %v1575, %v1574
        %v1678 = vpack.c.bf16 %v1577, %v1576
        %v1679 = vpack.c.bf16 %v1579, %v1578
        %v1680 = vpack.c.bf16 %v1581, %v1580
        %v1681 = vpack.c.bf16 %v1583, %v1582
        %v1682 = vpack.c.bf16 %v1585, %v1584
        %v1683 = vpack.c.bf16 %v1587, %v1586
        %v1684 = vpack.c.bf16 %v1589, %v1588
        %v1685 = vpack.c.bf16 %v1591, %v1590
        %v1686 = vpack.c.bf16 %v1593, %v1592
        %v1687 = vpack.c.bf16 %v1595, %v1594
        %v1688 = vpack.c.bf16 %v1597, %v1596
        %v1689 = vpack.c.bf16 %v1599, %v1598
        %v1690 = vpack.c.bf16 %v1601, %v1600
        %v1691 = vpack.c.bf16 %v1603, %v1602
        %v1692 = vpack.c.bf16 %v1605, %v1604
        %v1693 = vpack.c.bf16 %v1607, %v1606
        %v1694 = vpack.c.bf16 %v1609, %v1608
        %v1695 = vpack.c.bf16 %v1611, %v1610
        %v1696 = vpack.c.bf16 %v1613, %v1612
        %v1697 = vpack.c.bf16 %v1615, %v1614
        %v1698 = vpack.c.bf16 %v1617, %v1616
        %v1700 = vlaneseq
        %v1701 = vshrl.u32 %v1700, 7
        %v1702 = vsub.s32 0, %v1701
        %v1703 = vrot.slane %v1634, %v1702
        %v1721 = vunpack.c.l.b16 %v1618
        %v1722 = vunpack.c.l.b16 %v1619
        %v1723 = vunpack.c.l.b16 %v1620
        %v1724 = vunpack.c.l.b16 %v1621
        %v1725 = vunpack.c.l.b16 %v1622
        %v1726 = vunpack.c.l.b16 %v1623
        %v1727 = vunpack.c.l.b16 %v1624
        %v1728 = vunpack.c.l.b16 %v1625
        %v1729 = vunpack.c.l.b16 %v1626
        %v1730 = vunpack.c.l.b16 %v1627
        %v1731 = vunpack.c.l.b16 %v1628
        %v1732 = vunpack.c.l.b16 %v1629
        %v1733 = vunpack.c.l.b16 %v1630
        %v1734 = vunpack.c.l.b16 %v1631
        %v1735 = vunpack.c.l.b16 %v1632
        %v1736 = vunpack.c.l.b16 %v1633
        %v1737 = vpack.c.b16 %v1722, %v1721
        %v1738 = vpack.c.b16 %v1724, %v1723
        %v1739 = vpack.c.b16 %v1726, %v1725
        %v1740 = vpack.c.b16 %v1728, %v1727
        %v1741 = vpack.c.b16 %v1730, %v1729
        %v1742 = vpack.c.b16 %v1732, %v1731
        %v1743 = vpack.c.b16 %v1734, %v1733
        %v1744 = vpack.c.b16 %v1736, %v1735
        %1753 = vmatprep.subr.bf16.mxu0 0
        %1754 = vmatpush1.bf16.msra.mxu0 %v1737
        %1755 = vmatprep.subr.bf16.mxu0 0
        %1756 = vmatpush1.bf16.msra.mxu0 %v1738
        %1757 = vmatprep.subr.bf16.mxu0 0
        %1758 = vmatpush1.bf16.msra.mxu0 %v1739
        %1759 = vmatprep.subr.bf16.mxu0 0
        %1760 = vmatpush1.bf16.msra.mxu0 %v1740
        %1761 = vmatprep.subr.bf16.mxu0 0
        %1762 = vmatpush1.bf16.msra.mxu0 %v1741
        %1763 = vmatprep.subr.bf16.mxu0 0
        %1764 = vmatpush1.bf16.msra.mxu0 %v1742
        %1765 = vmatprep.subr.bf16.mxu0 0
        %1766 = vmatpush1.bf16.msra.mxu0 %v1743
        %1767 = vmatprep.subr.bf16.mxu0 0
        %1768 = vmatpush1.bf16.msra.mxu0 %v1744
        %1769 = vmatprep.subr.bf16.mxu0 0
        %1770 = vmatpush1.bf16.msra.mxu0 0
        %1771 = vmatprep.subr.bf16.mxu0 0
        %1772 = vmatpush1.bf16.msra.mxu0 0
        %1773 = vmatprep.subr.bf16.mxu0 0
        %1774 = vmatpush1.bf16.msra.mxu0 0
        %1775 = vmatprep.subr.bf16.mxu0 0
        %1776 = vmatpush1.bf16.msra.mxu0 0
        %1777 = vmatprep.subr.bf16.mxu0 0
        %1778 = vmatpush1.bf16.msra.mxu0 0
        %1779 = vmatprep.subr.bf16.mxu0 0
        %1780 = vmatpush1.bf16.msra.mxu0 0
        %1781 = vmatprep.subr.bf16.mxu0 0
        %1782 = vmatpush1.bf16.msra.mxu0 0
        %1783 = vmatprep.subr.bf16.mxu0 0
        %1784 = vmatpush1.bf16.msra.mxu0 0
        %1785 = vmatprep.mubr.bf16.mxu0 0
        %1786 = vmatmul.mubr.bf16.gmra.mrb[0].mxu0 %v1635
        %v1787 = vpop.f32.mrb[0].mxu0
        %v1788 = vadd.f32 %v1703, %v1787
        %v1789 = vpop.f32.mrb[0].mxu0
        %v1790 = vpop.f32.mrb[0].mxu0
        %v1791 = vadd.f32 %v1703, %v1790
        %v1792 = vpop.f32.mrb[0].mxu0
        %1793 = vmatprep.mubr.bf16.mxu0 0
        %1794 = vmatmul.mubr.bf16.gmra.mrb[0].mxu0 %v1636
        %v1795 = vpop.f32.mrb[0].mxu0
        %v1796 = vadd.f32 %v1703, %v1795
        %v1797 = vpop.f32.mrb[0].mxu0
        %v1798 = vpop.f32.mrb[0].mxu0
        %v1799 = vadd.f32 %v1703, %v1798
        %v1800 = vpop.f32.mrb[0].mxu0
        %1801 = vmatprep.mubr.bf16.mxu0 0
        %1802 = vmatmul.mubr.bf16.gmra.mrb[0].mxu0 %v1637
        %v1803 = vpop.f32.mrb[0].mxu0
        %v1804 = vadd.f32 %v1703, %v1803
        %v1805 = vpop.f32.mrb[0].mxu0
        %v1806 = vpop.f32.mrb[0].mxu0
        %v1807 = vadd.f32 %v1703, %v1806
        %v1808 = vpop.f32.mrb[0].mxu0
        %1809 = vmatprep.mubr.bf16.mxu0 0
        %1810 = vmatmul.mubr.bf16.gmra.mrb[0].mxu0 %v1638
        %v1811 = vpop.f32.mrb[0].mxu0
        %v1812 = vadd.f32 %v1703, %v1811
        %v1813 = vpop.f32.mrb[0].mxu0
        %v1814 = vpop.f32.mrb[0].mxu0
        %v1815 = vadd.f32 %v1703, %v1814
        %v1816 = vpop.f32.mrb[0].mxu0
        %1817 = vmatprep.mubr.bf16.mxu0 0
        %1818 = vmatmul.mubr.bf16.gmra.mrb[0].mxu0 %v1639
        %v1819 = vpop.f32.mrb[0].mxu0
        %v1820 = vadd.f32 %v1703, %v1819
        %v1821 = vpop.f32.mrb[0].mxu0
        %v1822 = vpop.f32.mrb[0].mxu0
        %v1823 = vadd.f32 %v1703, %v1822
        %v1824 = vpop.f32.mrb[0].mxu0
        %1825 = vmatprep.mubr.bf16.mxu0 0
        %1826 = vmatmul.mubr.bf16.gmra.mrb[0].mxu0 %v1640
        %v1827 = vpop.f32.mrb[0].mxu0
        %v1828 = vadd.f32 %v1703, %v1827
        %v1829 = vpop.f32.mrb[0].mxu0
        %v1830 = vpop.f32.mrb[0].mxu0
        %v1831 = vadd.f32 %v1703, %v1830
        %v1832 = vpop.f32.mrb[0].mxu0
        %1833 = vmatprep.mubr.bf16.mxu0 0
        %1834 = vmatmul.mubr.bf16.gmra.mrb[0].mxu0 %v1641
        %v1835 = vpop.f32.mrb[0].mxu0
        %v1836 = vadd.f32 %v1703, %v1835
        %v1837 = vpop.f32.mrb[0].mxu0
        %v1838 = vpop.f32.mrb[0].mxu0
        %v1839 = vadd.f32 %v1703, %v1838
        %v1840 = vpop.f32.mrb[0].mxu0
        %1841 = vmatprep.mubr.bf16.mxu0 0
        %1842 = vmatmul.mubr.bf16.gmra.mrb[0].mxu0 %v1642
        %v1843 = vpop.f32.mrb[0].mxu0
        %v1844 = vadd.f32 %v1703, %v1843
        %v1845 = vpop.f32.mrb[0].mxu0
        %v1846 = vpop.f32.mrb[0].mxu0
        %v1847 = vadd.f32 %v1703, %v1846
        %v1848 = vpop.f32.mrb[0].mxu0
        %1849 = vmatprep.mubr.bf16.mxu0 0
        %1850 = vmatmul.mubr.bf16.gmra.mrb[0].mxu0 %v1643
        %v1851 = vpop.f32.mrb[0].mxu0
        %v1852 = vadd.f32 %v1703, %v1851
        %v1853 = vpop.f32.mrb[0].mxu0
        %v1854 = vpop.f32.mrb[0].mxu0
        %v1855 = vadd.f32 %v1703, %v1854
        %v1856 = vpop.f32.mrb[0].mxu0
        %1857 = vmatprep.mubr.bf16.mxu0 0
        %1858 = vmatmul.mubr.bf16.gmra.mrb[0].mxu0 %v1644
        %v1859 = vpop.f32.mrb[0].mxu0
        %v1860 = vadd.f32 %v1703, %v1859
        %v1861 = vpop.f32.mrb[0].mxu0
        %v1862 = vpop.f32.mrb[0].mxu0
        %v1863 = vadd.f32 %v1703, %v1862
        %v1864 = vpop.f32.mrb[0].mxu0
        %1865 = vmatprep.mubr.bf16.mxu0 0
        %1866 = vmatmul.mubr.bf16.gmra.mrb[0].mxu0 %v1645
        %v1867 = vpop.f32.mrb[0].mxu0
        %v1868 = vadd.f32 %v1703, %v1867
        %v1869 = vpop.f32.mrb[0].mxu0
        %v1870 = vpop.f32.mrb[0].mxu0
        %v1871 = vadd.f32 %v1703, %v1870
        %v1872 = vpop.f32.mrb[0].mxu0
        %1873 = vmatprep.mubr.bf16.mxu0 0
        %1874 = vmatmul.mubr.bf16.gmra.mrb[0].mxu0 %v1646
        %v1875 = vpop.f32.mrb[0].mxu0
        %v1876 = vadd.f32 %v1703, %v1875
        %v1877 = vpop.f32.mrb[0].mxu0
        %v1878 = vpop.f32.mrb[0].mxu0
        %v1879 = vadd.f32 %v1703, %v1878
        %v1880 = vpop.f32.mrb[0].mxu0
        %1881 = vmatprep.mubr.bf16.mxu0 0
        %1882 = vmatmul.mubr.bf16.gmra.mrb[0].mxu0 %v1647
        %v1883 = vpop.f32.mrb[0].mxu0
        %v1884 = vadd.f32 %v1703, %v1883
        %v1885 = vpop.f32.mrb[0].mxu0
        %v1886 = vpop.f32.mrb[0].mxu0
        %v1887 = vadd.f32 %v1703, %v1886
        %v1888 = vpop.f32.mrb[0].mxu0
        %1889 = vmatprep.mubr.bf16.mxu0 0
        %1890 = vmatmul.mubr.bf16.gmra.mrb[0].mxu0 %v1648
        %v1891 = vpop.f32.mrb[0].mxu0
        %v1892 = vadd.f32 %v1703, %v1891
        %v1893 = vpop.f32.mrb[0].mxu0
        %v1894 = vpop.f32.mrb[0].mxu0
        %v1895 = vadd.f32 %v1703, %v1894
        %v1896 = vpop.f32.mrb[0].mxu0
        %1897 = vmatprep.mubr.bf16.mxu0 0
        %1898 = vmatmul.mubr.bf16.gmra.mrb[0].mxu0 %v1649
        %v1899 = vpop.f32.mrb[0].mxu0
        %v1900 = vadd.f32 %v1703, %v1899
        %v1901 = vpop.f32.mrb[0].mxu0
        %v1902 = vpop.f32.mrb[0].mxu0
        %v1903 = vadd.f32 %v1703, %v1902
        %v1904 = vpop.f32.mrb[0].mxu0
        %1905 = vmatprep.mubr.bf16.mxu0 0
        %1906 = vmatmul.mubr.bf16.gmra.mrb[0].mxu0 %v1650
        %v1907 = vpop.f32.mrb[0].mxu0
        %v1908 = vadd.f32 %v1703, %v1907
        %v1909 = vpop.f32.mrb[0].mxu0
        %v1910 = vpop.f32.mrb[0].mxu0
        %v1911 = vadd.f32 %v1703, %v1910
        %v1912 = vpop.f32.mrb[0].mxu0
        %1913 = vmatprep.mubr.bf16.mxu0 0
        %1914 = vmatmul.mubr.bf16.gmra.mrb[0].mxu0 %v1651
        %v1915 = vpop.f32.mrb[0].mxu0
        %v1916 = vadd.f32 %v1703, %v1915
        %v1917 = vpop.f32.mrb[0].mxu0
        %v1918 = vpop.f32.mrb[0].mxu0
        %v1919 = vadd.f32 %v1703, %v1918
        %v1920 = vpop.f32.mrb[0].mxu0
        %1921 = vmatprep.mubr.bf16.mxu0 0
        %1922 = vmatmul.mubr.bf16.gmra.mrb[0].mxu0 %v1652
        %v1923 = vpop.f32.mrb[0].mxu0
        %v1924 = vadd.f32 %v1703, %v1923
        %v1925 = vpop.f32.mrb[0].mxu0
        %v1926 = vpop.f32.mrb[0].mxu0
        %v1927 = vadd.f32 %v1703, %v1926
        %v1928 = vpop.f32.mrb[0].mxu0
        %1929 = vmatprep.mubr.bf16.mxu0 0
        %1930 = vmatmul.mubr.bf16.gmra.mrb[0].mxu0 %v1653
        %v1931 = vpop.f32.mrb[0].mxu0
        %v1932 = vadd.f32 %v1703, %v1931
        %v1933 = vpop.f32.mrb[0].mxu0
        %v1934 = vpop.f32.mrb[0].mxu0
        %v1935 = vadd.f32 %v1703, %v1934
        %v1936 = vpop.f32.mrb[0].mxu0
        %1937 = vmatprep.mubr.bf16.mxu0 0
        %1938 = vmatmul.mubr.bf16.gmra.mrb[0].mxu0 %v1654
        %v1939 = vpop.f32.mrb[0].mxu0
        %v1940 = vadd.f32 %v1703, %v1939
        %v1941 = vpop.f32.mrb[0].mxu0
        %v1942 = vpop.f32.mrb[0].mxu0
        %v1943 = vadd.f32 %v1703, %v1942
        %v1944 = vpop.f32.mrb[0].mxu0
        %1945 = vmatprep.mubr.bf16.mxu0 0
        %1946 = vmatmul.mubr.bf16.gmra.mrb[0].mxu0 %v1655
        %v1947 = vpop.f32.mrb[0].mxu0
        %v1948 = vadd.f32 %v1703, %v1947
        %v1949 = vpop.f32.mrb[0].mxu0
        %v1950 = vpop.f32.mrb[0].mxu0
        %v1951 = vadd.f32 %v1703, %v1950
        %v1952 = vpop.f32.mrb[0].mxu0
        %1953 = vmatprep.mubr.bf16.mxu0 0
        %1954 = vmatmul.mubr.bf16.gmra.mrb[0].mxu0 %v1656
        %v1955 = vpop.f32.mrb[0].mxu0
        %v1956 = vadd.f32 %v1703, %v1955
        %v1957 = vpop.f32.mrb[0].mxu0
        %v1958 = vpop.f32.mrb[0].mxu0
        %v1959 = vadd.f32 %v1703, %v1958
        %v1960 = vpop.f32.mrb[0].mxu0
        %1961 = vmatprep.mubr.bf16.mxu0 0
        %1962 = vmatmul.mubr.bf16.gmra.mrb[0].mxu0 %v1657
        %v1963 = vpop.f32.mrb[0].mxu0
        %v1964 = vadd.f32 %v1703, %v1963
        %v1965 = vpop.f32.mrb[0].mxu0
        %v1966 = vpop.f32.mrb[0].mxu0
        %v1967 = vadd.f32 %v1703, %v1966
        %v1968 = vpop.f32.mrb[0].mxu0
        %1969 = vmatprep.mubr.bf16.mxu0 0
        %1970 = vmatmul.mubr.bf16.gmra.mrb[0].mxu0 %v1658
        %v1971 = vpop.f32.mrb[0].mxu0
        %v1972 = vadd.f32 %v1703, %v1971
        %v1973 = vpop.f32.mrb[0].mxu0
        %v1974 = vpop.f32.mrb[0].mxu0
        %v1975 = vadd.f32 %v1703, %v1974
        %v1976 = vpop.f32.mrb[0].mxu0
        %1977 = vmatprep.mubr.bf16.mxu0 0
        %1978 = vmatmul.mubr.bf16.gmra.mrb[0].mxu0 %v1659
        %v1979 = vpop.f32.mrb[0].mxu0
        %v1980 = vadd.f32 %v1703, %v1979
        %v1981 = vpop.f32.mrb[0].mxu0
        %v1982 = vpop.f32.mrb[0].mxu0
        %v1983 = vadd.f32 %v1703, %v1982
        %v1984 = vpop.f32.mrb[0].mxu0
        %1985 = vmatprep.mubr.bf16.mxu0 0
        %1986 = vmatmul.mubr.bf16.gmra.mrb[0].mxu0 %v1660
        %v1987 = vpop.f32.mrb[0].mxu0
        %v1988 = vadd.f32 %v1703, %v1987
        %v1989 = vpop.f32.mrb[0].mxu0
        %v1990 = vpop.f32.mrb[0].mxu0
        %v1991 = vadd.f32 %v1703, %v1990
        %v1992 = vpop.f32.mrb[0].mxu0
        %1993 = vmatprep.mubr.bf16.mxu0 0
        %1994 = vmatmul.mubr.bf16.gmra.mrb[0].mxu0 %v1661
        %v1995 = vpop.f32.mrb[0].mxu0
        %v1996 = vadd.f32 %v1703, %v1995
        %v1997 = vpop.f32.mrb[0].mxu0
        %v1998 = vpop.f32.mrb[0].mxu0
        %v1999 = vadd.f32 %v1703, %v1998
        %v2000 = vpop.f32.mrb[0].mxu0
        %2001 = vmatprep.mubr.bf16.mxu0 0
        %2002 = vmatmul.mubr.bf16.gmra.mrb[0].mxu0 %v1662
        %v2003 = vpop.f32.mrb[0].mxu0
        %v2004 = vadd.f32 %v1703, %v2003
        %v2005 = vpop.f32.mrb[0].mxu0
        %v2006 = vpop.f32.mrb[0].mxu0
        %v2007 = vadd.f32 %v1703, %v2006
        %v2008 = vpop.f32.mrb[0].mxu0
        %2009 = vmatprep.mubr.bf16.mxu0 0
        %2010 = vmatmul.mubr.bf16.gmra.mrb[0].mxu0 %v1663
        %v2011 = vpop.f32.mrb[0].mxu0
        %v2012 = vadd.f32 %v1703, %v2011
        %v2013 = vpop.f32.mrb[0].mxu0
        %v2014 = vpop.f32.mrb[0].mxu0
        %v2015 = vadd.f32 %v1703, %v2014
        %v2016 = vpop.f32.mrb[0].mxu0
        %2017 = vmatprep.mubr.bf16.mxu0 0
        %2018 = vmatmul.mubr.bf16.gmra.mrb[0].mxu0 %v1664
        %v2019 = vpop.f32.mrb[0].mxu0
        %v2020 = vadd.f32 %v1703, %v2019
        %v2021 = vpop.f32.mrb[0].mxu0
        %v2022 = vpop.f32.mrb[0].mxu0
        %v2023 = vadd.f32 %v1703, %v2022
        %v2024 = vpop.f32.mrb[0].mxu0
        %2025 = vmatprep.mubr.bf16.mxu0 0
        %2026 = vmatmul.mubr.bf16.gmra.mrb[0].mxu0 %v1665
        %v2027 = vpop.f32.mrb[0].mxu0
        %v2028 = vadd.f32 %v1703, %v2027
        %v2029 = vpop.f32.mrb[0].mxu0
        %v2030 = vpop.f32.mrb[0].mxu0
        %v2031 = vadd.f32 %v1703, %v2030
        %v2032 = vpop.f32.mrb[0].mxu0
        %2033 = vmatprep.mubr.bf16.mxu0 0
        %2034 = vmatmul.mubr.bf16.gmra.mrb[0].mxu0 %v1666
        %v2035 = vpop.f32.mrb[0].mxu0
        %v2036 = vadd.f32 %v1703, %v2035
        %v2037 = vpop.f32.mrb[0].mxu0
        %v2038 = vpop.f32.mrb[0].mxu0
        %v2039 = vadd.f32 %v1703, %v2038
        %v2040 = vpop.f32.mrb[0].mxu0
        %2041 = vmatprep.mubr.bf16.mxu0 0
        %2042 = vmatmul.mubr.bf16.gmra.mrb[0].mxu0 %v1667
        %v2043 = vpop.f32.mrb[0].mxu0
        %v2044 = vadd.f32 %v1703, %v2043
        %v2045 = vpop.f32.mrb[0].mxu0
        %v2046 = vpop.f32.mrb[0].mxu0
        %v2047 = vadd.f32 %v1703, %v2046
        %v2048 = vpop.f32.mrb[0].mxu0
        %2049 = vmatprep.mubr.bf16.mxu0 0
        %2050 = vmatmul.mubr.bf16.gmra.mrb[0].mxu0 %v1668
        %v2051 = vpop.f32.mrb[0].mxu0
        %v2052 = vadd.f32 %v1703, %v2051
        %v2053 = vpop.f32.mrb[0].mxu0
        %v2054 = vpop.f32.mrb[0].mxu0
        %v2055 = vadd.f32 %v1703, %v2054
        %v2056 = vpop.f32.mrb[0].mxu0
        %2057 = vmatprep.mubr.bf16.mxu0 0
        %2058 = vmatmul.mubr.bf16.gmra.mrb[0].mxu0 %v1669
        %v2059 = vpop.f32.mrb[0].mxu0
        %v2060 = vadd.f32 %v1703, %v2059
        %v2061 = vpop.f32.mrb[0].mxu0
        %v2062 = vpop.f32.mrb[0].mxu0
        %v2063 = vadd.f32 %v1703, %v2062
        %v2064 = vpop.f32.mrb[0].mxu0
        %2065 = vmatprep.mubr.bf16.mxu0 0
        %2066 = vmatmul.mubr.bf16.gmra.mrb[0].mxu0 %v1670
        %v2067 = vpop.f32.mrb[0].mxu0
        %v2068 = vadd.f32 %v1703, %v2067
        %v2069 = vpop.f32.mrb[0].mxu0
        %v2070 = vpop.f32.mrb[0].mxu0
        %v2071 = vadd.f32 %v1703, %v2070
        %v2072 = vpop.f32.mrb[0].mxu0
        %2073 = vmatprep.mubr.bf16.mxu0 0
        %2074 = vmatmul.mubr.bf16.gmra.mrb[0].mxu0 %v1671
        %v2075 = vpop.f32.mrb[0].mxu0
        %v2076 = vadd.f32 %v1703, %v2075
        %v2077 = vpop.f32.mrb[0].mxu0
        %v2078 = vpop.f32.mrb[0].mxu0
        %v2079 = vadd.f32 %v1703, %v2078
        %v2080 = vpop.f32.mrb[0].mxu0
        %2081 = vmatprep.mubr.bf16.mxu0 0
        %2082 = vmatmul.mubr.bf16.gmra.mrb[0].mxu0 %v1672
        %v2083 = vpop.f32.mrb[0].mxu0
        %v2084 = vadd.f32 %v1703, %v2083
        %v2085 = vpop.f32.mrb[0].mxu0
        %v2086 = vpop.f32.mrb[0].mxu0
        %v2087 = vadd.f32 %v1703, %v2086
        %v2088 = vpop.f32.mrb[0].mxu0
        %2089 = vmatprep.mubr.bf16.mxu0 0
        %2090 = vmatmul.mubr.bf16.gmra.mrb[0].mxu0 %v1673
        %v2091 = vpop.f32.mrb[0].mxu0
        %v2092 = vadd.f32 %v1703, %v2091
        %v2093 = vpop.f32.mrb[0].mxu0
        %v2094 = vpop.f32.mrb[0].mxu0
        %v2095 = vadd.f32 %v1703, %v2094
        %v2096 = vpop.f32.mrb[0].mxu0
        %2097 = vmatprep.mubr.bf16.mxu0 0
        %2098 = vmatmul.mubr.bf16.gmra.mrb[0].mxu0 %v1674
        %v2099 = vpop.f32.mrb[0].mxu0
        %v2100 = vadd.f32 %v1703, %v2099
        %v2101 = vpop.f32.mrb[0].mxu0
        %v2102 = vpop.f32.mrb[0].mxu0
        %v2103 = vadd.f32 %v1703, %v2102
        %v2104 = vpop.f32.mrb[0].mxu0
        %2105 = vmatprep.mubr.bf16.mxu0 0
        %2106 = vmatmul.mubr.bf16.gmra.mrb[0].mxu0 %v1675
        %v2107 = vpop.f32.mrb[0].mxu0
        %v2108 = vadd.f32 %v1703, %v2107
        %v2109 = vpop.f32.mrb[0].mxu0
        %v2110 = vpop.f32.mrb[0].mxu0
        %v2111 = vadd.f32 %v1703, %v2110
        %v2112 = vpop.f32.mrb[0].mxu0
        %2113 = vmatprep.mubr.bf16.mxu0 0
        %2114 = vmatmul.mubr.bf16.gmra.mrb[0].mxu0 %v1676
        %v2115 = vpop.f32.mrb[0].mxu0
        %v2116 = vadd.f32 %v1703, %v2115
        %v2117 = vpop.f32.mrb[0].mxu0
        %v2118 = vpop.f32.mrb[0].mxu0
        %v2119 = vadd.f32 %v1703, %v2118
        %v2120 = vpop.f32.mrb[0].mxu0
        %2121 = vmatprep.mubr.bf16.mxu0 0
        %2122 = vmatmul.mubr.bf16.gmra.mrb[0].mxu0 %v1677
        %v2123 = vpop.f32.mrb[0].mxu0
        %v2124 = vadd.f32 %v1703, %v2123
        %v2125 = vpop.f32.mrb[0].mxu0
        %v2126 = vpop.f32.mrb[0].mxu0
        %v2127 = vadd.f32 %v1703, %v2126
        %v2128 = vpop.f32.mrb[0].mxu0
        %2129 = vmatprep.mubr.bf16.mxu0 0
        %2130 = vmatmul.mubr.bf16.gmra.mrb[0].mxu0 %v1678
        %v2131 = vpop.f32.mrb[0].mxu0
        %v2132 = vadd.f32 %v1703, %v2131
        %v2133 = vpop.f32.mrb[0].mxu0
        %v2134 = vpop.f32.mrb[0].mxu0
        %v2135 = vadd.f32 %v1703, %v2134
        %v2136 = vpop.f32.mrb[0].mxu0
        %2137 = vmatprep.mubr.bf16.mxu0 0
        %2138 = vmatmul.mubr.bf16.gmra.mrb[0].mxu0 %v1679
        %v2139 = vpop.f32.mrb[0].mxu0
        %v2140 = vadd.f32 %v1703, %v2139
        %v2141 = vpop.f32.mrb[0].mxu0
        %v2142 = vpop.f32.mrb[0].mxu0
        %v2143 = vadd.f32 %v1703, %v2142
        %v2144 = vpop.f32.mrb[0].mxu0
        %2145 = vmatprep.mubr.bf16.mxu0 0
        %2146 = vmatmul.mubr.bf16.gmra.mrb[0].mxu0 %v1680
        %v2147 = vpop.f32.mrb[0].mxu0
        %v2148 = vadd.f32 %v1703, %v2147
        %v2149 = vpop.f32.mrb[0].mxu0
        %v2150 = vpop.f32.mrb[0].mxu0
        %v2151 = vadd.f32 %v1703, %v2150
        %v2152 = vpop.f32.mrb[0].mxu0
        %2153 = vmatprep.mubr.bf16.mxu0 0
        %2154 = vmatmul.mubr.bf16.gmra.mrb[0].mxu0 %v1681
        %v2155 = vpop.f32.mrb[0].mxu0
        %v2156 = vadd.f32 %v1703, %v2155
        %v2157 = vpop.f32.mrb[0].mxu0
        %v2158 = vpop.f32.mrb[0].mxu0
        %v2159 = vadd.f32 %v1703, %v2158
        %v2160 = vpop.f32.mrb[0].mxu0
        %2161 = vmatprep.mubr.bf16.mxu0 0
        %2162 = vmatmul.mubr.bf16.gmra.mrb[0].mxu0 %v1682
        %v2163 = vpop.f32.mrb[0].mxu0
        %v2164 = vadd.f32 %v1703, %v2163
        %v2165 = vpop.f32.mrb[0].mxu0
        %v2166 = vpop.f32.mrb[0].mxu0
        %v2167 = vadd.f32 %v1703, %v2166
        %v2168 = vpop.f32.mrb[0].mxu0
        %2169 = vmatprep.mubr.bf16.mxu0 0
        %2170 = vmatmul.mubr.bf16.gmra.mrb[0].mxu0 %v1683
        %v2171 = vpop.f32.mrb[0].mxu0
        %v2172 = vadd.f32 %v1703, %v2171
        %v2173 = vpop.f32.mrb[0].mxu0
        %v2174 = vpop.f32.mrb[0].mxu0
        %v2175 = vadd.f32 %v1703, %v2174
        %v2176 = vpop.f32.mrb[0].mxu0
        %2177 = vmatprep.mubr.bf16.mxu0 0
        %2178 = vmatmul.mubr.bf16.gmra.mrb[0].mxu0 %v1684
        %v2179 = vpop.f32.mrb[0].mxu0
        %v2180 = vadd.f32 %v1703, %v2179
        %v2181 = vpop.f32.mrb[0].mxu0
        %v2182 = vpop.f32.mrb[0].mxu0
        %v2183 = vadd.f32 %v1703, %v2182
        %v2184 = vpop.f32.mrb[0].mxu0
        %2185 = vmatprep.mubr.bf16.mxu0 0
        %2186 = vmatmul.mubr.bf16.gmra.mrb[0].mxu0 %v1685
        %v2187 = vpop.f32.mrb[0].mxu0
        %v2188 = vadd.f32 %v1703, %v2187
        %v2189 = vpop.f32.mrb[0].mxu0
        %v2190 = vpop.f32.mrb[0].mxu0
        %v2191 = vadd.f32 %v1703, %v2190
        %v2192 = vpop.f32.mrb[0].mxu0
        %2193 = vmatprep.mubr.bf16.mxu0 0
        %2194 = vmatmul.mubr.bf16.gmra.mrb[0].mxu0 %v1686
        %v2195 = vpop.f32.mrb[0].mxu0
        %v2196 = vadd.f32 %v1703, %v2195
        %v2197 = vpop.f32.mrb[0].mxu0
        %v2198 = vpop.f32.mrb[0].mxu0
        %v2199 = vadd.f32 %v1703, %v2198
        %v2200 = vpop.f32.mrb[0].mxu0
        %2201 = vmatprep.mubr.bf16.mxu0 0
        %2202 = vmatmul.mubr.bf16.gmra.mrb[0].mxu0 %v1687
        %v2203 = vpop.f32.mrb[0].mxu0
        %v2204 = vadd.f32 %v1703, %v2203
        %v2205 = vpop.f32.mrb[0].mxu0
        %v2206 = vpop.f32.mrb[0].mxu0
        %v2207 = vadd.f32 %v1703, %v2206
        %v2208 = vpop.f32.mrb[0].mxu0
        %2209 = vmatprep.mubr.bf16.mxu0 0
        %2210 = vmatmul.mubr.bf16.gmra.mrb[0].mxu0 %v1688
        %v2211 = vpop.f32.mrb[0].mxu0
        %v2212 = vadd.f32 %v1703, %v2211
        %v2213 = vpop.f32.mrb[0].mxu0
        %v2214 = vpop.f32.mrb[0].mxu0
        %v2215 = vadd.f32 %v1703, %v2214
        %v2216 = vpop.f32.mrb[0].mxu0
        %2217 = vmatprep.mubr.bf16.mxu0 0
        %2218 = vmatmul.mubr.bf16.gmra.mrb[0].mxu0 %v1689
        %v2219 = vpop.f32.mrb[0].mxu0
        %v2220 = vadd.f32 %v1703, %v2219
        %v2221 = vpop.f32.mrb[0].mxu0
        %v2222 = vpop.f32.mrb[0].mxu0
        %v2223 = vadd.f32 %v1703, %v2222
        %v2224 = vpop.f32.mrb[0].mxu0
        %2225 = vmatprep.mubr.bf16.mxu0 0
        %2226 = vmatmul.mubr.bf16.gmra.mrb[0].mxu0 %v1690
        %v2227 = vpop.f32.mrb[0].mxu0
        %v2228 = vadd.f32 %v1703, %v2227
        %v2229 = vpop.f32.mrb[0].mxu0
        %v2230 = vpop.f32.mrb[0].mxu0
        %v2231 = vadd.f32 %v1703, %v2230
        %v2232 = vpop.f32.mrb[0].mxu0
        %2233 = vmatprep.mubr.bf16.mxu0 0
        %2234 = vmatmul.mubr.bf16.gmra.mrb[0].mxu0 %v1691
        %v2235 = vpop.f32.mrb[0].mxu0
        %v2236 = vadd.f32 %v1703, %v2235
        %v2237 = vpop.f32.mrb[0].mxu0
        %v2238 = vpop.f32.mrb[0].mxu0
        %v2239 = vadd.f32 %v1703, %v2238
        %v2240 = vpop.f32.mrb[0].mxu0
        %2241 = vmatprep.mubr.bf16.mxu0 0
        %2242 = vmatmul.mubr.bf16.gmra.mrb[0].mxu0 %v1692
        %v2243 = vpop.f32.mrb[0].mxu0
        %v2244 = vadd.f32 %v1703, %v2243
        %v2245 = vpop.f32.mrb[0].mxu0
        %v2246 = vpop.f32.mrb[0].mxu0
        %v2247 = vadd.f32 %v1703, %v2246
        %v2248 = vpop.f32.mrb[0].mxu0
        %2249 = vmatprep.mubr.bf16.mxu0 0
        %2250 = vmatmul.mubr.bf16.gmra.mrb[0].mxu0 %v1693
        %v2251 = vpop.f32.mrb[0].mxu0
        %v2252 = vadd.f32 %v1703, %v2251
        %v2253 = vpop.f32.mrb[0].mxu0
        %v2254 = vpop.f32.mrb[0].mxu0
        %v2255 = vadd.f32 %v1703, %v2254
        %v2256 = vpop.f32.mrb[0].mxu0
        %2257 = vmatprep.mubr.bf16.mxu0 0
        %2258 = vmatmul.mubr.bf16.gmra.mrb[0].mxu0 %v1694
        %v2259 = vpop.f32.mrb[0].mxu0
        %v2260 = vadd.f32 %v1703, %v2259
        %v2261 = vpop.f32.mrb[0].mxu0
        %v2262 = vpop.f32.mrb[0].mxu0
        %v2263 = vadd.f32 %v1703, %v2262
        %v2264 = vpop.f32.mrb[0].mxu0
        %2265 = vmatprep.mubr.bf16.mxu0 0
        %2266 = vmatmul.mubr.bf16.gmra.mrb[0].mxu0 %v1695
        %v2267 = vpop.f32.mrb[0].mxu0
        %v2268 = vadd.f32 %v1703, %v2267
        %v2269 = vpop.f32.mrb[0].mxu0
        %v2270 = vpop.f32.mrb[0].mxu0
        %v2271 = vadd.f32 %v1703, %v2270
        %v2272 = vpop.f32.mrb[0].mxu0
        %2273 = vmatprep.mubr.bf16.mxu0 0
        %2274 = vmatmul.mubr.bf16.gmra.mrb[0].mxu0 %v1696
        %v2275 = vpop.f32.mrb[0].mxu0
        %v2276 = vadd.f32 %v1703, %v2275
        %v2277 = vpop.f32.mrb[0].mxu0
        %v2278 = vpop.f32.mrb[0].mxu0
        %v2279 = vadd.f32 %v1703, %v2278
        %v2280 = vpop.f32.mrb[0].mxu0
        %2281 = vmatprep.mubr.bf16.mxu0 0
        %2282 = vmatmul.mubr.bf16.gmra.mrb[0].mxu0 %v1697
        %v2283 = vpop.f32.mrb[0].mxu0
        %v2284 = vadd.f32 %v1703, %v2283
        %v2285 = vpop.f32.mrb[0].mxu0
        %v2286 = vpop.f32.mrb[0].mxu0
        %v2287 = vadd.f32 %v1703, %v2286
        %v2288 = vpop.f32.mrb[0].mxu0
        %2289 = vmatprep.mubr.bf16.mxu0 0
        %2290 = vmatmul.mubr.bf16.gmra.mrb[0].mxu0 %v1698
        %v2291 = vpop.f32.mrb[0].mxu0
        %v2292 = vadd.f32 %v1703, %v2291
        %v2293 = vpop.f32.mrb[0].mxu0
        %v2294 = vpop.f32.mrb[0].mxu0
        %v2295 = vadd.f32 %v1703, %v2294
        %v2296 = vpop.f32.mrb[0].mxu0
        %2297 = vdwg.mxu0
        %v2298 = vmax.f32 %v1788, 0.0
        %v2299 = vmax.f32 %v1791, 0.0
        %v2300 = vmax.f32 %v1796, 0.0
        %v2301 = vmax.f32 %v1799, 0.0
        %v2302 = vmax.f32 %v1804, 0.0
        %v2303 = vmax.f32 %v1807, 0.0
        %v2304 = vmax.f32 %v1812, 0.0
        %v2305 = vmax.f32 %v1815, 0.0
        %v2306 = vmax.f32 %v1820, 0.0
        %v2307 = vmax.f32 %v1823, 0.0
        %v2308 = vmax.f32 %v1828, 0.0
        %v2309 = vmax.f32 %v1831, 0.0
        %v2310 = vmax.f32 %v1836, 0.0
        %v2311 = vmax.f32 %v1839, 0.0
        %v2312 = vmax.f32 %v1844, 0.0
        %v2313 = vmax.f32 %v1847, 0.0
        %v2314 = vmax.f32 %v1852, 0.0
        %v2315 = vmax.f32 %v1855, 0.0
        %v2316 = vmax.f32 %v1860, 0.0
        %v2317 = vmax.f32 %v1863, 0.0
        %v2318 = vmax.f32 %v1868, 0.0
        %v2319 = vmax.f32 %v1871, 0.0
        %v2320 = vmax.f32 %v1876, 0.0
        %v2321 = vmax.f32 %v1879, 0.0
        %v2322 = vmax.f32 %v1884, 0.0
        %v2323 = vmax.f32 %v1887, 0.0
        %v2324 = vmax.f32 %v1892, 0.0
        %v2325 = vmax.f32 %v1895, 0.0
        %v2326 = vmax.f32 %v1900, 0.0
        %v2327 = vmax.f32 %v1903, 0.0
        %v2328 = vmax.f32 %v1908, 0.0
        %v2329 = vmax.f32 %v1911, 0.0
        %v2330 = vmax.f32 %v1916, 0.0
        %v2331 = vmax.f32 %v1919, 0.0
        %v2332 = vmax.f32 %v1924, 0.0
        %v2333 = vmax.f32 %v1927, 0.0
        %v2334 = vmax.f32 %v1932, 0.0
        %v2335 = vmax.f32 %v1935, 0.0
        %v2336 = vmax.f32 %v1940, 0.0
        %v2337 = vmax.f32 %v1943, 0.0
        %v2338 = vmax.f32 %v1948, 0.0
        %v2339 = vmax.f32 %v1951, 0.0
        %v2340 = vmax.f32 %v1956, 0.0
        %v2341 = vmax.f32 %v1959, 0.0
        %v2342 = vmax.f32 %v1964, 0.0
        %v2343 = vmax.f32 %v1967, 0.0
        %v2344 = vmax.f32 %v1972, 0.0
        %v2345 = vmax.f32 %v1975, 0.0
        %v2346 = vmax.f32 %v1980, 0.0
        %v2347 = vmax.f32 %v1983, 0.0
        %v2348 = vmax.f32 %v1988, 0.0
        %v2349 = vmax.f32 %v1991, 0.0
        %v2350 = vmax.f32 %v1996, 0.0
        %v2351 = vmax.f32 %v1999, 0.0
        %v2352 = vmax.f32 %v2004, 0.0
        %v2353 = vmax.f32 %v2007, 0.0
        %v2354 = vmax.f32 %v2012, 0.0
        %v2355 = vmax.f32 %v2015, 0.0
        %v2356 = vmax.f32 %v2020, 0.0
        %v2357 = vmax.f32 %v2023, 0.0
        %v2358 = vmax.f32 %v2028, 0.0
        %v2359 = vmax.f32 %v2031, 0.0
        %v2360 = vmax.f32 %v2036, 0.0
        %v2361 = vmax.f32 %v2039, 0.0
        %v2362 = vmax.f32 %v2044, 0.0
        %v2363 = vmax.f32 %v2047, 0.0
        %v2364 = vmax.f32 %v2052, 0.0
        %v2365 = vmax.f32 %v2055, 0.0
        %v2366 = vmax.f32 %v2060, 0.0
        %v2367 = vmax.f32 %v2063, 0.0
        %v2368 = vmax.f32 %v2068, 0.0
        %v2369 = vmax.f32 %v2071, 0.0
        %v2370 = vmax.f32 %v2076, 0.0
        %v2371 = vmax.f32 %v2079, 0.0
        %v2372 = vmax.f32 %v2084, 0.0
        %v2373 = vmax.f32 %v2087, 0.0
        %v2374 = vmax.f32 %v2092, 0.0
        %v2375 = vmax.f32 %v2095, 0.0
        %v2376 = vmax.f32 %v2100, 0.0
        %v2377 = vmax.f32 %v2103, 0.0
        %v2378 = vmax.f32 %v2108, 0.0
        %v2379 = vmax.f32 %v2111, 0.0
        %v2380 = vmax.f32 %v2116, 0.0
        %v2381 = vmax.f32 %v2119, 0.0
        %v2382 = vmax.f32 %v2124, 0.0
        %v2383 = vmax.f32 %v2127, 0.0
        %v2384 = vmax.f32 %v2132, 0.0
        %v2385 = vmax.f32 %v2135, 0.0
        %v2386 = vmax.f32 %v2140, 0.0
        %v2387 = vmax.f32 %v2143, 0.0
        %v2388 = vmax.f32 %v2148, 0.0
        %v2389 = vmax.f32 %v2151, 0.0
        %v2390 = vmax.f32 %v2156, 0.0
        %v2391 = vmax.f32 %v2159, 0.0
        %v2392 = vmax.f32 %v2164, 0.0
        %v2393 = vmax.f32 %v2167, 0.0
        %v2394 = vmax.f32 %v2172, 0.0
        %v2395 = vmax.f32 %v2175, 0.0
        %v2396 = vmax.f32 %v2180, 0.0
        %v2397 = vmax.f32 %v2183, 0.0
        %v2398 = vmax.f32 %v2188, 0.0
        %v2399 = vmax.f32 %v2191, 0.0
        %v2400 = vmax.f32 %v2196, 0.0
        %v2401 = vmax.f32 %v2199, 0.0
        %v2402 = vmax.f32 %v2204, 0.0
        %v2403 = vmax.f32 %v2207, 0.0
        %v2404 = vmax.f32 %v2212, 0.0
        %v2405 = vmax.f32 %v2215, 0.0
        %v2406 = vmax.f32 %v2220, 0.0
        %v2407 = vmax.f32 %v2223, 0.0
        %v2408 = vmax.f32 %v2228, 0.0
        %v2409 = vmax.f32 %v2231, 0.0
        %v2410 = vmax.f32 %v2236, 0.0
        %v2411 = vmax.f32 %v2239, 0.0
        %v2412 = vmax.f32 %v2244, 0.0
        %v2413 = vmax.f32 %v2247, 0.0
        %v2414 = vmax.f32 %v2252, 0.0
        %v2415 = vmax.f32 %v2255, 0.0
        %v2416 = vmax.f32 %v2260, 0.0
        %v2417 = vmax.f32 %v2263, 0.0
        %v2418 = vmax.f32 %v2268, 0.0
        %v2419 = vmax.f32 %v2271, 0.0
        %v2420 = vmax.f32 %v2276, 0.0
        %v2421 = vmax.f32 %v2279, 0.0
        %v2422 = vmax.f32 %v2284, 0.0
        %v2423 = vmax.f32 %v2287, 0.0
        %v2424 = vmax.f32 %v2292, 0.0
        %v2425 = vmax.f32 %v2295, 0.0
        %v2426 = vld [vmem:[%s5] sm:$0xf]
        %v2427 = vld [vmem:[%s5 + $0x4] sm:$0xf]
        %v2428 = vld [vmem:[%s5 + $0x8] sm:$0xf]
        %v2429 = vld [vmem:[%s5 + $0xc] sm:$0xf]
        %v2430 = vld [vmem:[%s5 + $0x10] sm:$0xf]
        %v2431 = vld [vmem:[%s5 + $0x14] sm:$0xf]
        %v2432 = vld [vmem:[%s5 + $0x18] sm:$0xf]
        %v2433 = vld [vmem:[%s5 + $0x1c] sm:$0xf]
        %v2434 = vld [vmem:[%s5 + $0x20] sm:$0xf]
        %v2435 = vld [vmem:[%s5 + $0x24] sm:$0xf]
        %v2436 = vld [vmem:[%s5 + $0x28] sm:$0xf]
        %v2437 = vld [vmem:[%s5 + $0x2c] sm:$0xf]
        %v2438 = vld [vmem:[%s5 + $0x30] sm:$0xf]
        %v2439 = vld [vmem:[%s5 + $0x34] sm:$0xf]
        %v2440 = vld [vmem:[%s5 + $0x38] sm:$0xf]
        %v2441 = vld [vmem:[%s5 + $0x3c] sm:$0xf]
        %v2442 = vld [vmem:[%s6] sm:$0x1]
        %v2443 = vpack.c.bf16 %v2299, %v2298
        %v2444 = vpack.c.bf16 %v2301, %v2300
        %v2445 = vpack.c.bf16 %v2303, %v2302
        %v2446 = vpack.c.bf16 %v2305, %v2304
        %v2447 = vpack.c.bf16 %v2307, %v2306
        %v2448 = vpack.c.bf16 %v2309, %v2308
        %v2449 = vpack.c.bf16 %v2311, %v2310
        %v2450 = vpack.c.bf16 %v2313, %v2312
        %v2451 = vpack.c.bf16 %v2315, %v2314
        %v2452 = vpack.c.bf16 %v2317, %v2316
        %v2453 = vpack.c.bf16 %v2319, %v2318
        %v2454 = vpack.c.bf16 %v2321, %v2320
        %v2455 = vpack.c.bf16 %v2323, %v2322
        %v2456 = vpack.c.bf16 %v2325, %v2324
        %v2457 = vpack.c.bf16 %v2327, %v2326
        %v2458 = vpack.c.bf16 %v2329, %v2328
        %v2459 = vpack.c.bf16 %v2331, %v2330
        %v2460 = vpack.c.bf16 %v2333, %v2332
        %v2461 = vpack.c.bf16 %v2335, %v2334
        %v2462 = vpack.c.bf16 %v2337, %v2336
        %v2463 = vpack.c.bf16 %v2339, %v2338
        %v2464 = vpack.c.bf16 %v2341, %v2340
        %v2465 = vpack.c.bf16 %v2343, %v2342
        %v2466 = vpack.c.bf16 %v2345, %v2344
        %v2467 = vpack.c.bf16 %v2347, %v2346
        %v2468 = vpack.c.bf16 %v2349, %v2348
        %v2469 = vpack.c.bf16 %v2351, %v2350
        %v2470 = vpack.c.bf16 %v2353, %v2352
        %v2471 = vpack.c.bf16 %v2355, %v2354
        %v2472 = vpack.c.bf16 %v2357, %v2356
        %v2473 = vpack.c.bf16 %v2359, %v2358
        %v2474 = vpack.c.bf16 %v2361, %v2360
        %v2475 = vpack.c.bf16 %v2363, %v2362
        %v2476 = vpack.c.bf16 %v2365, %v2364
        %v2477 = vpack.c.bf16 %v2367, %v2366
        %v2478 = vpack.c.bf16 %v2369, %v2368
        %v2479 = vpack.c.bf16 %v2371, %v2370
        %v2480 = vpack.c.bf16 %v2373, %v2372
        %v2481 = vpack.c.bf16 %v2375, %v2374
        %v2482 = vpack.c.bf16 %v2377, %v2376
        %v2483 = vpack.c.bf16 %v2379, %v2378
        %v2484 = vpack.c.bf16 %v2381, %v2380
        %v2485 = vpack.c.bf16 %v2383, %v2382
        %v2486 = vpack.c.bf16 %v2385, %v2384
        %v2487 = vpack.c.bf16 %v2387, %v2386
        %v2488 = vpack.c.bf16 %v2389, %v2388
        %v2489 = vpack.c.bf16 %v2391, %v2390
        %v2490 = vpack.c.bf16 %v2393, %v2392
        %v2491 = vpack.c.bf16 %v2395, %v2394
        %v2492 = vpack.c.bf16 %v2397, %v2396
        %v2493 = vpack.c.bf16 %v2399, %v2398
        %v2494 = vpack.c.bf16 %v2401, %v2400
        %v2495 = vpack.c.bf16 %v2403, %v2402
        %v2496 = vpack.c.bf16 %v2405, %v2404
        %v2497 = vpack.c.bf16 %v2407, %v2406
        %v2498 = vpack.c.bf16 %v2409, %v2408
        %v2499 = vpack.c.bf16 %v2411, %v2410
        %v2500 = vpack.c.bf16 %v2413, %v2412
        %v2501 = vpack.c.bf16 %v2415, %v2414
        %v2502 = vpack.c.bf16 %v2417, %v2416
        %v2503 = vpack.c.bf16 %v2419, %v2418
        %v2504 = vpack.c.bf16 %v2421, %v2420
        %v2505 = vpack.c.bf16 %v2423, %v2422
        %v2506 = vpack.c.bf16 %v2425, %v2424
        %v2508 = vlaneseq
        %v2509 = vshrl.u32 %v2508, 7
        %v2510 = vsub.s32 0, %v2509
        %v2511 = vrot.slane %v2442, %v2510
        %v2529 = vunpack.c.l.b16 %v2426
        %v2530 = vunpack.c.l.b16 %v2427
        %v2531 = vunpack.c.l.b16 %v2428
        %v2532 = vunpack.c.l.b16 %v2429
        %v2533 = vunpack.c.l.b16 %v2430
        %v2534 = vunpack.c.l.b16 %v2431
        %v2535 = vunpack.c.l.b16 %v2432
        %v2536 = vunpack.c.l.b16 %v2433
        %v2537 = vunpack.c.l.b16 %v2434
        %v2538 = vunpack.c.l.b16 %v2435
        %v2539 = vunpack.c.l.b16 %v2436
        %v2540 = vunpack.c.l.b16 %v2437
        %v2541 = vunpack.c.l.b16 %v2438
        %v2542 = vunpack.c.l.b16 %v2439
        %v2543 = vunpack.c.l.b16 %v2440
        %v2544 = vunpack.c.l.b16 %v2441
        %v2545 = vpack.c.b16 %v2530, %v2529
        %v2546 = vpack.c.b16 %v2532, %v2531
        %v2547 = vpack.c.b16 %v2534, %v2533
        %v2548 = vpack.c.b16 %v2536, %v2535
        %v2549 = vpack.c.b16 %v2538, %v2537
        %v2550 = vpack.c.b16 %v2540, %v2539
        %v2551 = vpack.c.b16 %v2542, %v2541
        %v2552 = vpack.c.b16 %v2544, %v2543
        %2561 = vmatprep.subr.bf16.mxu0 0
        %2562 = vmatpush1.bf16.msra.mxu0 %v2545
        %2563 = vmatprep.subr.bf16.mxu0 0
        %2564 = vmatpush1.bf16.msra.mxu0 %v2546
        %2565 = vmatprep.subr.bf16.mxu0 0
        %2566 = vmatpush1.bf16.msra.mxu0 %v2547
        %2567 = vmatprep.subr.bf16.mxu0 0
        %2568 = vmatpush1.bf16.msra.mxu0 %v2548
        %2569 = vmatprep.subr.bf16.mxu0 0
        %2570 = vmatpush1.bf16.msra.mxu0 %v2549
        %2571 = vmatprep.subr.bf16.mxu0 0
        %2572 = vmatpush1.bf16.msra.mxu0 %v2550
        %2573 = vmatprep.subr.bf16.mxu0 0
        %2574 = vmatpush1.bf16.msra.mxu0 %v2551
        %2575 = vmatprep.subr.bf16.mxu0 0
        %2576 = vmatpush1.bf16.msra.mxu0 %v2552
        %2577 = vmatprep.subr.bf16.mxu0 0
        %2578 = vmatpush1.bf16.msra.mxu0 0
        %2579 = vmatprep.subr.bf16.mxu0 0
        %2580 = vmatpush1.bf16.msra.mxu0 0
        %2581 = vmatprep.subr.bf16.mxu0 0
        %2582 = vmatpush1.bf16.msra.mxu0 0
        %2583 = vmatprep.subr.bf16.mxu0 0
        %2584 = vmatpush1.bf16.msra.mxu0 0
        %2585 = vmatprep.subr.bf16.mxu0 0
        %2586 = vmatpush1.bf16.msra.mxu0 0
        %2587 = vmatprep.subr.bf16.mxu0 0
        %2588 = vmatpush1.bf16.msra.mxu0 0
        %2589 = vmatprep.subr.bf16.mxu0 0
        %2590 = vmatpush1.bf16.msra.mxu0 0
        %2591 = vmatprep.subr.bf16.mxu0 0
        %2592 = vmatpush1.bf16.msra.mxu0 0
        %2593 = vmatprep.mubr.bf16.mxu0 0
        %2594 = vmatmul.mubr.bf16.gmra.mrb[0].mxu0 %v2443
        %v2595 = vpop.f32.mrb[0].mxu0
        %v2596 = vadd.f32 %v2511, %v2595
        %v2597 = vpop.f32.mrb[0].mxu0
        %v2598 = vpop.f32.mrb[0].mxu0
        %v2599 = vadd.f32 %v2511, %v2598
        %v2600 = vpop.f32.mrb[0].mxu0
        %2601 = vmatprep.mubr.bf16.mxu0 0
        %2602 = vmatmul.mubr.bf16.gmra.mrb[0].mxu0 %v2444
        %v2603 = vpop.f32.mrb[0].mxu0
        %v2604 = vadd.f32 %v2511, %v2603
        %v2605 = vpop.f32.mrb[0].mxu0
        %v2606 = vpop.f32.mrb[0].mxu0
        %v2607 = vadd.f32 %v2511, %v2606
        %v2608 = vpop.f32.mrb[0].mxu0
        %2609 = vmatprep.mubr.bf16.mxu0 0
        %2610 = vmatmul.mubr.bf16.gmra.mrb[0].mxu0 %v2445
        %v2611 = vpop.f32.mrb[0].mxu0
        %v2612 = vadd.f32 %v2511, %v2611
        %v2613 = vpop.f32.mrb[0].mxu0
        %v2614 = vpop.f32.mrb[0].mxu0
        %v2615 = vadd.f32 %v2511, %v2614
        %v2616 = vpop.f32.mrb[0].mxu0
        %2617 = vmatprep.mubr.bf16.mxu0 0
        %2618 = vmatmul.mubr.bf16.gmra.mrb[0].mxu0 %v2446
        %v2619 = vpop.f32.mrb[0].mxu0
        %v2620 = vadd.f32 %v2511, %v2619
        %v2621 = vpop.f32.mrb[0].mxu0
        %v2622 = vpop.f32.mrb[0].mxu0
        %v2623 = vadd.f32 %v2511, %v2622
        %v2624 = vpop.f32.mrb[0].mxu0
        %2625 = vmatprep.mubr.bf16.mxu0 0
        %2626 = vmatmul.mubr.bf16.gmra.mrb[0].mxu0 %v2447
        %v2627 = vpop.f32.mrb[0].mxu0
        %v2628 = vadd.f32 %v2511, %v2627
        %v2629 = vpop.f32.mrb[0].mxu0
        %v2630 = vpop.f32.mrb[0].mxu0
        %v2631 = vadd.f32 %v2511, %v2630
        %v2632 = vpop.f32.mrb[0].mxu0
        %2633 = vmatprep.mubr.bf16.mxu0 0
        %2634 = vmatmul.mubr.bf16.gmra.mrb[0].mxu0 %v2448
        %v2635 = vpop.f32.mrb[0].mxu0
        %v2636 = vadd.f32 %v2511, %v2635
        %v2637 = vpop.f32.mrb[0].mxu0
        %v2638 = vpop.f32.mrb[0].mxu0
        %v2639 = vadd.f32 %v2511, %v2638
        %v2640 = vpop.f32.mrb[0].mxu0
        %2641 = vmatprep.mubr.bf16.mxu0 0
        %2642 = vmatmul.mubr.bf16.gmra.mrb[0].mxu0 %v2449
        %v2643 = vpop.f32.mrb[0].mxu0
        %v2644 = vadd.f32 %v2511, %v2643
        %v2645 = vpop.f32.mrb[0].mxu0
        %v2646 = vpop.f32.mrb[0].mxu0
        %v2647 = vadd.f32 %v2511, %v2646
        %v2648 = vpop.f32.mrb[0].mxu0
        %2649 = vmatprep.mubr.bf16.mxu0 0
        %2650 = vmatmul.mubr.bf16.gmra.mrb[0].mxu0 %v2450
        %v2651 = vpop.f32.mrb[0].mxu0
        %v2652 = vadd.f32 %v2511, %v2651
        %v2653 = vpop.f32.mrb[0].mxu0
        %v2654 = vpop.f32.mrb[0].mxu0
        %v2655 = vadd.f32 %v2511, %v2654
        %v2656 = vpop.f32.mrb[0].mxu0
        %2657 = vmatprep.mubr.bf16.mxu0 0
        %2658 = vmatmul.mubr.bf16.gmra.mrb[0].mxu0 %v2451
        %v2659 = vpop.f32.mrb[0].mxu0
        %v2660 = vadd.f32 %v2511, %v2659
        %v2661 = vpop.f32.mrb[0].mxu0
        %v2662 = vpop.f32.mrb[0].mxu0
        %v2663 = vadd.f32 %v2511, %v2662
        %v2664 = vpop.f32.mrb[0].mxu0
        %2665 = vmatprep.mubr.bf16.mxu0 0
        %2666 = vmatmul.mubr.bf16.gmra.mrb[0].mxu0 %v2452
        %v2667 = vpop.f32.mrb[0].mxu0
        %v2668 = vadd.f32 %v2511, %v2667
        %v2669 = vpop.f32.mrb[0].mxu0
        %v2670 = vpop.f32.mrb[0].mxu0
        %v2671 = vadd.f32 %v2511, %v2670
        %v2672 = vpop.f32.mrb[0].mxu0
        %2673 = vmatprep.mubr.bf16.mxu0 0
        %2674 = vmatmul.mubr.bf16.gmra.mrb[0].mxu0 %v2453
        %v2675 = vpop.f32.mrb[0].mxu0
        %v2676 = vadd.f32 %v2511, %v2675
        %v2677 = vpop.f32.mrb[0].mxu0
        %v2678 = vpop.f32.mrb[0].mxu0
        %v2679 = vadd.f32 %v2511, %v2678
        %v2680 = vpop.f32.mrb[0].mxu0
        %2681 = vmatprep.mubr.bf16.mxu0 0
        %2682 = vmatmul.mubr.bf16.gmra.mrb[0].mxu0 %v2454
        %v2683 = vpop.f32.mrb[0].mxu0
        %v2684 = vadd.f32 %v2511, %v2683
        %v2685 = vpop.f32.mrb[0].mxu0
        %v2686 = vpop.f32.mrb[0].mxu0
        %v2687 = vadd.f32 %v2511, %v2686
        %v2688 = vpop.f32.mrb[0].mxu0
        %2689 = vmatprep.mubr.bf16.mxu0 0
        %2690 = vmatmul.mubr.bf16.gmra.mrb[0].mxu0 %v2455
        %v2691 = vpop.f32.mrb[0].mxu0
        %v2692 = vadd.f32 %v2511, %v2691
        %v2693 = vpop.f32.mrb[0].mxu0
        %v2694 = vpop.f32.mrb[0].mxu0
        %v2695 = vadd.f32 %v2511, %v2694
        %v2696 = vpop.f32.mrb[0].mxu0
        %2697 = vmatprep.mubr.bf16.mxu0 0
        %2698 = vmatmul.mubr.bf16.gmra.mrb[0].mxu0 %v2456
        %v2699 = vpop.f32.mrb[0].mxu0
        %v2700 = vadd.f32 %v2511, %v2699
        %v2701 = vpop.f32.mrb[0].mxu0
        %v2702 = vpop.f32.mrb[0].mxu0
        %v2703 = vadd.f32 %v2511, %v2702
        %v2704 = vpop.f32.mrb[0].mxu0
        %2705 = vmatprep.mubr.bf16.mxu0 0
        %2706 = vmatmul.mubr.bf16.gmra.mrb[0].mxu0 %v2457
        %v2707 = vpop.f32.mrb[0].mxu0
        %v2708 = vadd.f32 %v2511, %v2707
        %v2709 = vpop.f32.mrb[0].mxu0
        %v2710 = vpop.f32.mrb[0].mxu0
        %v2711 = vadd.f32 %v2511, %v2710
        %v2712 = vpop.f32.mrb[0].mxu0
        %2713 = vmatprep.mubr.bf16.mxu0 0
        %2714 = vmatmul.mubr.bf16.gmra.mrb[0].mxu0 %v2458
        %v2715 = vpop.f32.mrb[0].mxu0
        %v2716 = vadd.f32 %v2511, %v2715
        %v2717 = vpop.f32.mrb[0].mxu0
        %v2718 = vpop.f32.mrb[0].mxu0
        %v2719 = vadd.f32 %v2511, %v2718
        %v2720 = vpop.f32.mrb[0].mxu0
        %2721 = vmatprep.mubr.bf16.mxu0 0
        %2722 = vmatmul.mubr.bf16.gmra.mrb[0].mxu0 %v2459
        %v2723 = vpop.f32.mrb[0].mxu0
        %v2724 = vadd.f32 %v2511, %v2723
        %v2725 = vpop.f32.mrb[0].mxu0
        %v2726 = vpop.f32.mrb[0].mxu0
        %v2727 = vadd.f32 %v2511, %v2726
        %v2728 = vpop.f32.mrb[0].mxu0
        %2729 = vmatprep.mubr.bf16.mxu0 0
        %2730 = vmatmul.mubr.bf16.gmra.mrb[0].mxu0 %v2460
        %v2731 = vpop.f32.mrb[0].mxu0
        %v2732 = vadd.f32 %v2511, %v2731
        %v2733 = vpop.f32.mrb[0].mxu0
        %v2734 = vpop.f32.mrb[0].mxu0
        %v2735 = vadd.f32 %v2511, %v2734
        %v2736 = vpop.f32.mrb[0].mxu0
        %2737 = vmatprep.mubr.bf16.mxu0 0
        %2738 = vmatmul.mubr.bf16.gmra.mrb[0].mxu0 %v2461
        %v2739 = vpop.f32.mrb[0].mxu0
        %v2740 = vadd.f32 %v2511, %v2739
        %v2741 = vpop.f32.mrb[0].mxu0
        %v2742 = vpop.f32.mrb[0].mxu0
        %v2743 = vadd.f32 %v2511, %v2742
        %v2744 = vpop.f32.mrb[0].mxu0
        %2745 = vmatprep.mubr.bf16.mxu0 0
        %2746 = vmatmul.mubr.bf16.gmra.mrb[0].mxu0 %v2462
        %v2747 = vpop.f32.mrb[0].mxu0
        %v2748 = vadd.f32 %v2511, %v2747
        %v2749 = vpop.f32.mrb[0].mxu0
        %v2750 = vpop.f32.mrb[0].mxu0
        %v2751 = vadd.f32 %v2511, %v2750
        %v2752 = vpop.f32.mrb[0].mxu0
        %2753 = vmatprep.mubr.bf16.mxu0 0
        %2754 = vmatmul.mubr.bf16.gmra.mrb[0].mxu0 %v2463
        %v2755 = vpop.f32.mrb[0].mxu0
        %v2756 = vadd.f32 %v2511, %v2755
        %v2757 = vpop.f32.mrb[0].mxu0
        %v2758 = vpop.f32.mrb[0].mxu0
        %v2759 = vadd.f32 %v2511, %v2758
        %v2760 = vpop.f32.mrb[0].mxu0
        %2761 = vmatprep.mubr.bf16.mxu0 0
        %2762 = vmatmul.mubr.bf16.gmra.mrb[0].mxu0 %v2464
        %v2763 = vpop.f32.mrb[0].mxu0
        %v2764 = vadd.f32 %v2511, %v2763
        %v2765 = vpop.f32.mrb[0].mxu0
        %v2766 = vpop.f32.mrb[0].mxu0
        %v2767 = vadd.f32 %v2511, %v2766
        %v2768 = vpop.f32.mrb[0].mxu0
        %2769 = vmatprep.mubr.bf16.mxu0 0
        %2770 = vmatmul.mubr.bf16.gmra.mrb[0].mxu0 %v2465
        %v2771 = vpop.f32.mrb[0].mxu0
        %v2772 = vadd.f32 %v2511, %v2771
        %v2773 = vpop.f32.mrb[0].mxu0
        %v2774 = vpop.f32.mrb[0].mxu0
        %v2775 = vadd.f32 %v2511, %v2774
        %v2776 = vpop.f32.mrb[0].mxu0
        %2777 = vmatprep.mubr.bf16.mxu0 0
        %2778 = vmatmul.mubr.bf16.gmra.mrb[0].mxu0 %v2466
        %v2779 = vpop.f32.mrb[0].mxu0
        %v2780 = vadd.f32 %v2511, %v2779
        %v2781 = vpop.f32.mrb[0].mxu0
        %v2782 = vpop.f32.mrb[0].mxu0
        %v2783 = vadd.f32 %v2511, %v2782
        %v2784 = vpop.f32.mrb[0].mxu0
        %2785 = vmatprep.mubr.bf16.mxu0 0
        %2786 = vmatmul.mubr.bf16.gmra.mrb[0].mxu0 %v2467
        %v2787 = vpop.f32.mrb[0].mxu0
        %v2788 = vadd.f32 %v2511, %v2787
        %v2789 = vpop.f32.mrb[0].mxu0
        %v2790 = vpop.f32.mrb[0].mxu0
        %v2791 = vadd.f32 %v2511, %v2790
        %v2792 = vpop.f32.mrb[0].mxu0
        %2793 = vmatprep.mubr.bf16.mxu0 0
        %2794 = vmatmul.mubr.bf16.gmra.mrb[0].mxu0 %v2468
        %v2795 = vpop.f32.mrb[0].mxu0
        %v2796 = vadd.f32 %v2511, %v2795
        %v2797 = vpop.f32.mrb[0].mxu0
        %v2798 = vpop.f32.mrb[0].mxu0
        %v2799 = vadd.f32 %v2511, %v2798
        %v2800 = vpop.f32.mrb[0].mxu0
        %2801 = vmatprep.mubr.bf16.mxu0 0
        %2802 = vmatmul.mubr.bf16.gmra.mrb[0].mxu0 %v2469
        %v2803 = vpop.f32.mrb[0].mxu0
        %v2804 = vadd.f32 %v2511, %v2803
        %v2805 = vpop.f32.mrb[0].mxu0
        %v2806 = vpop.f32.mrb[0].mxu0
        %v2807 = vadd.f32 %v2511, %v2806
        %v2808 = vpop.f32.mrb[0].mxu0
        %2809 = vmatprep.mubr.bf16.mxu0 0
        %2810 = vmatmul.mubr.bf16.gmra.mrb[0].mxu0 %v2470
        %v2811 = vpop.f32.mrb[0].mxu0
        %v2812 = vadd.f32 %v2511, %v2811
        %v2813 = vpop.f32.mrb[0].mxu0
        %v2814 = vpop.f32.mrb[0].mxu0
        %v2815 = vadd.f32 %v2511, %v2814
        %v2816 = vpop.f32.mrb[0].mxu0
        %2817 = vmatprep.mubr.bf16.mxu0 0
        %2818 = vmatmul.mubr.bf16.gmra.mrb[0].mxu0 %v2471
        %v2819 = vpop.f32.mrb[0].mxu0
        %v2820 = vadd.f32 %v2511, %v2819
        %v2821 = vpop.f32.mrb[0].mxu0
        %v2822 = vpop.f32.mrb[0].mxu0
        %v2823 = vadd.f32 %v2511, %v2822
        %v2824 = vpop.f32.mrb[0].mxu0
        %2825 = vmatprep.mubr.bf16.mxu0 0
        %2826 = vmatmul.mubr.bf16.gmra.mrb[0].mxu0 %v2472
        %v2827 = vpop.f32.mrb[0].mxu0
        %v2828 = vadd.f32 %v2511, %v2827
        %v2829 = vpop.f32.mrb[0].mxu0
        %v2830 = vpop.f32.mrb[0].mxu0
        %v2831 = vadd.f32 %v2511, %v2830
        %v2832 = vpop.f32.mrb[0].mxu0
        %2833 = vmatprep.mubr.bf16.mxu0 0
        %2834 = vmatmul.mubr.bf16.gmra.mrb[0].mxu0 %v2473
        %v2835 = vpop.f32.mrb[0].mxu0
        %v2836 = vadd.f32 %v2511, %v2835
        %v2837 = vpop.f32.mrb[0].mxu0
        %v2838 = vpop.f32.mrb[0].mxu0
        %v2839 = vadd.f32 %v2511, %v2838
        %v2840 = vpop.f32.mrb[0].mxu0
        %2841 = vmatprep.mubr.bf16.mxu0 0
        %2842 = vmatmul.mubr.bf16.gmra.mrb[0].mxu0 %v2474
        %v2843 = vpop.f32.mrb[0].mxu0
        %v2844 = vadd.f32 %v2511, %v2843
        %v2845 = vpop.f32.mrb[0].mxu0
        %v2846 = vpop.f32.mrb[0].mxu0
        %v2847 = vadd.f32 %v2511, %v2846
        %v2848 = vpop.f32.mrb[0].mxu0
        %2849 = vmatprep.mubr.bf16.mxu0 0
        %2850 = vmatmul.mubr.bf16.gmra.mrb[0].mxu0 %v2475
        %v2851 = vpop.f32.mrb[0].mxu0
        %v2852 = vadd.f32 %v2511, %v2851
        %v2853 = vpop.f32.mrb[0].mxu0
        %v2854 = vpop.f32.mrb[0].mxu0
        %v2855 = vadd.f32 %v2511, %v2854
        %v2856 = vpop.f32.mrb[0].mxu0
        %2857 = vmatprep.mubr.bf16.mxu0 0
        %2858 = vmatmul.mubr.bf16.gmra.mrb[0].mxu0 %v2476
        %v2859 = vpop.f32.mrb[0].mxu0
        %v2860 = vadd.f32 %v2511, %v2859
        %v2861 = vpop.f32.mrb[0].mxu0
        %v2862 = vpop.f32.mrb[0].mxu0
        %v2863 = vadd.f32 %v2511, %v2862
        %v2864 = vpop.f32.mrb[0].mxu0
        %2865 = vmatprep.mubr.bf16.mxu0 0
        %2866 = vmatmul.mubr.bf16.gmra.mrb[0].mxu0 %v2477
        %v2867 = vpop.f32.mrb[0].mxu0
        %v2868 = vadd.f32 %v2511, %v2867
        %v2869 = vpop.f32.mrb[0].mxu0
        %v2870 = vpop.f32.mrb[0].mxu0
        %v2871 = vadd.f32 %v2511, %v2870
        %v2872 = vpop.f32.mrb[0].mxu0
        %2873 = vmatprep.mubr.bf16.mxu0 0
        %2874 = vmatmul.mubr.bf16.gmra.mrb[0].mxu0 %v2478
        %v2875 = vpop.f32.mrb[0].mxu0
        %v2876 = vadd.f32 %v2511, %v2875
        %v2877 = vpop.f32.mrb[0].mxu0
        %v2878 = vpop.f32.mrb[0].mxu0
        %v2879 = vadd.f32 %v2511, %v2878
        %v2880 = vpop.f32.mrb[0].mxu0
        %2881 = vmatprep.mubr.bf16.mxu0 0
        %2882 = vmatmul.mubr.bf16.gmra.mrb[0].mxu0 %v2479
        %v2883 = vpop.f32.mrb[0].mxu0
        %v2884 = vadd.f32 %v2511, %v2883
        %v2885 = vpop.f32.mrb[0].mxu0
        %v2886 = vpop.f32.mrb[0].mxu0
        %v2887 = vadd.f32 %v2511, %v2886
        %v2888 = vpop.f32.mrb[0].mxu0
        %2889 = vmatprep.mubr.bf16.mxu0 0
        %2890 = vmatmul.mubr.bf16.gmra.mrb[0].mxu0 %v2480
        %v2891 = vpop.f32.mrb[0].mxu0
        %v2892 = vadd.f32 %v2511, %v2891
        %v2893 = vpop.f32.mrb[0].mxu0
        %v2894 = vpop.f32.mrb[0].mxu0
        %v2895 = vadd.f32 %v2511, %v2894
        %v2896 = vpop.f32.mrb[0].mxu0
        %2897 = vmatprep.mubr.bf16.mxu0 0
        %2898 = vmatmul.mubr.bf16.gmra.mrb[0].mxu0 %v2481
        %v2899 = vpop.f32.mrb[0].mxu0
        %v2900 = vadd.f32 %v2511, %v2899
        %v2901 = vpop.f32.mrb[0].mxu0
        %v2902 = vpop.f32.mrb[0].mxu0
        %v2903 = vadd.f32 %v2511, %v2902
        %v2904 = vpop.f32.mrb[0].mxu0
        %2905 = vmatprep.mubr.bf16.mxu0 0
        %2906 = vmatmul.mubr.bf16.gmra.mrb[0].mxu0 %v2482
        %v2907 = vpop.f32.mrb[0].mxu0
        %v2908 = vadd.f32 %v2511, %v2907
        %v2909 = vpop.f32.mrb[0].mxu0
        %v2910 = vpop.f32.mrb[0].mxu0
        %v2911 = vadd.f32 %v2511, %v2910
        %v2912 = vpop.f32.mrb[0].mxu0
        %2913 = vmatprep.mubr.bf16.mxu0 0
        %2914 = vmatmul.mubr.bf16.gmra.mrb[0].mxu0 %v2483
        %v2915 = vpop.f32.mrb[0].mxu0
        %v2916 = vadd.f32 %v2511, %v2915
        %v2917 = vpop.f32.mrb[0].mxu0
        %v2918 = vpop.f32.mrb[0].mxu0
        %v2919 = vadd.f32 %v2511, %v2918
        %v2920 = vpop.f32.mrb[0].mxu0
        %2921 = vmatprep.mubr.bf16.mxu0 0
        %2922 = vmatmul.mubr.bf16.gmra.mrb[0].mxu0 %v2484
        %v2923 = vpop.f32.mrb[0].mxu0
        %v2924 = vadd.f32 %v2511, %v2923
        %v2925 = vpop.f32.mrb[0].mxu0
        %v2926 = vpop.f32.mrb[0].mxu0
        %v2927 = vadd.f32 %v2511, %v2926
        %v2928 = vpop.f32.mrb[0].mxu0
        %2929 = vmatprep.mubr.bf16.mxu0 0
        %2930 = vmatmul.mubr.bf16.gmra.mrb[0].mxu0 %v2485
        %v2931 = vpop.f32.mrb[0].mxu0
        %v2932 = vadd.f32 %v2511, %v2931
        %v2933 = vpop.f32.mrb[0].mxu0
        %v2934 = vpop.f32.mrb[0].mxu0
        %v2935 = vadd.f32 %v2511, %v2934
        %v2936 = vpop.f32.mrb[0].mxu0
        %2937 = vmatprep.mubr.bf16.mxu0 0
        %2938 = vmatmul.mubr.bf16.gmra.mrb[0].mxu0 %v2486
        %v2939 = vpop.f32.mrb[0].mxu0
        %v2940 = vadd.f32 %v2511, %v2939
        %v2941 = vpop.f32.mrb[0].mxu0
        %v2942 = vpop.f32.mrb[0].mxu0
        %v2943 = vadd.f32 %v2511, %v2942
        %v2944 = vpop.f32.mrb[0].mxu0
        %2945 = vmatprep.mubr.bf16.mxu0 0
        %2946 = vmatmul.mubr.bf16.gmra.mrb[0].mxu0 %v2487
        %v2947 = vpop.f32.mrb[0].mxu0
        %v2948 = vadd.f32 %v2511, %v2947
        %v2949 = vpop.f32.mrb[0].mxu0
        %v2950 = vpop.f32.mrb[0].mxu0
        %v2951 = vadd.f32 %v2511, %v2950
        %v2952 = vpop.f32.mrb[0].mxu0
        %2953 = vmatprep.mubr.bf16.mxu0 0
        %2954 = vmatmul.mubr.bf16.gmra.mrb[0].mxu0 %v2488
        %v2955 = vpop.f32.mrb[0].mxu0
        %v2956 = vadd.f32 %v2511, %v2955
        %v2957 = vpop.f32.mrb[0].mxu0
        %v2958 = vpop.f32.mrb[0].mxu0
        %v2959 = vadd.f32 %v2511, %v2958
        %v2960 = vpop.f32.mrb[0].mxu0
        %2961 = vmatprep.mubr.bf16.mxu0 0
        %2962 = vmatmul.mubr.bf16.gmra.mrb[0].mxu0 %v2489
        %v2963 = vpop.f32.mrb[0].mxu0
        %v2964 = vadd.f32 %v2511, %v2963
        %v2965 = vpop.f32.mrb[0].mxu0
        %v2966 = vpop.f32.mrb[0].mxu0
        %v2967 = vadd.f32 %v2511, %v2966
        %v2968 = vpop.f32.mrb[0].mxu0
        %2969 = vmatprep.mubr.bf16.mxu0 0
        %2970 = vmatmul.mubr.bf16.gmra.mrb[0].mxu0 %v2490
        %v2971 = vpop.f32.mrb[0].mxu0
        %v2972 = vadd.f32 %v2511, %v2971
        %v2973 = vpop.f32.mrb[0].mxu0
        %v2974 = vpop.f32.mrb[0].mxu0
        %v2975 = vadd.f32 %v2511, %v2974
        %v2976 = vpop.f32.mrb[0].mxu0
        %2977 = vmatprep.mubr.bf16.mxu0 0
        %2978 = vmatmul.mubr.bf16.gmra.mrb[0].mxu0 %v2491
        %v2979 = vpop.f32.mrb[0].mxu0
        %v2980 = vadd.f32 %v2511, %v2979
        %v2981 = vpop.f32.mrb[0].mxu0
        %v2982 = vpop.f32.mrb[0].mxu0
        %v2983 = vadd.f32 %v2511, %v2982
        %v2984 = vpop.f32.mrb[0].mxu0
        %2985 = vmatprep.mubr.bf16.mxu0 0
        %2986 = vmatmul.mubr.bf16.gmra.mrb[0].mxu0 %v2492
        %v2987 = vpop.f32.mrb[0].mxu0
        %v2988 = vadd.f32 %v2511, %v2987
        %v2989 = vpop.f32.mrb[0].mxu0
        %v2990 = vpop.f32.mrb[0].mxu0
        %v2991 = vadd.f32 %v2511, %v2990
        %v2992 = vpop.f32.mrb[0].mxu0
        %2993 = vmatprep.mubr.bf16.mxu0 0
        %2994 = vmatmul.mubr.bf16.gmra.mrb[0].mxu0 %v2493
        %v2995 = vpop.f32.mrb[0].mxu0
        %v2996 = vadd.f32 %v2511, %v2995
        %v2997 = vpop.f32.mrb[0].mxu0
        %v2998 = vpop.f32.mrb[0].mxu0
        %v2999 = vadd.f32 %v2511, %v2998
        %v3000 = vpop.f32.mrb[0].mxu0
        %3001 = vmatprep.mubr.bf16.mxu0 0
        %3002 = vmatmul.mubr.bf16.gmra.mrb[0].mxu0 %v2494
        %v3003 = vpop.f32.mrb[0].mxu0
        %v3004 = vadd.f32 %v2511, %v3003
        %v3005 = vpop.f32.mrb[0].mxu0
        %v3006 = vpop.f32.mrb[0].mxu0
        %v3007 = vadd.f32 %v2511, %v3006
        %v3008 = vpop.f32.mrb[0].mxu0
        %3009 = vmatprep.mubr.bf16.mxu0 0
        %3010 = vmatmul.mubr.bf16.gmra.mrb[0].mxu0 %v2495
        %v3011 = vpop.f32.mrb[0].mxu0
        %v3012 = vadd.f32 %v2511, %v3011
        %v3013 = vpop.f32.mrb[0].mxu0
        %v3014 = vpop.f32.mrb[0].mxu0
        %v3015 = vadd.f32 %v2511, %v3014
        %v3016 = vpop.f32.mrb[0].mxu0
        %3017 = vmatprep.mubr.bf16.mxu0 0
        %3018 = vmatmul.mubr.bf16.gmra.mrb[0].mxu0 %v2496
        %v3019 = vpop.f32.mrb[0].mxu0
        %v3020 = vadd.f32 %v2511, %v3019
        %v3021 = vpop.f32.mrb[0].mxu0
        %v3022 = vpop.f32.mrb[0].mxu0
        %v3023 = vadd.f32 %v2511, %v3022
        %v3024 = vpop.f32.mrb[0].mxu0
        %3025 = vmatprep.mubr.bf16.mxu0 0
        %3026 = vmatmul.mubr.bf16.gmra.mrb[0].mxu0 %v2497
        %v3027 = vpop.f32.mrb[0].mxu0
        %v3028 = vadd.f32 %v2511, %v3027
        %v3029 = vpop.f32.mrb[0].mxu0
        %v3030 = vpop.f32.mrb[0].mxu0
        %v3031 = vadd.f32 %v2511, %v3030
        %v3032 = vpop.f32.mrb[0].mxu0
        %3033 = vmatprep.mubr.bf16.mxu0 0
        %3034 = vmatmul.mubr.bf16.gmra.mrb[0].mxu0 %v2498
        %v3035 = vpop.f32.mrb[0].mxu0
        %v3036 = vadd.f32 %v2511, %v3035
        %v3037 = vpop.f32.mrb[0].mxu0
        %v3038 = vpop.f32.mrb[0].mxu0
        %v3039 = vadd.f32 %v2511, %v3038
        %v3040 = vpop.f32.mrb[0].mxu0
        %3041 = vmatprep.mubr.bf16.mxu0 0
        %3042 = vmatmul.mubr.bf16.gmra.mrb[0].mxu0 %v2499
        %v3043 = vpop.f32.mrb[0].mxu0
        %v3044 = vadd.f32 %v2511, %v3043
        %v3045 = vpop.f32.mrb[0].mxu0
        %v3046 = vpop.f32.mrb[0].mxu0
        %v3047 = vadd.f32 %v2511, %v3046
        %v3048 = vpop.f32.mrb[0].mxu0
        %3049 = vmatprep.mubr.bf16.mxu0 0
        %3050 = vmatmul.mubr.bf16.gmra.mrb[0].mxu0 %v2500
        %v3051 = vpop.f32.mrb[0].mxu0
        %v3052 = vadd.f32 %v2511, %v3051
        %v3053 = vpop.f32.mrb[0].mxu0
        %v3054 = vpop.f32.mrb[0].mxu0
        %v3055 = vadd.f32 %v2511, %v3054
        %v3056 = vpop.f32.mrb[0].mxu0
        %3057 = vmatprep.mubr.bf16.mxu0 0
        %3058 = vmatmul.mubr.bf16.gmra.mrb[0].mxu0 %v2501
        %v3059 = vpop.f32.mrb[0].mxu0
        %v3060 = vadd.f32 %v2511, %v3059
        %v3061 = vpop.f32.mrb[0].mxu0
        %v3062 = vpop.f32.mrb[0].mxu0
        %v3063 = vadd.f32 %v2511, %v3062
        %v3064 = vpop.f32.mrb[0].mxu0
        %3065 = vmatprep.mubr.bf16.mxu0 0
        %3066 = vmatmul.mubr.bf16.gmra.mrb[0].mxu0 %v2502
        %v3067 = vpop.f32.mrb[0].mxu0
        %v3068 = vadd.f32 %v2511, %v3067
        %v3069 = vpop.f32.mrb[0].mxu0
        %v3070 = vpop.f32.mrb[0].mxu0
        %v3071 = vadd.f32 %v2511, %v3070
        %v3072 = vpop.f32.mrb[0].mxu0
        %3073 = vmatprep.mubr.bf16.mxu0 0
        %3074 = vmatmul.mubr.bf16.gmra.mrb[0].mxu0 %v2503
        %v3075 = vpop.f32.mrb[0].mxu0
        %v3076 = vadd.f32 %v2511, %v3075
        %v3077 = vpop.f32.mrb[0].mxu0
        %v3078 = vpop.f32.mrb[0].mxu0
        %v3079 = vadd.f32 %v2511, %v3078
        %v3080 = vpop.f32.mrb[0].mxu0
        %3081 = vmatprep.mubr.bf16.mxu0 0
        %3082 = vmatmul.mubr.bf16.gmra.mrb[0].mxu0 %v2504
        %v3083 = vpop.f32.mrb[0].mxu0
        %v3084 = vadd.f32 %v2511, %v3083
        %v3085 = vpop.f32.mrb[0].mxu0
        %v3086 = vpop.f32.mrb[0].mxu0
        %v3087 = vadd.f32 %v2511, %v3086
        %v3088 = vpop.f32.mrb[0].mxu0
        %3089 = vmatprep.mubr.bf16.mxu0 0
        %3090 = vmatmul.mubr.bf16.gmra.mrb[0].mxu0 %v2505
        %v3091 = vpop.f32.mrb[0].mxu0
        %v3092 = vadd.f32 %v2511, %v3091
        %v3093 = vpop.f32.mrb[0].mxu0
        %v3094 = vpop.f32.mrb[0].mxu0
        %v3095 = vadd.f32 %v2511, %v3094
        %v3096 = vpop.f32.mrb[0].mxu0
        %3097 = vmatprep.mubr.bf16.mxu0 0
        %3098 = vmatmul.mubr.bf16.gmra.mrb[0].mxu0 %v2506
        %v3099 = vpop.f32.mrb[0].mxu0
        %v3100 = vadd.f32 %v2511, %v3099
        %v3101 = vpop.f32.mrb[0].mxu0
        %v3102 = vpop.f32.mrb[0].mxu0
        %v3103 = vadd.f32 %v2511, %v3102
        %v3104 = vpop.f32.mrb[0].mxu0
        %3105 = vdwg.mxu0
        %3106 = vst [vmem:[%s272] sm:$0xff] %v2596
        %3107 = vst [vmem:[%s272 + $0x8] sm:$0xff] %v2599
        %3108 = vst [vmem:[%s272 + $0x10] sm:$0xff] %v2604
        %3109 = vst [vmem:[%s272 + $0x18] sm:$0xff] %v2607
        %3110 = vst [vmem:[%s272 + $0x20] sm:$0xff] %v2612
        %3111 = vst [vmem:[%s272 + $0x28] sm:$0xff] %v2615
        %3112 = vst [vmem:[%s272 + $0x30] sm:$0xff] %v2620
        %3113 = vst [vmem:[%s272 + $0x38] sm:$0xff] %v2623
        %3114 = vst [vmem:[%s272 + $0x40] sm:$0xff] %v2628
        %3115 = vst [vmem:[%s272 + $0x48] sm:$0xff] %v2631
        %3116 = vst [vmem:[%s272 + $0x50] sm:$0xff] %v2636
        %3117 = vst [vmem:[%s272 + $0x58] sm:$0xff] %v2639
        %3118 = vst [vmem:[%s272 + $0x60] sm:$0xff] %v2644
        %3119 = vst [vmem:[%s272 + $0x68] sm:$0xff] %v2647
        %3120 = vst [vmem:[%s272 + $0x70] sm:$0xff] %v2652
        %3121 = vst [vmem:[%s272 + $0x78] sm:$0xff] %v2655
        %3122 = vst [vmem:[%s272 + $0x80] sm:$0xff] %v2660
        %3123 = vst [vmem:[%s272 + $0x88] sm:$0xff] %v2663
        %3124 = vst [vmem:[%s272 + $0x90] sm:$0xff] %v2668
        %3125 = vst [vmem:[%s272 + $0x98] sm:$0xff] %v2671
        %3126 = vst [vmem:[%s272 + $0xa0] sm:$0xff] %v2676
        %3127 = vst [vmem:[%s272 + $0xa8] sm:$0xff] %v2679
        %3128 = vst [vmem:[%s272 + $0xb0] sm:$0xff] %v2684
        %3129 = vst [vmem:[%s272 + $0xb8] sm:$0xff] %v2687
        %3130 = vst [vmem:[%s272 + $0xc0] sm:$0xff] %v2692
        %3131 = vst [vmem:[%s272 + $0xc8] sm:$0xff] %v2695
        %3132 = vst [vmem:[%s272 + $0xd0] sm:$0xff] %v2700
        %3133 = vst [vmem:[%s272 + $0xd8] sm:$0xff] %v2703
        %3134 = vst [vmem:[%s272 + $0xe0] sm:$0xff] %v2708
        %3135 = vst [vmem:[%s272 + $0xe8] sm:$0xff] %v2711
        %3136 = vst [vmem:[%s272 + $0xf0] sm:$0xff] %v2716
        %3137 = vst [vmem:[%s272 + $0xf8] sm:$0xff] %v2719
        %3138 = vst [vmem:[%s272 + $0x100] sm:$0xff] %v2724
        %3139 = vst [vmem:[%s272 + $0x108] sm:$0xff] %v2727
        %3140 = vst [vmem:[%s272 + $0x110] sm:$0xff] %v2732
        %3141 = vst [vmem:[%s272 + $0x118] sm:$0xff] %v2735
        %3142 = vst [vmem:[%s272 + $0x120] sm:$0xff] %v2740
        %3143 = vst [vmem:[%s272 + $0x128] sm:$0xff] %v2743
        %3144 = vst [vmem:[%s272 + $0x130] sm:$0xff] %v2748
        %3145 = vst [vmem:[%s272 + $0x138] sm:$0xff] %v2751
        %3146 = vst [vmem:[%s272 + $0x140] sm:$0xff] %v2756
        %3147 = vst [vmem:[%s272 + $0x148] sm:$0xff] %v2759
        %3148 = vst [vmem:[%s272 + $0x150] sm:$0xff] %v2764
        %3149 = vst [vmem:[%s272 + $0x158] sm:$0xff] %v2767
        %3150 = vst [vmem:[%s272 + $0x160] sm:$0xff] %v2772
        %3151 = vst [vmem:[%s272 + $0x168] sm:$0xff] %v2775
        %3152 = vst [vmem:[%s272 + $0x170] sm:$0xff] %v2780
        %3153 = vst [vmem:[%s272 + $0x178] sm:$0xff] %v2783
        %3154 = vst [vmem:[%s272 + $0x180] sm:$0xff] %v2788
        %3155 = vst [vmem:[%s272 + $0x188] sm:$0xff] %v2791
        %3156 = vst [vmem:[%s272 + $0x190] sm:$0xff] %v2796
        %3157 = vst [vmem:[%s272 + $0x198] sm:$0xff] %v2799
        %3158 = vst [vmem:[%s272 + $0x1a0] sm:$0xff] %v2804
        %3159 = vst [vmem:[%s272 + $0x1a8] sm:$0xff] %v2807
        %3160 = vst [vmem:[%s272 + $0x1b0] sm:$0xff] %v2812
        %3161 = vst [vmem:[%s272 + $0x1b8] sm:$0xff] %v2815
        %3162 = vst [vmem:[%s272 + $0x1c0] sm:$0xff] %v2820
        %3163 = vst [vmem:[%s272 + $0x1c8] sm:$0xff] %v2823
        %3164 = vst [vmem:[%s272 + $0x1d0] sm:$0xff] %v2828
        %3165 = vst [vmem:[%s272 + $0x1d8] sm:$0xff] %v2831
        %3166 = vst [vmem:[%s272 + $0x1e0] sm:$0xff] %v2836
        %3167 = vst [vmem:[%s272 + $0x1e8] sm:$0xff] %v2839
        %3168 = vst [vmem:[%s272 + $0x1f0] sm:$0xff] %v2844
        %3169 = vst [vmem:[%s272 + $0x1f8] sm:$0xff] %v2847
        %3170 = vst [vmem:[%s272 + $0x200] sm:$0xff] %v2852
        %3171 = vst [vmem:[%s272 + $0x208] sm:$0xff] %v2855
        %3172 = vst [vmem:[%s272 + $0x210] sm:$0xff] %v2860
        %3173 = vst [vmem:[%s272 + $0x218] sm:$0xff] %v2863
        %3174 = vst [vmem:[%s272 + $0x220] sm:$0xff] %v2868
        %3175 = vst [vmem:[%s272 + $0x228] sm:$0xff] %v2871
        %3176 = vst [vmem:[%s272 + $0x230] sm:$0xff] %v2876
        %3177 = vst [vmem:[%s272 + $0x238] sm:$0xff] %v2879
        %3178 = vst [vmem:[%s272 + $0x240] sm:$0xff] %v2884
        %3179 = vst [vmem:[%s272 + $0x248] sm:$0xff] %v2887
        %3180 = vst [vmem:[%s272 + $0x250] sm:$0xff] %v2892
        %3181 = vst [vmem:[%s272 + $0x258] sm:$0xff] %v2895
        %3182 = vst [vmem:[%s272 + $0x260] sm:$0xff] %v2900
        %3183 = vst [vmem:[%s272 + $0x268] sm:$0xff] %v2903
        %3184 = vst [vmem:[%s272 + $0x270] sm:$0xff] %v2908
        %3185 = vst [vmem:[%s272 + $0x278] sm:$0xff] %v2911
        %3186 = vst [vmem:[%s272 + $0x280] sm:$0xff] %v2916
        %3187 = vst [vmem:[%s272 + $0x288] sm:$0xff] %v2919
        %3188 = vst [vmem:[%s272 + $0x290] sm:$0xff] %v2924
        %3189 = vst [vmem:[%s272 + $0x298] sm:$0xff] %v2927
        %3190 = vst [vmem:[%s272 + $0x2a0] sm:$0xff] %v2932
        %3191 = vst [vmem:[%s272 + $0x2a8] sm:$0xff] %v2935
        %3192 = vst [vmem:[%s272 + $0x2b0] sm:$0xff] %v2940
        %3193 = vst [vmem:[%s272 + $0x2b8] sm:$0xff] %v2943
        %3194 = vst [vmem:[%s272 + $0x2c0] sm:$0xff] %v2948
        %3195 = vst [vmem:[%s272 + $0x2c8] sm:$0xff] %v2951
        %3196 = vst [vmem:[%s272 + $0x2d0] sm:$0xff] %v2956
        %3197 = vst [vmem:[%s272 + $0x2d8] sm:$0xff] %v2959
        %3198 = vst [vmem:[%s272 + $0x2e0] sm:$0xff] %v2964
        %3199 = vst [vmem:[%s272 + $0x2e8] sm:$0xff] %v2967
        %3200 = vst [vmem:[%s272 + $0x2f0] sm:$0xff] %v2972
        %3201 = vst [vmem:[%s272 + $0x2f8] sm:$0xff] %v2975
        %3202 = vst [vmem:[%s272 + $0x300] sm:$0xff] %v2980
        %3203 = vst [vmem:[%s272 + $0x308] sm:$0xff] %v2983
        %3204 = vst [vmem:[%s272 + $0x310] sm:$0xff] %v2988
        %3205 = vst [vmem:[%s272 + $0x318] sm:$0xff] %v2991
        %3206 = vst [vmem:[%s272 + $0x320] sm:$0xff] %v2996
        %3207 = vst [vmem:[%s272 + $0x328] sm:$0xff] %v2999
        %3208 = vst [vmem:[%s272 + $0x330] sm:$0xff] %v3004
        %3209 = vst [vmem:[%s272 + $0x338] sm:$0xff] %v3007
        %3210 = vst [vmem:[%s272 + $0x340] sm:$0xff] %v3012
        %3211 = vst [vmem:[%s272 + $0x348] sm:$0xff] %v3015
        %3212 = vst [vmem:[%s272 + $0x350] sm:$0xff] %v3020
        %3213 = vst [vmem:[%s272 + $0x358] sm:$0xff] %v3023
        %3214 = vst [vmem:[%s272 + $0x360] sm:$0xff] %v3028
        %3215 = vst [vmem:[%s272 + $0x368] sm:$0xff] %v3031
        %3216 = vst [vmem:[%s272 + $0x370] sm:$0xff] %v3036
        %3217 = vst [vmem:[%s272 + $0x378] sm:$0xff] %v3039
        %3218 = vst [vmem:[%s272 + $0x380] sm:$0xff] %v3044
        %3219 = vst [vmem:[%s272 + $0x388] sm:$0xff] %v3047
        %3220 = vst [vmem:[%s272 + $0x390] sm:$0xff] %v3052
        %3221 = vst [vmem:[%s272 + $0x398] sm:$0xff] %v3055
        %3222 = vst [vmem:[%s272 + $0x3a0] sm:$0xff] %v3060
        %3223 = vst [vmem:[%s272 + $0x3a8] sm:$0xff] %v3063
        %3224 = vst [vmem:[%s272 + $0x3b0] sm:$0xff] %v3068
        %3225 = vst [vmem:[%s272 + $0x3b8] sm:$0xff] %v3071
        %3226 = vst [vmem:[%s272 + $0x3c0] sm:$0xff] %v3076
        %3227 = vst [vmem:[%s272 + $0x3c8] sm:$0xff] %v3079
        %3228 = vst [vmem:[%s272 + $0x3d0] sm:$0xff] %v3084
        %3229 = vst [vmem:[%s272 + $0x3d8] sm:$0xff] %v3087
        %3230 = vst [vmem:[%s272 + $0x3e0] sm:$0xff] %v3092
        %3231 = vst [vmem:[%s272 + $0x3e8] sm:$0xff] %v3095
        %3232 = vst [vmem:[%s272 + $0x3f0] sm:$0xff] %v3100
        %3233 = vst [vmem:[%s272 + $0x3f8] sm:$0xff] %v3103
        %s3234 = sand.u32 %s181, 1
        %s3235 = scalar_lea.sflag [#allocation3], %s3234
        %s3236 = sand.u32 %s181, 1
        %s3237 = smul.addr %s3236, 1024
        %s3238 = scalar_lea.vmem [#allocation2], %s3237
        // Predicated region
        $region49: #{tpu_custom_call.1} parent=47 // pred_check
          %p3239 = pneg %p191
        $region50: #{tpu_custom_call.1} parent=47 // pred_check_branch
          %3241 = sbr.rel (%p3239) target = $region52
        $region51: #{tpu_custom_call.1} parent=47 // pred_region
          %s3242 = smul.u32 128, %s21
          %s3244 = ssub.s32 16384, 16384
          %3245 = vsyncadd %s3235, %s3244
          %s3246 = smul.addr %s3242, 128
          %s3247 = scalar_lea.hbm %s7, %s3246
          %s3248 = sshll.u32 %s3238, 4
          %s3249 = int_to_ptr.vmem [resolvable:$true] %s3248
          %3254 = dma.vmem_to_hbm [thread:$0]  %s3249, 16384, %s3247, %s3235, 128, 128, 8
        $region52: #{tpu_custom_call.1} parent=47 // pred_fallthru
          _
      $region48: #{tpu_custom_call.1} parent=5 // pred_fallthru
        _
      %p3255 = scmp.le.s32.totalorder 2, %s16
      // Predicated region
      $region53: #{tpu_custom_call.1} parent=5 // pred_check
        %p3256 = pneg %p3255
      $region54: #{tpu_custom_call.1} parent=5 // pred_check_branch
        %3258 = sbr.rel (%p3256) target = $region56
      $region55: #{tpu_custom_call.1} parent=5 // pred_region
        %s3259 = ssub.s32 %s16, 2
        // Predicated region
        $region57: #{tpu_custom_call.1} parent=55 // pred_check
          %p3260 = pneg %p197
        $region58: #{tpu_custom_call.1} parent=55 // pred_check_branch
          %3262 = sbr.rel (%p3260) target = $region60
        $region59: #{tpu_custom_call.1} parent=55 // pred_region
          %s3263 = sand.u32 %s182, 1
          %s3264 = scalar_lea.sflag [#allocation3], %s3263
          %s3265 = sand.u32 %s182, 1
          %s3266 = smul.addr %s3265, 1024
          %s3267 = scalar_lea.vmem [#allocation2], %s3266
          %3268 = dma.done %s3264, 16384
        $region60: #{tpu_custom_call.1} parent=55 // pred_fallthru
          _
      $region56: #{tpu_custom_call.1} parent=5 // pred_fallthru
        _
    $region6: #{tpu_custom_call.1} parent=1 // loop_footer
      %s20 = sadd.s32 1, %s16
    $region7: #{tpu_custom_call.1} parent=1 // loop_footer_branch
      %15 = sbr.rel target = $region3
    $region8: #{tpu_custom_call.1} parent=1 // loop_exit
      _
    %3269 = vsyncpa [#allocation3], 1
    %s3270 = scalar_lea.sflag [#allocation3], 1
    %3271 = vsyncpa %s3270, 1

</llo_original>
